<compile_context>
chip_gen: v7x
topology: tpu7x:2x2x1
jax: 0.10.0
libtpu: 0.0.40
codegen_flags: <defaults>
</compile_context>

<pallas_src>
import functools

import jax
import jax.numpy as jnp
from jax import lax
from jax.experimental import pallas as pl
from jax.experimental.pallas import tpu as pltpu


def _convlstm_kernel(slab_ref, w_ref, b_ref, c_ref, h_out_ref, c_out_ref,
                     patch_ref, *, K, tile_h, W, Hd, Cin):
    """One (batch, H-tile) grid step.

    slab_ref : (tile_h+K-1, Wp, Cin)  bf16  halo slab of padded concat([x, h])
    w_ref    : (K*K*Cin, 4*Hd)        bf16  im2col-reshaped conv weight (HWIO)
    b_ref    : (1, 4*Hd)              f32   conv bias
    c_ref    : (tile_h, W, Hd)        f32   current cell-state tile
    h_out_ref/c_out_ref : (tile_h, W, Hd) f32
    patch_ref: (tile_h*W, K*K*Cin)    bf16  VMEM scratch (im2col patch)
    """
    M = tile_h * W

    # im2col: write each shifted window into its column slice of the VMEM
    # scratch as it is produced (bounded vreg pressure, no giant lane concat).
    # Column order (ky, kx, cin) matches the HWIO reshape of the weight.
    for ky in range(K):
        for kx in range(K):
            win = slab_ref[ky:ky + tile_h, kx:kx + W, :]      # (tile_h, W, Cin)
            col = (ky * K + kx) * Cin
            patch_ref[:, col:col + Cin] = win.reshape(M, Cin)

    # One deep MXU matmul: bf16 operands, f32 accumulation; bias in one add.
    acc = jnp.dot(patch_ref[...], w_ref[...],
                  preferred_element_type=jnp.float32)          # (M, 4*Hd) f32
    acc = acc + b_ref[...]

    # Gate order matches torch.split(combined_conv, hidden_dim, dim=1): i,f,o,g.
    # One full-128-lane sigmoid covers i, f and o; tanh only on the g slice.
    sg = jax.nn.sigmoid(acc)
    i = sg[:, 0 * Hd:1 * Hd]
    f = sg[:, 1 * Hd:2 * Hd]
    o = sg[:, 2 * Hd:3 * Hd]
    g = jnp.tanh(acc[:, 3 * Hd:4 * Hd])

    c_cur = c_ref[...].reshape(M, Hd)
    c_next = f * c_cur + i * g
    h_next = o * jnp.tanh(c_next)

    h_out_ref[...] = h_next.reshape(tile_h, W, Hd)
    c_out_ref[...] = c_next.reshape(tile_h, W, Hd)


def _pick_tile_h(H, W):
    """Largest divisor of H with tile_h * W <= 512 rows per MXU matmul."""
    best = 1
    for t in range(1, H + 1):
        if H % t == 0 and t * W <= 512:
            best = t
    return best


def conv_lstm_cell_nhwc(x, h_cur, c_cur, w_hwio, bias, kernel_size):
    """ConvLSTMCell forward in NHWC (the layout the kernel runs in).

    x: (B,H,W,C_in), h_cur/c_cur: (B,H,W,Hd), w_hwio: (K,K,C_in+Hd,4*Hd),
    bias: (4*Hd,).  Returns (h_next, c_next) in NHWC, f32.
    """
    K = int(kernel_size)
    assert K % 2 == 1, "ConvLSTMCell 'same' padding math assumes odd kernel_size"
    pad = (K - 1) // 2
    B, H, W, _ = x.shape
    Hd = h_cur.shape[-1]
    Cin = x.shape[-1] + Hd

    tile_h = _pick_tile_h(H, W)
    n_t = H // tile_h
    Th = tile_h + K - 1                  # halo rows per tile
    Wp = W + 2 * pad
    M = tile_h * W

    # Padded concat([x, h_cur]) in bf16 (MXU operands are bf16 anyway; halves
    # slab DMA bytes and in-kernel vreg traffic).
    combined = jnp.concatenate([x, h_cur], axis=-1).astype(jnp.bfloat16)
    xpad = jnp.pad(combined, ((0, 0), (pad, pad), (pad, pad), (0, 0)))

    # Halo-expanded slabs: tile i carries its own tile_h + K - 1 padded rows,
    # so per-step VMEM stays O(tile) and the fetch is auto double-buffered.
    slabs = jnp.stack(
        [lax.slice_in_dim(xpad, i * tile_h, i * tile_h + Th, axis=1)
         for i in range(n_t)],
        axis=1)                                        # (B, n_t, Th, Wp, Cin)

    # im2col weight layout: (K,K,Cin,4*Hd) -> (K*K*Cin, 4*Hd), cast bf16 once.
    w2d = w_hwio.reshape(K * K * Cin, 4 * Hd).astype(jnp.bfloat16)
    b2d = bias.reshape(1, 4 * Hd).astype(jnp.float32)
    c_cur = c_cur.astype(jnp.float32)

    kernel = functools.partial(_convlstm_kernel, K=K, tile_h=tile_h, W=W,
                               Hd=Hd, Cin=Cin)
    grid = (B, n_t)

    h_next, c_next = pl.pallas_call(
        kernel,
        out_shape=(jax.ShapeDtypeStruct((B, H, W, Hd), jnp.float32),
                   jax.ShapeDtypeStruct((B, H, W, Hd), jnp.float32)),
        grid_spec=pltpu.PrefetchScalarGridSpec(
            num_scalar_prefetch=0,
            grid=grid,
            in_specs=[
                # Per-step halo slab (leading batch/tile dims squeezed).
                pl.BlockSpec((None, None, Th, Wp, Cin),
                             lambda b, i: (b, i, 0, 0, 0)),
                # Constant weight / bias blocks (kept resident across steps).
                pl.BlockSpec((K * K * Cin, 4 * Hd), lambda b, i: (0, 0)),
                pl.BlockSpec((1, 4 * Hd), lambda b, i: (0, 0)),
                # Current cell-state tile.
                pl.BlockSpec((None, tile_h, W, Hd), lambda b, i: (b, i, 0, 0)),
            ],
            out_specs=(
                pl.BlockSpec((None, tile_h, W, Hd), lambda b, i: (b, i, 0, 0)),
                pl.BlockSpec((None, tile_h, W, Hd), lambda b, i: (b, i, 0, 0)),
            ),
            scratch_shapes=[pltpu.VMEM((M, K * K * Cin), jnp.bfloat16)],
        ),
        compiler_params=pltpu.CompilerParams(
            dimension_semantics=("parallel", "parallel"),
        ),
    )(slabs, w2d, b2d, c_cur)
    return h_next, c_next


def conv_lstm_cell(x_nchw, h_nchw, c_nchw, w_oihw, bias, kernel_size):
    """PyTorch-convention wrapper: NCHW tensors, OIHW conv weight (boundary
    glue only; a recurrent loop should call conv_lstm_cell_nhwc directly)."""
    x = jnp.transpose(x_nchw, (0, 2, 3, 1)).astype(jnp.float32)
    h = jnp.transpose(h_nchw, (0, 2, 3, 1)).astype(jnp.float32)
    c = jnp.transpose(c_nchw, (0, 2, 3, 1)).astype(jnp.float32)
    w_hwio = jnp.transpose(w_oihw, (2, 3, 1, 0)).astype(jnp.float32)
    h_next, c_next = conv_lstm_cell_nhwc(x, h, c, w_hwio, bias, kernel_size)
    return (jnp.transpose(h_next, (0, 3, 1, 2)),
            jnp.transpose(c_next, (0, 3, 1, 2)))


def conv_lstm_cell_reference(x_nchw, h_nchw, c_nchw, w_oihw, bias, kernel_size):
    """Pure-JAX f32 reference matching the PyTorch forward semantics."""
    x = jnp.transpose(x_nchw, (0, 2, 3, 1)).astype(jnp.float32)
    h = jnp.transpose(h_nchw, (0, 2, 3, 1)).astype(jnp.float32)
    c = jnp.transpose(c_nchw, (0, 2, 3, 1)).astype(jnp.float32)
    w_hwio = jnp.transpose(w_oihw, (2, 3, 1, 0)).astype(jnp.float32)
    combined = jnp.concatenate([x, h], axis=-1)
    conv = lax.conv_general_dilated(
        combined, w_hwio, window_strides=(1, 1), padding="SAME",
        dimension_numbers=("NHWC", "HWIO", "NHWC")) + bias.reshape(1, 1, 1, -1)
    cc_i, cc_f, cc_o, cc_g = jnp.split(conv, 4, axis=-1)
    i = jax.nn.sigmoid(cc_i)
    f = jax.nn.sigmoid(cc_f)
    o = jax.nn.sigmoid(cc_o)
    g = jnp.tanh(cc_g)
    c_next = f * c + i * g
    h_next = o * jnp.tanh(c_next)
    return (jnp.transpose(h_next, (0, 3, 1, 2)),
            jnp.transpose(c_next, (0, 3, 1, 2)))


if __name__ == "__main__":
    # Module config: input_dim=4, hidden_dim=32, kernel_size=3, bias=True
    B, C_in, Hd, K = 2, 4, 32, 3
    H = W = 16
    Cin_total = C_in + Hd          # concat([x, h_cur]) channels = 36
    Cout = 4 * Hd                  # i, f, o, g gates = 128

    key = jax.random.PRNGKey(0)
    kx_, kh_, kc_, kw_, kb_ = jax.random.split(key, 5)

    # Conv2d parameters in PyTorch OIHW layout (as in nn.Conv2d.weight).
    w_oihw = 0.05 * jax.random.normal(kw_, (Cout, Cin_total, K, K), jnp.float32)
    bias = 0.05 * jax.random.normal(kb_, (Cout,), jnp.float32)

    # Inputs in PyTorch NCHW convention.
    x = jax.random.normal(kx_, (B, C_in, H, W), jnp.float32)
    h_cur = jax.random.normal(kh_, (B, Hd, H, W), jnp.float32)
    c_cur = jax.random.normal(kc_, (B, Hd, H, W), jnp.float32)

    h_next, c_next = conv_lstm_cell(x, h_cur, c_cur, w_oihw, bias, K)
    jax.block_until_ready((h_next, c_next))

    h_ref, c_ref = conv_lstm_cell_reference(x, h_cur, c_cur, w_oihw, bias, K)
    assert h_next.shape == (B, Hd, H, W) and c_next.shape == (B, Hd, H, W)
    # bf16 MXU operands (f32 accumulation) -> relaxed tolerance vs. f32 ref.
    assert jnp.allclose(h_next, h_ref, atol=3e-2, rtol=3e-2)
    assert jnp.allclose(c_next, c_ref, atol=3e-2, rtol=3e-2)

    print("KERNEL_OK")
</pallas_src>

<mosaic_0001>
module attributes {stable_mosaic.version = 11 : i64} {
  func.func @_convlstm_kernel(%arg0: i32, %arg1: i32, %arg2: memref<1x1x18x18x36xbf16, #tpu.memory_space<vmem>>, %arg3: memref<324x128xbf16, #tpu.memory_space<vmem>>, %arg4: memref<1x128xf32, #tpu.memory_space<vmem>>, %arg5: memref<1x16x16x32xf32, #tpu.memory_space<vmem>>, %arg6: memref<1x16x16x32xf32, #tpu.memory_space<vmem>>, %arg7: memref<1x16x16x32xf32, #tpu.memory_space<vmem>>, %arg8: memref<256x324xbf16, #tpu.memory_space<vmem>>) attributes {dimension_semantics = [#tpu.dimension_semantics<parallel>, #tpu.dimension_semantics<parallel>], iteration_bounds = array<i64: 2, 1>, scalar_prefetch = 0 : i64, scratch_operands = 1 : i64, tpu.core_type = #tpu.core_type<tc>, window_params = [{transform_indices = @transform_0, window_bounds = array<i64: 1, 1, 18, 18, 36>}, {pipeline_mode = #tpu.pipeline_mode<synchronous>, transform_indices = @transform_1, window_bounds = array<i64: 324, 128>}, {pipeline_mode = #tpu.pipeline_mode<synchronous>, transform_indices = @transform_2, window_bounds = array<i64: 1, 128>}, {transform_indices = @transform_3, window_bounds = array<i64: 1, 16, 16, 32>}, {transform_indices = @transform_4, window_bounds = array<i64: 1, 16, 16, 32>}, {transform_indices = @transform_5, window_bounds = array<i64: 1, 16, 16, 32>}]} {
    %c0 = arith.constant 0 : index
    %c0_0 = arith.constant 0 : index
    %c0_1 = arith.constant 0 : index
    %c0_2 = arith.constant 0 : index
    %c0_3 = arith.constant 0 : index
    %0 = vector.load %arg2[%c0, %c0_0, %c0_1, %c0_2, %c0_3] : memref<1x1x18x18x36xbf16, #tpu.memory_space<vmem>>, vector<1x1x16x16x36xbf16>
    %1 = vector.shape_cast %0 : vector<1x1x16x16x36xbf16> to vector<16x16x36xbf16>
    %2 = vector.shape_cast %1 : vector<16x16x36xbf16> to vector<256x36xbf16>
    %c0_4 = arith.constant 0 : index
    %c0_5 = arith.constant 0 : index
    %3 = vector.load %arg8[%c0_4, %c0_5] : memref<256x324xbf16, #tpu.memory_space<vmem>>, vector<256x36xbf16>
    tpu.vector_store %arg8[%c0_4, %c0_5], %2 {strides = array<i32>} : memref<256x324xbf16, #tpu.memory_space<vmem>>, vector<256x36xbf16>,
    %c0_6 = arith.constant 0 : index
    %c0_7 = arith.constant 0 : index
    %c0_8 = arith.constant 0 : index
    %c1 = arith.constant 1 : index
    %c0_9 = arith.constant 0 : index
    %4 = vector.load %arg2[%c0_6, %c0_7, %c0_8, %c1, %c0_9] : memref<1x1x18x18x36xbf16, #tpu.memory_space<vmem>>, vector<1x1x16x16x36xbf16>
    %5 = vector.shape_cast %4 : vector<1x1x16x16x36xbf16> to vector<16x16x36xbf16>
    %6 = vector.shape_cast %5 : vector<16x16x36xbf16> to vector<256x36xbf16>
    %c0_10 = arith.constant 0 : index
    %c36 = arith.constant 36 : index
    %7 = vector.load %arg8[%c0_10, %c36] : memref<256x324xbf16, #tpu.memory_space<vmem>>, vector<256x36xbf16>
    tpu.vector_store %arg8[%c0_10, %c36], %6 {strides = array<i32>} : memref<256x324xbf16, #tpu.memory_space<vmem>>, vector<256x36xbf16>,
    %c0_11 = arith.constant 0 : index
    %c0_12 = arith.constant 0 : index
    %c0_13 = arith.constant 0 : index
    %c2 = arith.constant 2 : index
    %c0_14 = arith.constant 0 : index
    %8 = vector.load %arg2[%c0_11, %c0_12, %c0_13, %c2, %c0_14] : memref<1x1x18x18x36xbf16, #tpu.memory_space<vmem>>, vector<1x1x16x16x36xbf16>
    %9 = vector.shape_cast %8 : vector<1x1x16x16x36xbf16> to vector<16x16x36xbf16>
    %10 = vector.shape_cast %9 : vector<16x16x36xbf16> to vector<256x36xbf16>
    %c0_15 = arith.constant 0 : index
    %c72 = arith.constant 72 : index
    %11 = vector.load %arg8[%c0_15, %c72] : memref<256x324xbf16, #tpu.memory_space<vmem>>, vector<256x36xbf16>
    tpu.vector_store %arg8[%c0_15, %c72], %10 {strides = array<i32>} : memref<256x324xbf16, #tpu.memory_space<vmem>>, vector<256x36xbf16>,
    %c0_16 = arith.constant 0 : index
    %c0_17 = arith.constant 0 : index
    %c1_18 = arith.constant 1 : index
    %c0_19 = arith.constant 0 : index
    %c0_20 = arith.constant 0 : index
    %12 = vector.load %arg2[%c0_16, %c0_17, %c1_18, %c0_19, %c0_20] : memref<1x1x18x18x36xbf16, #tpu.memory_space<vmem>>, vector<1x1x16x16x36xbf16>
    %13 = vector.shape_cast %12 : vector<1x1x16x16x36xbf16> to vector<16x16x36xbf16>
    %14 = vector.shape_cast %13 : vector<16x16x36xbf16> to vector<256x36xbf16>
    %c0_21 = arith.constant 0 : index
    %c108 = arith.constant 108 : index
    %15 = vector.load %arg8[%c0_21, %c108] : memref<256x324xbf16, #tpu.memory_space<vmem>>, vector<256x36xbf16>
    tpu.vector_store %arg8[%c0_21, %c108], %14 {strides = array<i32>} : memref<256x324xbf16, #tpu.memory_space<vmem>>, vector<256x36xbf16>,
    %c0_22 = arith.constant 0 : index
    %c0_23 = arith.constant 0 : index
    %c1_24 = arith.constant 1 : index
    %c1_25 = arith.constant 1 : index
    %c0_26 = arith.constant 0 : index
    %16 = vector.load %arg2[%c0_22, %c0_23, %c1_24, %c1_25, %c0_26] : memref<1x1x18x18x36xbf16, #tpu.memory_space<vmem>>, vector<1x1x16x16x36xbf16>
    %17 = vector.shape_cast %16 : vector<1x1x16x16x36xbf16> to vector<16x16x36xbf16>
    %18 = vector.shape_cast %17 : vector<16x16x36xbf16> to vector<256x36xbf16>
    %c0_27 = arith.constant 0 : index
    %c144 = arith.constant 144 : index
    %19 = vector.load %arg8[%c0_27, %c144] : memref<256x324xbf16, #tpu.memory_space<vmem>>, vector<256x36xbf16>
    tpu.vector_store %arg8[%c0_27, %c144], %18 {strides = array<i32>} : memref<256x324xbf16, #tpu.memory_space<vmem>>, vector<256x36xbf16>,
    %c0_28 = arith.constant 0 : index
    %c0_29 = arith.constant 0 : index
    %c1_30 = arith.constant 1 : index
    %c2_31 = arith.constant 2 : index
    %c0_32 = arith.constant 0 : index
    %20 = vector.load %arg2[%c0_28, %c0_29, %c1_30, %c2_31, %c0_32] : memref<1x1x18x18x36xbf16, #tpu.memory_space<vmem>>, vector<1x1x16x16x36xbf16>
    %21 = vector.shape_cast %20 : vector<1x1x16x16x36xbf16> to vector<16x16x36xbf16>
    %22 = vector.shape_cast %21 : vector<16x16x36xbf16> to vector<256x36xbf16>
    %c0_33 = arith.constant 0 : index
    %c180 = arith.constant 180 : index
    %23 = vector.load %arg8[%c0_33, %c180] : memref<256x324xbf16, #tpu.memory_space<vmem>>, vector<256x36xbf16>
    tpu.vector_store %arg8[%c0_33, %c180], %22 {strides = array<i32>} : memref<256x324xbf16, #tpu.memory_space<vmem>>, vector<256x36xbf16>,
    %c0_34 = arith.constant 0 : index
    %c0_35 = arith.constant 0 : index
    %c2_36 = arith.constant 2 : index
    %c0_37 = arith.constant 0 : index
    %c0_38 = arith.constant 0 : index
    %24 = vector.load %arg2[%c0_34, %c0_35, %c2_36, %c0_37, %c0_38] : memref<1x1x18x18x36xbf16, #tpu.memory_space<vmem>>, vector<1x1x16x16x36xbf16>
    %25 = vector.shape_cast %24 : vector<1x1x16x16x36xbf16> to vector<16x16x36xbf16>
    %26 = vector.shape_cast %25 : vector<16x16x36xbf16> to vector<256x36xbf16>
    %c0_39 = arith.constant 0 : index
    %c216 = arith.constant 216 : index
    %27 = vector.load %arg8[%c0_39, %c216] : memref<256x324xbf16, #tpu.memory_space<vmem>>, vector<256x36xbf16>
    tpu.vector_store %arg8[%c0_39, %c216], %26 {strides = array<i32>} : memref<256x324xbf16, #tpu.memory_space<vmem>>, vector<256x36xbf16>,
    %c0_40 = arith.constant 0 : index
    %c0_41 = arith.constant 0 : index
    %c2_42 = arith.constant 2 : index
    %c1_43 = arith.constant 1 : index
    %c0_44 = arith.constant 0 : index
    %28 = vector.load %arg2[%c0_40, %c0_41, %c2_42, %c1_43, %c0_44] : memref<1x1x18x18x36xbf16, #tpu.memory_space<vmem>>, vector<1x1x16x16x36xbf16>
    %29 = vector.shape_cast %28 : vector<1x1x16x16x36xbf16> to vector<16x16x36xbf16>
    %30 = vector.shape_cast %29 : vector<16x16x36xbf16> to vector<256x36xbf16>
    %c0_45 = arith.constant 0 : index
    %c252 = arith.constant 252 : index
    %31 = vector.load %arg8[%c0_45, %c252] : memref<256x324xbf16, #tpu.memory_space<vmem>>, vector<256x36xbf16>
    tpu.vector_store %arg8[%c0_45, %c252], %30 {strides = array<i32>} : memref<256x324xbf16, #tpu.memory_space<vmem>>, vector<256x36xbf16>,
    %c0_46 = arith.constant 0 : index
    %c0_47 = arith.constant 0 : index
    %c2_48 = arith.constant 2 : index
    %c2_49 = arith.constant 2 : index
    %c0_50 = arith.constant 0 : index
    %32 = vector.load %arg2[%c0_46, %c0_47, %c2_48, %c2_49, %c0_50] : memref<1x1x18x18x36xbf16, #tpu.memory_space<vmem>>, vector<1x1x16x16x36xbf16>
    %33 = vector.shape_cast %32 : vector<1x1x16x16x36xbf16> to vector<16x16x36xbf16>
    %34 = vector.shape_cast %33 : vector<16x16x36xbf16> to vector<256x36xbf16>
    %c0_51 = arith.constant 0 : index
    %c288 = arith.constant 288 : index
    %35 = vector.load %arg8[%c0_51, %c288] : memref<256x324xbf16, #tpu.memory_space<vmem>>, vector<256x36xbf16>
    tpu.vector_store %arg8[%c0_51, %c288], %34 {strides = array<i32>} : memref<256x324xbf16, #tpu.memory_space<vmem>>, vector<256x36xbf16>,
    %c0_52 = arith.constant 0 : index
    %c0_53 = arith.constant 0 : index
    %36 = vector.load %arg8[%c0_52, %c0_53] : memref<256x324xbf16, #tpu.memory_space<vmem>>, vector<256x324xbf16>
    %c0_54 = arith.constant 0 : index
    %c0_55 = arith.constant 0 : index
    %37 = vector.load %arg3[%c0_54, %c0_55] : memref<324x128xbf16, #tpu.memory_space<vmem>>, vector<324x128xbf16>
    %cst = arith.constant dense<0.000000e+00> : vector<256x128xf32>
    %38 = tpu.matmul %36, %37, %cst {dimension_numbers = #tpu.dot_dimension_numbers<[1], [0], [0], [1], [0, 0, 1, 1], [], []>} : vector<256x324xbf16>, vector<324x128xbf16>, vector<256x128xf32> -> vector<256x128xf32>
    %c0_56 = arith.constant 0 : index
    %c0_57 = arith.constant 0 : index
    %39 = vector.load %arg4[%c0_56, %c0_57] : memref<1x128xf32, #tpu.memory_space<vmem>>, vector<1x128xf32>
    %40 = vector.broadcast %39 : vector<1x128xf32> to vector<256x128xf32>
    %41 = arith.addf %38, %40 : vector<256x128xf32>
    %42 = arith.negf %41 : vector<256x128xf32>
    %43 = math.exp %42 : vector<256x128xf32>
    %cst_58 = arith.constant 1.000000e+00 : f32
    %44 = vector.broadcast %cst_58 : f32 to vector<256x128xf32>
    %45 = arith.addf %44, %43 : vector<256x128xf32>
    %46 = arith.divf %44, %45 : vector<256x128xf32>
    %47 = vector.extract_strided_slice %46 {offsets = [0, 0], sizes = [256, 32], strides = [1, 1]} : vector<256x128xf32> to vector<256x32xf32>
    %48 = vector.extract_strided_slice %46 {offsets = [0, 32], sizes = [256, 32], strides = [1, 1]} : vector<256x128xf32> to vector<256x32xf32>
    %49 = vector.extract_strided_slice %46 {offsets = [0, 64], sizes = [256, 32], strides = [1, 1]} : vector<256x128xf32> to vector<256x32xf32>
    %50 = vector.extract_strided_slice %41 {offsets = [0, 96], sizes = [256, 32], strides = [1, 1]} : vector<256x128xf32> to vector<256x32xf32>
    %51 = math.tanh %50 : vector<256x32xf32>
    %c0_59 = arith.constant 0 : index
    %c0_60 = arith.constant 0 : index
    %c0_61 = arith.constant 0 : index
    %c0_62 = arith.constant 0 : index
    %52 = vector.load %arg5[%c0_59, %c0_60, %c0_61, %c0_62] : memref<1x16x16x32xf32, #tpu.memory_space<vmem>>, vector<1x16x16x32xf32>
    %53 = vector.shape_cast %52 : vector<1x16x16x32xf32> to vector<16x16x32xf32>
    %54 = vector.shape_cast %53 : vector<16x16x32xf32> to vector<256x32xf32>
    %55 = arith.mulf %48, %54 : vector<256x32xf32>
    %56 = arith.mulf %47, %51 : vector<256x32xf32>
    %57 = arith.addf %55, %56 : vector<256x32xf32>
    %58 = math.tanh %57 : vector<256x32xf32>
    %59 = arith.mulf %49, %58 : vector<256x32xf32>
    %60 = vector.shape_cast %59 : vector<256x32xf32> to vector<16x16x32xf32>
    %c0_63 = arith.constant 0 : index
    %c0_64 = arith.constant 0 : index
    %c0_65 = arith.constant 0 : index
    %c0_66 = arith.constant 0 : index
    %61 = vector.load %arg6[%c0_63, %c0_64, %c0_65, %c0_66] : memref<1x16x16x32xf32, #tpu.memory_space<vmem>>, vector<1x16x16x32xf32>
    %62 = vector.shape_cast %61 : vector<1x16x16x32xf32> to vector<16x16x32xf32>
    %63 = vector.shape_cast %60 : vector<16x16x32xf32> to vector<1x16x16x32xf32>
    tpu.vector_store %arg6[%c0_63, %c0_64, %c0_65, %c0_66], %63 {strides = array<i32>} : memref<1x16x16x32xf32, #tpu.memory_space<vmem>>, vector<1x16x16x32xf32>,
    %64 = vector.shape_cast %57 : vector<256x32xf32> to vector<16x16x32xf32>
    %c0_67 = arith.constant 0 : index
    %c0_68 = arith.constant 0 : index
    %c0_69 = arith.constant 0 : index
    %c0_70 = arith.constant 0 : index
    %65 = vector.load %arg7[%c0_67, %c0_68, %c0_69, %c0_70] : memref<1x16x16x32xf32, #tpu.memory_space<vmem>>, vector<1x16x16x32xf32>
    %66 = vector.shape_cast %65 : vector<1x16x16x32xf32> to vector<16x16x32xf32>
    %67 = vector.shape_cast %64 : vector<16x16x32xf32> to vector<1x16x16x32xf32>
    tpu.vector_store %arg7[%c0_67, %c0_68, %c0_69, %c0_70], %67 {strides = array<i32>} : memref<1x16x16x32xf32, #tpu.memory_space<vmem>>, vector<1x16x16x32xf32>,
    return
  }
  func.func @transform_0(%arg0: i32, %arg1: i32) -> (i32, i32, i32, i32, i32) {
    %c0_i32 = arith.constant 0 : i32
    %c0_i32_0 = arith.constant 0 : i32
    %c0_i32_1 = arith.constant 0 : i32
    %c0_i32_2 = arith.constant 0 : i32
    return %arg0, %arg1, %c0_i32, %c0_i32_0, %c0_i32_1 : i32, i32, i32, i32, i32
  }
  func.func @transform_1(%arg0: i32, %arg1: i32) -> (i32, i32) {
    %c0_i32 = arith.constant 0 : i32
    %c0_i32_0 = arith.constant 0 : i32
    %c0_i32_1 = arith.constant 0 : i32
    return %c0_i32, %c0_i32_0 : i32, i32
  }
  func.func @transform_2(%arg0: i32, %arg1: i32) -> (i32, i32) {
    %c0_i32 = arith.constant 0 : i32
    %c0_i32_0 = arith.constant 0 : i32
    %c0_i32_1 = arith.constant 0 : i32
    return %c0_i32, %c0_i32_0 : i32, i32
  }
  func.func @transform_3(%arg0: i32, %arg1: i32) -> (i32, i32, i32, i32) {
    %c0_i32 = arith.constant 0 : i32
    %c0_i32_0 = arith.constant 0 : i32
    %c0_i32_1 = arith.constant 0 : i32
    return %arg0, %arg1, %c0_i32, %c0_i32_0 : i32, i32, i32, i32
  }
  func.func @transform_4(%arg0: i32, %arg1: i32) -> (i32, i32, i32, i32) {
    %c0_i32 = arith.constant 0 : i32
    %c0_i32_0 = arith.constant 0 : i32
    %c0_i32_1 = arith.constant 0 : i32
    return %arg0, %arg1, %c0_i32, %c0_i32_0 : i32, i32, i32, i32
  }
  func.func @transform_5(%arg0: i32, %arg1: i32) -> (i32, i32, i32, i32) {
    %c0_i32 = arith.constant 0 : i32
    %c0_i32_0 = arith.constant 0 : i32
    %c0_i32_1 = arith.constant 0 : i32
    return %arg0, %arg1, %c0_i32, %c0_i32_0 : i32, i32, i32, i32
  }
}

</mosaic_0001>

<llo_original>
// kernel: tpu_custom_call.1
$region0: #{tpu_custom_call.1}
  #allocation0 [shape = 'u32[]', space=smem, size = 0x4, offset = 0x4, fixed_abs, tag = 'smem constant byte address 0x4 - core index']
  #allocation1 [shape = 'u32[144,128]{1,0:T(1,128)}', space=vmem, size = 0x12000, scoped, tag = 'internal scratch']
  #allocation2 [shape = 'bf16[256,324]{1,0:T(16,128)(2,1)}', space=vmem, size = 0x30000, scoped, tag = 'scratch operand']
  %s0 = inlined_call_operand.vmem [shape: bf16[2,1,18,18,36], index: 0, kind: input, shape index: {}]
  %s1 = inlined_call_operand.vmem [shape: bf16[324,128], index: 1, kind: input, shape index: {}]
  %s2 = inlined_call_operand.vmem [shape: f32[1,128], index: 2, kind: input, shape index: {}]
  %s3 = inlined_call_operand.vmem [shape: f32[2,16,16,32], index: 3, kind: input, shape index: {}]
  %s4 = inlined_call_operand.hbm [shape: f32[2,16,16,32], index: 4, kind: output, shape index: {0}]
  %s5 = inlined_call_operand.hbm [shape: f32[2,16,16,32], index: 5, kind: output, shape index: {1}]
  %6 = xla_tuple %s4, %s5
  %s7 = sld [smem:[#allocation0]]
  $region57: #{tpu_custom_call.1} parent=0
    _
  %s9 = ssub.s32 1, %s7
  %s10 = scalar_select 0, %s9, %s7
  $region1: #{tpu_custom_call.1} parent=0
    #allocation3 [shape = 'u8[262144]{0}', space=vmem, size = 0x40000, scoped, tag = 'output window, operand 0']
    #allocation4 [shape = 's32[2]{0}', space=sflag, size = 0x8, scoped, tag = 'scoped memory for tpu_custom_call.1']
    #allocation5 [shape = 'u8[262144]{0}', space=vmem, size = 0x40000, scoped, tag = 'output window, operand 1']
    #allocation6 [shape = 's32[2]{0}', space=sflag, size = 0x8, scoped, tag = 'scoped memory for tpu_custom_call.1']
    %11 = vsyncpa [#allocation4], 0
    %s12 = scalar_lea.sflag [#allocation4], 1
    %13 = vsyncpa %s12, 0
    %14 = vsyncpa [#allocation6], 0
    %s15 = scalar_lea.sflag [#allocation6], 1
    %16 = vsyncpa %s15, 0
    loop: start=0, step=1, limit=4
    $region2: #{tpu_custom_call.1} parent=1 // loop_pre_header
      _
    $region3: #{tpu_custom_call.1} parent=1 // loop_header
      %s18 = sphi 0, %s22
      %p19 = scmp.ge.s32.totalorder %s18, 4
      %s25 = sphi 0, %s37
      %s26 = sphi 0, %s33
      %s27 = sphi 0, %s25
      %s28 = sphi 0, %s26
      %s29 = sphi 0, %s27
      %s30 = sphi 0, %s28
      %s42 = sphi 0, %s44
      %s45 = sphi 0, %s42
      %s46 = sphi 0, %s45
      %s62 = sphi 0, %s46
      %s66 = sphi 0, %s66
      %s68 = sphi 0, %s66
      %s69 = sphi 0, %s68
      %s83 = sphi 0, %s69
      %s87 = sphi 0, %s87
      %s89 = sphi 0, %s87
      %s90 = sphi 0, %s89
      %s104 = sphi 0, %s90
      %s112 = sphi 0, %s114
      %s115 = sphi 0, %s112
      %s116 = sphi 0, %s115
      %s132 = sphi 0, %s116
      %s140 = sphi 0, %s142
      %s143 = sphi 0, %s140
      %s144 = sphi 0, %s143
      %s160 = sphi 0, %s144
      %s168 = sphi 0, %s170
      %s171 = sphi 0, %s168
      %s172 = sphi 0, %s171
      %s188 = sphi 0, %s172
    $region4: #{tpu_custom_call.1} parent=1 // loop_header_branch
      %21 = sbr.rel (%p19) target = $region8
    $region5: #{tpu_custom_call.1} parent=1 // loop_body
      %s23 = ssub.s32 %s18, 1
      %s24 = ssub.s32 %s18, 2
      %s31 = sadd.s32 1, %s26
      %p32 = scmp.ge.s32.totalorder %s31, 1
      %s33 = scalar_select %p32, 0, %s31
      %s34 = sadd.s32 1, %s25
      %s35 = scalar_select %p32, %s34, %s25
      %p36 = scmp.ge.s32.totalorder %s35, 2
      %s37 = scalar_select %p36, 0, %s35
      %s38 = ssub.s32 %s25, %s37
      %s39 = ssub.s32 %s26, %s33
      %s40 = sor.u32 %s38, %s39
      %p41 = scmp.eq.s32.totalorder %s40, 0
      %s43 = sadd.s32 %s42, 1
      %s44 = scalar_select %p41, %s42, %s43
      %p47 = pneg %p41
      %p48 = scmp.eq.s32.totalorder %s18, 1
      %p49 = por %p47, %p48
      %p50 = scmp.ne.s32.totalorder %s42, %s45
      %p51 = scmp.eq.s32.totalorder %s18, 0
      %p52 = por %p50, %p51
      %p53 = scmp.ne.s32.totalorder %s42, %s45
      %p54 = scmp.eq.s32.totalorder %s23, 1
      %p55 = por %p53, %p54
      %p56 = scmp.ne.s32.totalorder %s45, %s46
      %p57 = scmp.eq.s32.totalorder %s23, 0
      %p58 = por %p56, %p57
      %p59 = scmp.ne.s32.totalorder %s45, %s46
      %p60 = scmp.eq.s32.totalorder %s24, 1
      %p61 = por %p59, %p60
      %p63 = scmp.ne.s32.totalorder %s46, %s62
      %p64 = scmp.eq.s32.totalorder %s24, 0
      %p65 = por %p63, %p64
      %s67 = sadd.s32 %s66, 1
      %p70 = scmp.eq.s32.totalorder %s18, 1
      %p71 = scmp.ne.s32.totalorder %s66, %s68
      %p72 = scmp.eq.s32.totalorder %s18, 0
      %p73 = por %p71, %p72
      %p74 = scmp.ne.s32.totalorder %s66, %s68
      %p75 = scmp.eq.s32.totalorder %s23, 1
      %p76 = por %p74, %p75
      %p77 = scmp.ne.s32.totalorder %s68, %s69
      %p78 = scmp.eq.s32.totalorder %s23, 0
      %p79 = por %p77, %p78
      %p80 = scmp.ne.s32.totalorder %s68, %s69
      %p81 = scmp.eq.s32.totalorder %s24, 1
      %p82 = por %p80, %p81
      %p84 = scmp.ne.s32.totalorder %s69, %s83
      %p85 = scmp.eq.s32.totalorder %s24, 0
      %p86 = por %p84, %p85
      %s88 = sadd.s32 %s87, 1
      %p91 = scmp.eq.s32.totalorder %s18, 1
      %p92 = scmp.ne.s32.totalorder %s87, %s89
      %p93 = scmp.eq.s32.totalorder %s18, 0
      %p94 = por %p92, %p93
      %p95 = scmp.ne.s32.totalorder %s87, %s89
      %p96 = scmp.eq.s32.totalorder %s23, 1
      %p97 = por %p95, %p96
      %p98 = scmp.ne.s32.totalorder %s89, %s90
      %p99 = scmp.eq.s32.totalorder %s23, 0
      %p100 = por %p98, %p99
      %p101 = scmp.ne.s32.totalorder %s89, %s90
      %p102 = scmp.eq.s32.totalorder %s24, 1
      %p103 = por %p101, %p102
      %p105 = scmp.ne.s32.totalorder %s90, %s104
      %p106 = scmp.eq.s32.totalorder %s24, 0
      %p107 = por %p105, %p106
      %s108 = ssub.s32 %s25, %s37
      %s109 = ssub.s32 %s26, %s33
      %s110 = sor.u32 %s108, %s109
      %p111 = scmp.eq.s32.totalorder %s110, 0
      %s113 = sadd.s32 %s112, 1
      %s114 = scalar_select %p111, %s112, %s113
      %p117 = pneg %p111
      %p118 = scmp.eq.s32.totalorder %s18, 1
      %p119 = por %p117, %p118
      %p120 = scmp.ne.s32.totalorder %s112, %s115
      %p121 = scmp.eq.s32.totalorder %s18, 0
      %p122 = por %p120, %p121
      %p123 = scmp.ne.s32.totalorder %s112, %s115
      %p124 = scmp.eq.s32.totalorder %s23, 1
      %p125 = por %p123, %p124
      %p126 = scmp.ne.s32.totalorder %s115, %s116
      %p127 = scmp.eq.s32.totalorder %s23, 0
      %p128 = por %p126, %p127
      %p129 = scmp.ne.s32.totalorder %s115, %s116
      %p130 = scmp.eq.s32.totalorder %s24, 1
      %p131 = por %p129, %p130
      %p133 = scmp.ne.s32.totalorder %s116, %s132
      %p134 = scmp.eq.s32.totalorder %s24, 0
      %p135 = por %p133, %p134
      %s136 = ssub.s32 %s25, %s37
      %s137 = ssub.s32 %s26, %s33
      %s138 = sor.u32 %s136, %s137
      %p139 = scmp.eq.s32.totalorder %s138, 0
      %s141 = sadd.s32 %s140, 1
      %s142 = scalar_select %p139, %s140, %s141
      %p145 = pneg %p139
      %p146 = scmp.eq.s32.totalorder %s18, 1
      %p147 = por %p145, %p146
      %p148 = scmp.ne.s32.totalorder %s140, %s143
      %p149 = scmp.eq.s32.totalorder %s18, 0
      %p150 = por %p148, %p149
      %p151 = scmp.ne.s32.totalorder %s140, %s143
      %p152 = scmp.eq.s32.totalorder %s23, 1
      %p153 = por %p151, %p152
      %p154 = scmp.ne.s32.totalorder %s143, %s144
      %p155 = scmp.eq.s32.totalorder %s23, 0
      %p156 = por %p154, %p155
      %p157 = scmp.ne.s32.totalorder %s143, %s144
      %p158 = scmp.eq.s32.totalorder %s24, 1
      %p159 = por %p157, %p158
      %p161 = scmp.ne.s32.totalorder %s144, %s160
      %p162 = scmp.eq.s32.totalorder %s24, 0
      %p163 = por %p161, %p162
      %s164 = ssub.s32 %s25, %s37
      %s165 = ssub.s32 %s26, %s33
      %s166 = sor.u32 %s164, %s165
      %p167 = scmp.eq.s32.totalorder %s166, 0
      %s169 = sadd.s32 %s168, 1
      %s170 = scalar_select %p167, %s168, %s169
      %p173 = pneg %p167
      %p174 = scmp.eq.s32.totalorder %s18, 1
      %p175 = por %p173, %p174
      %p176 = scmp.ne.s32.totalorder %s168, %s171
      %p177 = scmp.eq.s32.totalorder %s18, 0
      %p178 = por %p176, %p177
      %p179 = scmp.ne.s32.totalorder %s168, %s171
      %p180 = scmp.eq.s32.totalorder %s23, 1
      %p181 = por %p179, %p180
      %p182 = scmp.ne.s32.totalorder %s171, %s172
      %p183 = scmp.eq.s32.totalorder %s23, 0
      %p184 = por %p182, %p183
      %p185 = scmp.ne.s32.totalorder %s171, %s172
      %p186 = scmp.eq.s32.totalorder %s24, 1
      %p187 = por %p185, %p186
      %p189 = scmp.ne.s32.totalorder %s172, %s188
      %p190 = scmp.eq.s32.totalorder %s24, 0
      %p191 = por %p189, %p190
      %p192 = scmp.le.s32.totalorder 1, %s18
      %p193 = scmp.lt.s32.totalorder %s18, 3
      %p194 = pnand %p192, %p193
      %p195 = pneg %p194
      // Predicated region
      $region9: #{tpu_custom_call.1} parent=5 // pred_check
        _
      $region10: #{tpu_custom_call.1} parent=5 // pred_check_branch
        %197 = sbr.rel (%p194) target = $region12
      $region11: #{tpu_custom_call.1} parent=5 // pred_region
        %s198 = ssub.s32 %s18, 1
        // Predicated region
        $region13: #{tpu_custom_call.1} parent=11 // pred_check
          %p199 = pneg %p79
        $region14: #{tpu_custom_call.1} parent=11 // pred_check_branch
          %201 = sbr.rel (%p199) target = $region16
        $region15: #{tpu_custom_call.1} parent=11 // pred_region
          _
        $region16: #{tpu_custom_call.1} parent=11 // pred_fallthru
          _
        // Predicated region
        $region17: #{tpu_custom_call.1} parent=11 // pred_check
          %p202 = pneg %p100
        $region18: #{tpu_custom_call.1} parent=11 // pred_check_branch
          %204 = sbr.rel (%p202) target = $region20
        $region19: #{tpu_custom_call.1} parent=11 // pred_region
          _
        $region20: #{tpu_custom_call.1} parent=11 // pred_fallthru
          _
      $region12: #{tpu_custom_call.1} parent=5 // pred_fallthru
        _
      %p205 = scmp.lt.s32.totalorder %s18, 2
      // Predicated region
      $region21: #{tpu_custom_call.1} parent=5 // pred_check
        %p206 = pneg %p205
      $region22: #{tpu_custom_call.1} parent=5 // pred_check_branch
        %208 = sbr.rel (%p206) target = $region24
      $region23: #{tpu_custom_call.1} parent=5 // pred_region
        // Predicated region
        $region25: #{tpu_custom_call.1} parent=23 // pred_check
          %p209 = pneg %p52
        $region26: #{tpu_custom_call.1} parent=23 // pred_check_branch
          %211 = sbr.rel (%p209) target = $region28
        $region27: #{tpu_custom_call.1} parent=23 // pred_region
          %p212 = scmp.lt.s32.totalorder %s25, 1
          %s213 = scalar_select %p212, %s25, 1
          %p214 = scmp.lt.s32.totalorder %s26, 0
          %s215 = scalar_select %p214, %s26, 0
          %s216 = smul.addr %s215, 54
          %s217 = smul.addr %s213, 54
          %s218 = sadd.s32 %s216, %s217
          %s219 = smul.addr %s218, 4
          %s220 = scalar_lea.vmem %s0, %s219
        $region28: #{tpu_custom_call.1} parent=23 // pred_fallthru
          _
        // Predicated region
        $region29: #{tpu_custom_call.1} parent=23 // pred_check
          %p221 = pneg %p122
        $region30: #{tpu_custom_call.1} parent=23 // pred_check_branch
          %223 = sbr.rel (%p221) target = $region32
        $region31: #{tpu_custom_call.1} parent=23 // pred_region
          %s224 = smul.u32 16, %s26
          %p225 = scmp.lt.s32.totalorder %s25, 1
          %s226 = scalar_select %p225, %s25, 1
          %p227 = scmp.lt.s32.totalorder %s224, 15
          %s228 = scalar_select %p227, %s224, 15
          %s229 = smul.addr %s228, 2
          %s230 = smul.addr %s226, 32
          %s231 = sadd.s32 %s229, %s230
          %s232 = smul.addr %s231, 8
          %s233 = scalar_lea.vmem %s3, %s232
          %s234 = smul.u32 16, %s26
        $region32: #{tpu_custom_call.1} parent=23 // pred_fallthru
          _
      $region24: #{tpu_custom_call.1} parent=5 // pred_fallthru
        _
      %p235 = scmp.le.s32.totalorder 1, %s18
      %p236 = scmp.lt.s32.totalorder %s18, 3
      %p237 = pnand %p235, %p236
      %p238 = pneg %p237
      // Predicated region
      $region33: #{tpu_custom_call.1} parent=5 // pred_check
        _
      $region34: #{tpu_custom_call.1} parent=5 // pred_check_branch
        %240 = sbr.rel (%p237) target = $region36
      $region35: #{tpu_custom_call.1} parent=5 // pred_region
        %s241 = ssub.s32 %s18, 1
        %p242 = scmp.lt.s32.totalorder %s27, 1
        %s243 = scalar_select %p242, %s27, 1
        %p244 = scmp.lt.s32.totalorder %s28, 0
        %s245 = scalar_select %p244, %s28, 0
        %s246 = smul.addr %s245, 54
        %s247 = smul.addr %s243, 54
        %s248 = sadd.s32 %s246, %s247
        %s249 = smul.addr %s248, 4
        %s250 = scalar_lea.vmem %s0, %s249
        %p251 = pneg %p58
        %p252 = pneg %p55
        %p253 = pneg %p79
        %p254 = pneg %p76
        %p255 = pneg %p100
        %p256 = pneg %p97
        %s257 = smul.u32 16, %s28
        %p258 = scmp.lt.s32.totalorder %s27, 1
        %s259 = scalar_select %p258, %s27, 1
        %p260 = scmp.lt.s32.totalorder %s257, 15
        %s261 = scalar_select %p260, %s257, 15
        %s262 = smul.addr %s261, 2
        %s263 = smul.addr %s259, 32
        %s264 = sadd.s32 %s262, %s263
        %s265 = smul.addr %s264, 8
        %s266 = scalar_lea.vmem %s3, %s265
        %p267 = pneg %p128
        %p268 = pneg %p125
        %p269 = pneg %p156
        %p270 = pneg %p153
        %s271 = sand.u32 %s143, 1
        %s272 = scalar_lea.sflag [#allocation4], %s271
        %s273 = sand.u32 %s143, 1
        %s274 = smul.addr %s273, 256
        %s275 = scalar_lea.vmem [#allocation3], %s274
        %p276 = pneg %p184
        %p277 = pneg %p181
        %s278 = sand.u32 %s171, 1
        %s279 = scalar_lea.sflag [#allocation6], %s278
        %s280 = sand.u32 %s171, 1
        %s281 = smul.addr %s280, 256
        %s282 = scalar_lea.vmem [#allocation5], %s281
        %p283 = scmp.lt.s32.totalorder %s27, 1
        %s284 = scalar_select %p283, %s27, 1
        %p285 = scmp.lt.s32.totalorder %s28, 0
        %s286 = scalar_select %p285, %s28, 0
        %s287 = smul.addr %s286, 54
        %s288 = smul.addr %s284, 54
        %s289 = sadd.s32 %s287, %s288
        %s290 = smul.addr %s289, 4
        %s291 = scalar_lea.vmem %s0, %s290
        %s292 = smul.u32 16, %s28
        %p293 = scmp.lt.s32.totalorder %s27, 1
        %s294 = scalar_select %p293, %s27, 1
        %p295 = scmp.lt.s32.totalorder %s292, 15
        %s296 = scalar_select %p295, %s292, 15
        %s297 = smul.addr %s296, 2
        %s298 = smul.addr %s294, 32
        %s299 = sadd.s32 %s297, %s298
        %s300 = smul.addr %s299, 8
        %s301 = scalar_lea.vmem %s3, %s300
        %s302 = smul.u32 16, %s28
        %s303 = smul.u32 16, %s28
        %s304 = smul.u32 16, %s28
        %v306 = vld [vmem:[%s291] sm:$0xf]
        %v307 = vld [vmem:[%s291 + $0x4] sm:$0xf]
        %v308 = vld [vmem:[%s291 + $0xc] sm:$0xf]
        %v309 = vld [vmem:[%s291 + $0x10] sm:$0xf]
        %v310 = vld [vmem:[%s291 + $0x18] sm:$0xf]
        %v311 = vld [vmem:[%s291 + $0x1c] sm:$0xf]
        %v312 = vld [vmem:[%s291 + $0x24] sm:$0xf]
        %v313 = vld [vmem:[%s291 + $0x28] sm:$0xf]
        %v314 = vld [vmem:[%s291 + $0x30] sm:$0xf]
        %v315 = vld [vmem:[%s291 + $0x34] sm:$0xf]
        %v316 = vld [vmem:[%s291 + $0x3c] sm:$0xf]
        %v317 = vld [vmem:[%s291 + $0x40] sm:$0xf]
        %v318 = vld [vmem:[%s291 + $0x48] sm:$0xf]
        %v319 = vld [vmem:[%s291 + $0x4c] sm:$0xf]
        %v320 = vld [vmem:[%s291 + $0x54] sm:$0xf]
        %v321 = vld [vmem:[%s291 + $0x58] sm:$0xf]
        %v322 = vld [vmem:[%s291 + $0x60] sm:$0xf]
        %v323 = vld [vmem:[%s291 + $0x64] sm:$0xf]
        %v324 = vld [vmem:[%s291 + $0x6c] sm:$0xf]
        %v325 = vld [vmem:[%s291 + $0x70] sm:$0xf]
        %v326 = vld [vmem:[%s291 + $0x78] sm:$0xf]
        %v327 = vld [vmem:[%s291 + $0x7c] sm:$0xf]
        %v328 = vld [vmem:[%s291 + $0x84] sm:$0xf]
        %v329 = vld [vmem:[%s291 + $0x88] sm:$0xf]
        %v330 = vld [vmem:[%s291 + $0x90] sm:$0xf]
        %v331 = vld [vmem:[%s291 + $0x94] sm:$0xf]
        %v332 = vld [vmem:[%s291 + $0x9c] sm:$0xf]
        %v333 = vld [vmem:[%s291 + $0xa0] sm:$0xf]
        %v334 = vld [vmem:[%s291 + $0xa8] sm:$0xf]
        %v335 = vld [vmem:[%s291 + $0xac] sm:$0xf]
        %v336 = vld [vmem:[%s291 + $0xb4] sm:$0xf]
        %v337 = vld [vmem:[%s291 + $0xb8] sm:$0xf]
        %v370 = vunpack.c.l.b16 %v306
        %v371 = vunpack.c.l.b16 %v307
        %v372 = vunpack.c.l.b16 %v308
        %v373 = vunpack.c.l.b16 %v309
        %v374 = vunpack.c.l.b16 %v310
        %v375 = vunpack.c.l.b16 %v311
        %v376 = vunpack.c.l.b16 %v312
        %v377 = vunpack.c.l.b16 %v313
        %v378 = vunpack.c.l.b16 %v314
        %v379 = vunpack.c.l.b16 %v315
        %v380 = vunpack.c.l.b16 %v316
        %v381 = vunpack.c.l.b16 %v317
        %v382 = vunpack.c.l.b16 %v318
        %v383 = vunpack.c.l.b16 %v319
        %v384 = vunpack.c.l.b16 %v320
        %v385 = vunpack.c.l.b16 %v321
        %v386 = vunpack.c.l.b16 %v322
        %v387 = vunpack.c.l.b16 %v323
        %v388 = vunpack.c.l.b16 %v324
        %v389 = vunpack.c.l.b16 %v325
        %v390 = vunpack.c.l.b16 %v326
        %v391 = vunpack.c.l.b16 %v327
        %v392 = vunpack.c.l.b16 %v328
        %v393 = vunpack.c.l.b16 %v329
        %v394 = vunpack.c.l.b16 %v330
        %v395 = vunpack.c.l.b16 %v331
        %v396 = vunpack.c.l.b16 %v332
        %v397 = vunpack.c.l.b16 %v333
        %v398 = vunpack.c.l.b16 %v334
        %v399 = vunpack.c.l.b16 %v335
        %v400 = vunpack.c.l.b16 %v336
        %v401 = vunpack.c.l.b16 %v337
        %v402 = vpack.c.b16 %v371, %v370
        %v403 = vpack.c.b16 %v373, %v372
        %v404 = vpack.c.b16 %v375, %v374
        %v405 = vpack.c.b16 %v377, %v376
        %v406 = vpack.c.b16 %v379, %v378
        %v407 = vpack.c.b16 %v381, %v380
        %v408 = vpack.c.b16 %v383, %v382
        %v409 = vpack.c.b16 %v385, %v384
        %v410 = vpack.c.b16 %v387, %v386
        %v411 = vpack.c.b16 %v389, %v388
        %v412 = vpack.c.b16 %v391, %v390
        %v413 = vpack.c.b16 %v393, %v392
        %v414 = vpack.c.b16 %v395, %v394
        %v415 = vpack.c.b16 %v397, %v396
        %v416 = vpack.c.b16 %v399, %v398
        %v417 = vpack.c.b16 %v401, %v400
        %vm434 = vcmask 293888
        %435 = vst.msk [vmem:[#allocation2] sm:$0xff] %vm434, %v402
        %436 = vst.msk [vmem:[#allocation2 + $0x18] sm:$0xff] %vm434, %v403
        %437 = vst.msk [vmem:[#allocation2 + $0x30] sm:$0xff] %vm434, %v404
        %438 = vst.msk [vmem:[#allocation2 + $0x48] sm:$0xff] %vm434, %v405
        %439 = vst.msk [vmem:[#allocation2 + $0x60] sm:$0xff] %vm434, %v406
        %440 = vst.msk [vmem:[#allocation2 + $0x78] sm:$0xff] %vm434, %v407
        %441 = vst.msk [vmem:[#allocation2 + $0x90] sm:$0xff] %vm434, %v408
        %442 = vst.msk [vmem:[#allocation2 + $0xa8] sm:$0xff] %vm434, %v409
        %443 = vst.msk [vmem:[#allocation2 + $0xc0] sm:$0xff] %vm434, %v410
        %444 = vst.msk [vmem:[#allocation2 + $0xd8] sm:$0xff] %vm434, %v411
        %445 = vst.msk [vmem:[#allocation2 + $0xf0] sm:$0xff] %vm434, %v412
        %446 = vst.msk [vmem:[#allocation2 + $0x108] sm:$0xff] %vm434, %v413
        %447 = vst.msk [vmem:[#allocation2 + $0x120] sm:$0xff] %vm434, %v414
        %448 = vst.msk [vmem:[#allocation2 + $0x138] sm:$0xff] %vm434, %v415
        %449 = vst.msk [vmem:[#allocation2 + $0x150] sm:$0xff] %vm434, %v416
        %450 = vst.msk [vmem:[#allocation2 + $0x168] sm:$0xff] %vm434, %v417
        %v451 = vld [vmem:[%s291] sm:$0xf]
        %v452 = vld [vmem:[%s291 + $0x4] sm:$0xf]
        %v453 = vld [vmem:[%s291 + $0x8] sm:$0x1]
        %v454 = vld [vmem:[%s291 + $0xc] sm:$0xf]
        %v455 = vld [vmem:[%s291 + $0x10] sm:$0xf]
        %v456 = vld [vmem:[%s291 + $0x14] sm:$0x1]
        %v457 = vld [vmem:[%s291 + $0x18] sm:$0xf]
        %v458 = vld [vmem:[%s291 + $0x1c] sm:$0xf]
        %v459 = vld [vmem:[%s291 + $0x20] sm:$0x1]
        %v460 = vld [vmem:[%s291 + $0x24] sm:$0xf]
        %v461 = vld [vmem:[%s291 + $0x28] sm:$0xf]
        %v462 = vld [vmem:[%s291 + $0x2c] sm:$0x1]
        %v463 = vld [vmem:[%s291 + $0x30] sm:$0xf]
        %v464 = vld [vmem:[%s291 + $0x34] sm:$0xf]
        %v465 = vld [vmem:[%s291 + $0x38] sm:$0x1]
        %v466 = vld [vmem:[%s291 + $0x3c] sm:$0xf]
        %v467 = vld [vmem:[%s291 + $0x40] sm:$0xf]
        %v468 = vld [vmem:[%s291 + $0x44] sm:$0x1]
        %v469 = vld [vmem:[%s291 + $0x48] sm:$0xf]
        %v470 = vld [vmem:[%s291 + $0x4c] sm:$0xf]
        %v471 = vld [vmem:[%s291 + $0x50] sm:$0x1]
        %v472 = vld [vmem:[%s291 + $0x54] sm:$0xf]
        %v473 = vld [vmem:[%s291 + $0x58] sm:$0xf]
        %v474 = vld [vmem:[%s291 + $0x5c] sm:$0x1]
        %v475 = vld [vmem:[%s291 + $0x60] sm:$0xf]
        %v476 = vld [vmem:[%s291 + $0x64] sm:$0xf]
        %v477 = vld [vmem:[%s291 + $0x68] sm:$0x1]
        %v478 = vld [vmem:[%s291 + $0x6c] sm:$0xf]
        %v479 = vld [vmem:[%s291 + $0x70] sm:$0xf]
        %v480 = vld [vmem:[%s291 + $0x74] sm:$0x1]
        %v481 = vld [vmem:[%s291 + $0x78] sm:$0xf]
        %v482 = vld [vmem:[%s291 + $0x7c] sm:$0xf]
        %v483 = vld [vmem:[%s291 + $0x80] sm:$0x1]
        %v484 = vld [vmem:[%s291 + $0x84] sm:$0xf]
        %v485 = vld [vmem:[%s291 + $0x88] sm:$0xf]
        %v486 = vld [vmem:[%s291 + $0x8c] sm:$0x1]
        %v487 = vld [vmem:[%s291 + $0x90] sm:$0xf]
        %v488 = vld [vmem:[%s291 + $0x94] sm:$0xf]
        %v489 = vld [vmem:[%s291 + $0x98] sm:$0x1]
        %v490 = vld [vmem:[%s291 + $0x9c] sm:$0xf]
        %v491 = vld [vmem:[%s291 + $0xa0] sm:$0xf]
        %v492 = vld [vmem:[%s291 + $0xa4] sm:$0x1]
        %v493 = vld [vmem:[%s291 + $0xa8] sm:$0xf]
        %v494 = vld [vmem:[%s291 + $0xac] sm:$0xf]
        %v495 = vld [vmem:[%s291 + $0xb0] sm:$0x1]
        %v496 = vld [vmem:[%s291 + $0xb4] sm:$0xf]
        %v497 = vld [vmem:[%s291 + $0xb8] sm:$0xf]
        %v498 = vld [vmem:[%s291 + $0xbc] sm:$0x1]
        %vm499 = vsmask.f32 3328
        %vm500 = vsmask.f32 7440
        %vm501 = vmor %vm499, %vm500
        %v503 = vshrl.u32 %v451, 16
        %v505 = vrot.slane %v503, 4
        %v506 = vshll.u32 %v451, 16
        %v508 = vrot.slane %v506, 5
        %v509 = vor.u32 %v505, %v508
        %v510 = vrot.slane %v509, 4
        %v512 = vshll.u32 %v452, 16
        %v514 = vrot.slane %v512, 5
        %v515 = vsel %vm501, %v510, %v514
        %v516 = vshrl.u32 %v452, 16
        %v518 = vrot.slane %v516, 4
        %v519 = vor.u32 %v518, %v514
        %v520 = vrot.slane %v519, 4
        %v522 = vshll.u32 %v453, 16
        %v524 = vrot.slane %v522, 5
        %v525 = vsel %vm501, %v520, %v524
        %v527 = vshrl.u32 %v454, 16
        %v529 = vrot.slane %v527, 4
        %v530 = vshll.u32 %v454, 16
        %v532 = vrot.slane %v530, 5
        %v533 = vor.u32 %v529, %v532
        %v534 = vrot.slane %v533, 4
        %v536 = vshll.u32 %v455, 16
        %v538 = vrot.slane %v536, 5
        %v539 = vsel %vm501, %v534, %v538
        %v540 = vshrl.u32 %v455, 16
        %v542 = vrot.slane %v540, 4
        %v543 = vor.u32 %v542, %v538
        %v544 = vrot.slane %v543, 4
        %v546 = vshll.u32 %v456, 16
        %v548 = vrot.slane %v546, 5
        %v549 = vsel %vm501, %v544, %v548
        %v551 = vshrl.u32 %v457, 16
        %v553 = vrot.slane %v551, 4
        %v554 = vshll.u32 %v457, 16
        %v556 = vrot.slane %v554, 5
        %v557 = vor.u32 %v553, %v556
        %v558 = vrot.slane %v557, 4
        %v560 = vshll.u32 %v458, 16
        %v562 = vrot.slane %v560, 5
        %v563 = vsel %vm501, %v558, %v562
        %v564 = vshrl.u32 %v458, 16
        %v566 = vrot.slane %v564, 4
        %v567 = vor.u32 %v566, %v562
        %v568 = vrot.slane %v567, 4
        %v570 = vshll.u32 %v459, 16
        %v572 = vrot.slane %v570, 5
        %v573 = vsel %vm501, %v568, %v572
        %v575 = vshrl.u32 %v460, 16
        %v577 = vrot.slane %v575, 4
        %v578 = vshll.u32 %v460, 16
        %v580 = vrot.slane %v578, 5
        %v581 = vor.u32 %v577, %v580
        %v582 = vrot.slane %v581, 4
        %v584 = vshll.u32 %v461, 16
        %v586 = vrot.slane %v584, 5
        %v587 = vsel %vm501, %v582, %v586
        %v588 = vshrl.u32 %v461, 16
        %v590 = vrot.slane %v588, 4
        %v591 = vor.u32 %v590, %v586
        %v592 = vrot.slane %v591, 4
        %v594 = vshll.u32 %v462, 16
        %v596 = vrot.slane %v594, 5
        %v597 = vsel %vm501, %v592, %v596
        %v599 = vshrl.u32 %v463, 16
        %v601 = vrot.slane %v599, 4
        %v602 = vshll.u32 %v463, 16
        %v604 = vrot.slane %v602, 5
        %v605 = vor.u32 %v601, %v604
        %v606 = vrot.slane %v605, 4
        %v608 = vshll.u32 %v464, 16
        %v610 = vrot.slane %v608, 5
        %v611 = vsel %vm501, %v606, %v610
        %v612 = vshrl.u32 %v464, 16
        %v614 = vrot.slane %v612, 4
        %v615 = vor.u32 %v614, %v610
        %v616 = vrot.slane %v615, 4
        %v618 = vshll.u32 %v465, 16
        %v620 = vrot.slane %v618, 5
        %v621 = vsel %vm501, %v616, %v620
        %v623 = vshrl.u32 %v466, 16
        %v625 = vrot.slane %v623, 4
        %v626 = vshll.u32 %v466, 16
        %v628 = vrot.slane %v626, 5
        %v629 = vor.u32 %v625, %v628
        %v630 = vrot.slane %v629, 4
        %v632 = vshll.u32 %v467, 16
        %v634 = vrot.slane %v632, 5
        %v635 = vsel %vm501, %v630, %v634
        %v636 = vshrl.u32 %v467, 16
        %v638 = vrot.slane %v636, 4
        %v639 = vor.u32 %v638, %v634
        %v640 = vrot.slane %v639, 4
        %v642 = vshll.u32 %v468, 16
        %v644 = vrot.slane %v642, 5
        %v645 = vsel %vm501, %v640, %v644
        %v647 = vshrl.u32 %v469, 16
        %v649 = vrot.slane %v647, 4
        %v650 = vshll.u32 %v469, 16
        %v652 = vrot.slane %v650, 5
        %v653 = vor.u32 %v649, %v652
        %v654 = vrot.slane %v653, 4
        %v656 = vshll.u32 %v470, 16
        %v658 = vrot.slane %v656, 5
        %v659 = vsel %vm501, %v654, %v658
        %v660 = vshrl.u32 %v470, 16
        %v662 = vrot.slane %v660, 4
        %v663 = vor.u32 %v662, %v658
        %v664 = vrot.slane %v663, 4
        %v666 = vshll.u32 %v471, 16
        %v668 = vrot.slane %v666, 5
        %v669 = vsel %vm501, %v664, %v668
        %v671 = vshrl.u32 %v472, 16
        %v673 = vrot.slane %v671, 4
        %v674 = vshll.u32 %v472, 16
        %v676 = vrot.slane %v674, 5
        %v677 = vor.u32 %v673, %v676
        %v678 = vrot.slane %v677, 4
        %v680 = vshll.u32 %v473, 16
        %v682 = vrot.slane %v680, 5
        %v683 = vsel %vm501, %v678, %v682
        %v684 = vshrl.u32 %v473, 16
        %v686 = vrot.slane %v684, 4
        %v687 = vor.u32 %v686, %v682
        %v688 = vrot.slane %v687, 4
        %v690 = vshll.u32 %v474, 16
        %v692 = vrot.slane %v690, 5
        %v693 = vsel %vm501, %v688, %v692
        %v695 = vshrl.u32 %v475, 16
        %v697 = vrot.slane %v695, 4
        %v698 = vshll.u32 %v475, 16
        %v700 = vrot.slane %v698, 5
        %v701 = vor.u32 %v697, %v700
        %v702 = vrot.slane %v701, 4
        %v704 = vshll.u32 %v476, 16
        %v706 = vrot.slane %v704, 5
        %v707 = vsel %vm501, %v702, %v706
        %v708 = vshrl.u32 %v476, 16
        %v710 = vrot.slane %v708, 4
        %v711 = vor.u32 %v710, %v706
        %v712 = vrot.slane %v711, 4
        %v714 = vshll.u32 %v477, 16
        %v716 = vrot.slane %v714, 5
        %v717 = vsel %vm501, %v712, %v716
        %v719 = vshrl.u32 %v478, 16
        %v721 = vrot.slane %v719, 4
        %v722 = vshll.u32 %v478, 16
        %v724 = vrot.slane %v722, 5
        %v725 = vor.u32 %v721, %v724
        %v726 = vrot.slane %v725, 4
        %v728 = vshll.u32 %v479, 16
        %v730 = vrot.slane %v728, 5
        %v731 = vsel %vm501, %v726, %v730
        %v732 = vshrl.u32 %v479, 16
        %v734 = vrot.slane %v732, 4
        %v735 = vor.u32 %v734, %v730
        %v736 = vrot.slane %v735, 4
        %v738 = vshll.u32 %v480, 16
        %v740 = vrot.slane %v738, 5
        %v741 = vsel %vm501, %v736, %v740
        %v743 = vshrl.u32 %v481, 16
        %v745 = vrot.slane %v743, 4
        %v746 = vshll.u32 %v481, 16
        %v748 = vrot.slane %v746, 5
        %v749 = vor.u32 %v745, %v748
        %v750 = vrot.slane %v749, 4
        %v752 = vshll.u32 %v482, 16
        %v754 = vrot.slane %v752, 5
        %v755 = vsel %vm501, %v750, %v754
        %v756 = vshrl.u32 %v482, 16
        %v758 = vrot.slane %v756, 4
        %v759 = vor.u32 %v758, %v754
        %v760 = vrot.slane %v759, 4
        %v762 = vshll.u32 %v483, 16
        %v764 = vrot.slane %v762, 5
        %v765 = vsel %vm501, %v760, %v764
        %v767 = vshrl.u32 %v484, 16
        %v769 = vrot.slane %v767, 4
        %v770 = vshll.u32 %v484, 16
        %v772 = vrot.slane %v770, 5
        %v773 = vor.u32 %v769, %v772
        %v774 = vrot.slane %v773, 4
        %v776 = vshll.u32 %v485, 16
        %v778 = vrot.slane %v776, 5
        %v779 = vsel %vm501, %v774, %v778
        %v780 = vshrl.u32 %v485, 16
        %v782 = vrot.slane %v780, 4
        %v783 = vor.u32 %v782, %v778
        %v784 = vrot.slane %v783, 4
        %v786 = vshll.u32 %v486, 16
        %v788 = vrot.slane %v786, 5
        %v789 = vsel %vm501, %v784, %v788
        %v791 = vshrl.u32 %v487, 16
        %v793 = vrot.slane %v791, 4
        %v794 = vshll.u32 %v487, 16
        %v796 = vrot.slane %v794, 5
        %v797 = vor.u32 %v793, %v796
        %v798 = vrot.slane %v797, 4
        %v800 = vshll.u32 %v488, 16
        %v802 = vrot.slane %v800, 5
        %v803 = vsel %vm501, %v798, %v802
        %v804 = vshrl.u32 %v488, 16
        %v806 = vrot.slane %v804, 4
        %v807 = vor.u32 %v806, %v802
        %v808 = vrot.slane %v807, 4
        %v810 = vshll.u32 %v489, 16
        %v812 = vrot.slane %v810, 5
        %v813 = vsel %vm501, %v808, %v812
        %v815 = vshrl.u32 %v490, 16
        %v817 = vrot.slane %v815, 4
        %v818 = vshll.u32 %v490, 16
        %v820 = vrot.slane %v818, 5
        %v821 = vor.u32 %v817, %v820
        %v822 = vrot.slane %v821, 4
        %v824 = vshll.u32 %v491, 16
        %v826 = vrot.slane %v824, 5
        %v827 = vsel %vm501, %v822, %v826
        %v828 = vshrl.u32 %v491, 16
        %v830 = vrot.slane %v828, 4
        %v831 = vor.u32 %v830, %v826
        %v832 = vrot.slane %v831, 4
        %v834 = vshll.u32 %v492, 16
        %v836 = vrot.slane %v834, 5
        %v837 = vsel %vm501, %v832, %v836
        %v839 = vshrl.u32 %v493, 16
        %v841 = vrot.slane %v839, 4
        %v842 = vshll.u32 %v493, 16
        %v844 = vrot.slane %v842, 5
        %v845 = vor.u32 %v841, %v844
        %v846 = vrot.slane %v845, 4
        %v848 = vshll.u32 %v494, 16
        %v850 = vrot.slane %v848, 5
        %v851 = vsel %vm501, %v846, %v850
        %v852 = vshrl.u32 %v494, 16
        %v854 = vrot.slane %v852, 4
        %v855 = vor.u32 %v854, %v850
        %v856 = vrot.slane %v855, 4
        %v858 = vshll.u32 %v495, 16
        %v860 = vrot.slane %v858, 5
        %v861 = vsel %vm501, %v856, %v860
        %v863 = vshrl.u32 %v496, 16
        %v865 = vrot.slane %v863, 4
        %v866 = vshll.u32 %v496, 16
        %v868 = vrot.slane %v866, 5
        %v869 = vor.u32 %v865, %v868
        %v870 = vrot.slane %v869, 4
        %v872 = vshll.u32 %v497, 16
        %v874 = vrot.slane %v872, 5
        %v875 = vsel %vm501, %v870, %v874
        %v876 = vshrl.u32 %v497, 16
        %v878 = vrot.slane %v876, 4
        %v879 = vor.u32 %v878, %v874
        %v880 = vrot.slane %v879, 4
        %v882 = vshll.u32 %v498, 16
        %v884 = vrot.slane %v882, 5
        %v885 = vsel %vm501, %v880, %v884
        %v886 = vunpack.c.l.b16 %v515
        %v887 = vunpack.c.l.b16 %v525
        %v888 = vunpack.c.l.b16 %v539
        %v889 = vunpack.c.l.b16 %v549
        %v890 = vunpack.c.l.b16 %v563
        %v891 = vunpack.c.l.b16 %v573
        %v892 = vunpack.c.l.b16 %v587
        %v893 = vunpack.c.l.b16 %v597
        %v894 = vunpack.c.l.b16 %v611
        %v895 = vunpack.c.l.b16 %v621
        %v896 = vunpack.c.l.b16 %v635
        %v897 = vunpack.c.l.b16 %v645
        %v898 = vunpack.c.l.b16 %v659
        %v899 = vunpack.c.l.b16 %v669
        %v900 = vunpack.c.l.b16 %v683
        %v901 = vunpack.c.l.b16 %v693
        %v902 = vunpack.c.l.b16 %v707
        %v903 = vunpack.c.l.b16 %v717
        %v904 = vunpack.c.l.b16 %v731
        %v905 = vunpack.c.l.b16 %v741
        %v906 = vunpack.c.l.b16 %v755
        %v907 = vunpack.c.l.b16 %v765
        %v908 = vunpack.c.l.b16 %v779
        %v909 = vunpack.c.l.b16 %v789
        %v910 = vunpack.c.l.b16 %v803
        %v911 = vunpack.c.l.b16 %v813
        %v912 = vunpack.c.l.b16 %v827
        %v913 = vunpack.c.l.b16 %v837
        %v914 = vunpack.c.l.b16 %v851
        %v915 = vunpack.c.l.b16 %v861
        %v916 = vunpack.c.l.b16 %v875
        %v917 = vunpack.c.l.b16 %v885
        %v918 = vpack.c.b16 %v887, %v886
        %v919 = vpack.c.b16 %v889, %v888
        %v920 = vpack.c.b16 %v891, %v890
        %v921 = vpack.c.b16 %v893, %v892
        %v922 = vpack.c.b16 %v895, %v894
        %v923 = vpack.c.b16 %v897, %v896
        %v924 = vpack.c.b16 %v899, %v898
        %v925 = vpack.c.b16 %v901, %v900
        %v926 = vpack.c.b16 %v903, %v902
        %v927 = vpack.c.b16 %v905, %v904
        %v928 = vpack.c.b16 %v907, %v906
        %v929 = vpack.c.b16 %v909, %v908
        %v930 = vpack.c.b16 %v911, %v910
        %v931 = vpack.c.b16 %v913, %v912
        %v932 = vpack.c.b16 %v915, %v914
        %v933 = vpack.c.b16 %v917, %v916
        %934 = vrot.lane.b32.xlu0 %v918, 36
        %v935 = vpop.permute.xlu0 %934
        %936 = vrot.lane.b32.xlu0 %v919, 36
        %v937 = vpop.permute.xlu0 %936
        %938 = vrot.lane.b32.xlu0 %v920, 36
        %v939 = vpop.permute.xlu0 %938
        %940 = vrot.lane.b32.xlu0 %v921, 36
        %v941 = vpop.permute.xlu0 %940
        %942 = vrot.lane.b32.xlu0 %v922, 36
        %v943 = vpop.permute.xlu0 %942
        %944 = vrot.lane.b32.xlu0 %v923, 36
        %v945 = vpop.permute.xlu0 %944
        %946 = vrot.lane.b32.xlu0 %v924, 36
        %v947 = vpop.permute.xlu0 %946
        %948 = vrot.lane.b32.xlu0 %v925, 36
        %v949 = vpop.permute.xlu0 %948
        %950 = vrot.lane.b32.xlu0 %v926, 36
        %v951 = vpop.permute.xlu0 %950
        %952 = vrot.lane.b32.xlu0 %v927, 36
        %v953 = vpop.permute.xlu0 %952
        %954 = vrot.lane.b32.xlu0 %v928, 36
        %v955 = vpop.permute.xlu0 %954
        %956 = vrot.lane.b32.xlu0 %v929, 36
        %v957 = vpop.permute.xlu0 %956
        %958 = vrot.lane.b32.xlu0 %v930, 36
        %v959 = vpop.permute.xlu0 %958
        %960 = vrot.lane.b32.xlu0 %v931, 36
        %v961 = vpop.permute.xlu0 %960
        %962 = vrot.lane.b32.xlu0 %v932, 36
        %v963 = vpop.permute.xlu0 %962
        %964 = vrot.lane.b32.xlu0 %v933, 36
        %v965 = vpop.permute.xlu0 %964
        %vm982 = vcmask 589088
        %983 = vst.msk [vmem:[#allocation2] sm:$0xff] %vm982, %v935
        %984 = vst.msk [vmem:[#allocation2 + $0x18] sm:$0xff] %vm982, %v937
        %985 = vst.msk [vmem:[#allocation2 + $0x30] sm:$0xff] %vm982, %v939
        %986 = vst.msk [vmem:[#allocation2 + $0x48] sm:$0xff] %vm982, %v941
        %987 = vst.msk [vmem:[#allocation2 + $0x60] sm:$0xff] %vm982, %v943
        %988 = vst.msk [vmem:[#allocation2 + $0x78] sm:$0xff] %vm982, %v945
        %989 = vst.msk [vmem:[#allocation2 + $0x90] sm:$0xff] %vm982, %v947
        %990 = vst.msk [vmem:[#allocation2 + $0xa8] sm:$0xff] %vm982, %v949
        %991 = vst.msk [vmem:[#allocation2 + $0xc0] sm:$0xff] %vm982, %v951
        %992 = vst.msk [vmem:[#allocation2 + $0xd8] sm:$0xff] %vm982, %v953
        %993 = vst.msk [vmem:[#allocation2 + $0xf0] sm:$0xff] %vm982, %v955
        %994 = vst.msk [vmem:[#allocation2 + $0x108] sm:$0xff] %vm982, %v957
        %995 = vst.msk [vmem:[#allocation2 + $0x120] sm:$0xff] %vm982, %v959
        %996 = vst.msk [vmem:[#allocation2 + $0x138] sm:$0xff] %vm982, %v961
        %997 = vst.msk [vmem:[#allocation2 + $0x150] sm:$0xff] %vm982, %v963
        %998 = vst.msk [vmem:[#allocation2 + $0x168] sm:$0xff] %vm982, %v965
        %v999 = vld [vmem:[%s291] sm:$0xe]
        %v1000 = vld [vmem:[%s291 + $0x4] sm:$0xf]
        %v1001 = vld [vmem:[%s291 + $0x8] sm:$0x1]
        %v1002 = vld [vmem:[%s291 + $0xc] sm:$0xe]
        %v1003 = vld [vmem:[%s291 + $0x10] sm:$0xf]
        %v1004 = vld [vmem:[%s291 + $0x14] sm:$0x1]
        %v1005 = vld [vmem:[%s291 + $0x18] sm:$0xe]
        %v1006 = vld [vmem:[%s291 + $0x1c] sm:$0xf]
        %v1007 = vld [vmem:[%s291 + $0x20] sm:$0x1]
        %v1008 = vld [vmem:[%s291 + $0x24] sm:$0xe]
        %v1009 = vld [vmem:[%s291 + $0x28] sm:$0xf]
        %v1010 = vld [vmem:[%s291 + $0x2c] sm:$0x1]
        %v1011 = vld [vmem:[%s291 + $0x30] sm:$0xe]
        %v1012 = vld [vmem:[%s291 + $0x34] sm:$0xf]
        %v1013 = vld [vmem:[%s291 + $0x38] sm:$0x1]
        %v1014 = vld [vmem:[%s291 + $0x3c] sm:$0xe]
        %v1015 = vld [vmem:[%s291 + $0x40] sm:$0xf]
        %v1016 = vld [vmem:[%s291 + $0x44] sm:$0x1]
        %v1017 = vld [vmem:[%s291 + $0x48] sm:$0xe]
        %v1018 = vld [vmem:[%s291 + $0x4c] sm:$0xf]
        %v1019 = vld [vmem:[%s291 + $0x50] sm:$0x1]
        %v1020 = vld [vmem:[%s291 + $0x54] sm:$0xe]
        %v1021 = vld [vmem:[%s291 + $0x58] sm:$0xf]
        %v1022 = vld [vmem:[%s291 + $0x5c] sm:$0x1]
        %v1023 = vld [vmem:[%s291 + $0x60] sm:$0xe]
        %v1024 = vld [vmem:[%s291 + $0x64] sm:$0xf]
        %v1025 = vld [vmem:[%s291 + $0x68] sm:$0x1]
        %v1026 = vld [vmem:[%s291 + $0x6c] sm:$0xe]
        %v1027 = vld [vmem:[%s291 + $0x70] sm:$0xf]
        %v1028 = vld [vmem:[%s291 + $0x74] sm:$0x1]
        %v1029 = vld [vmem:[%s291 + $0x78] sm:$0xe]
        %v1030 = vld [vmem:[%s291 + $0x7c] sm:$0xf]
        %v1031 = vld [vmem:[%s291 + $0x80] sm:$0x1]
        %v1032 = vld [vmem:[%s291 + $0x84] sm:$0xe]
        %v1033 = vld [vmem:[%s291 + $0x88] sm:$0xf]
        %v1034 = vld [vmem:[%s291 + $0x8c] sm:$0x1]
        %v1035 = vld [vmem:[%s291 + $0x90] sm:$0xe]
        %v1036 = vld [vmem:[%s291 + $0x94] sm:$0xf]
        %v1037 = vld [vmem:[%s291 + $0x98] sm:$0x1]
        %v1038 = vld [vmem:[%s291 + $0x9c] sm:$0xe]
        %v1039 = vld [vmem:[%s291 + $0xa0] sm:$0xf]
        %v1040 = vld [vmem:[%s291 + $0xa4] sm:$0x1]
        %v1041 = vld [vmem:[%s291 + $0xa8] sm:$0xe]
        %v1042 = vld [vmem:[%s291 + $0xac] sm:$0xf]
        %v1043 = vld [vmem:[%s291 + $0xb0] sm:$0x1]
        %v1044 = vld [vmem:[%s291 + $0xb4] sm:$0xe]
        %v1045 = vld [vmem:[%s291 + $0xb8] sm:$0xf]
        %v1046 = vld [vmem:[%s291 + $0xbc] sm:$0x1]
        %vm1095 = vcmask 1042432
        %vm1096 = vcmask 1046532
        %vm1097 = vmor %vm1095, %vm1096
        %v1098 = vrot.slane %v999, 5
        %v1099 = vrot.slane %v1098, 4
        %v1100 = vrot.slane %v1000, 5
        %v1101 = vsel %vm1097, %v1099, %v1100
        %v1102 = vrot.slane %v1100, 4
        %v1103 = vrot.slane %v1001, 5
        %v1104 = vsel %vm1097, %v1102, %v1103
        %v1105 = vrot.slane %v1002, 5
        %v1106 = vrot.slane %v1105, 4
        %v1107 = vrot.slane %v1003, 5
        %v1108 = vsel %vm1097, %v1106, %v1107
        %v1109 = vrot.slane %v1107, 4
        %v1110 = vrot.slane %v1004, 5
        %v1111 = vsel %vm1097, %v1109, %v1110
        %v1112 = vrot.slane %v1005, 5
        %v1113 = vrot.slane %v1112, 4
        %v1114 = vrot.slane %v1006, 5
        %v1115 = vsel %vm1097, %v1113, %v1114
        %v1116 = vrot.slane %v1114, 4
        %v1117 = vrot.slane %v1007, 5
        %v1118 = vsel %vm1097, %v1116, %v1117
        %v1119 = vrot.slane %v1008, 5
        %v1120 = vrot.slane %v1119, 4
        %v1121 = vrot.slane %v1009, 5
        %v1122 = vsel %vm1097, %v1120, %v1121
        %v1123 = vrot.slane %v1121, 4
        %v1124 = vrot.slane %v1010, 5
        %v1125 = vsel %vm1097, %v1123, %v1124
        %v1126 = vrot.slane %v1011, 5
        %v1127 = vrot.slane %v1126, 4
        %v1128 = vrot.slane %v1012, 5
        %v1129 = vsel %vm1097, %v1127, %v1128
        %v1130 = vrot.slane %v1128, 4
        %v1131 = vrot.slane %v1013, 5
        %v1132 = vsel %vm1097, %v1130, %v1131
        %v1133 = vrot.slane %v1014, 5
        %v1134 = vrot.slane %v1133, 4
        %v1135 = vrot.slane %v1015, 5
        %v1136 = vsel %vm1097, %v1134, %v1135
        %v1137 = vrot.slane %v1135, 4
        %v1138 = vrot.slane %v1016, 5
        %v1139 = vsel %vm1097, %v1137, %v1138
        %v1140 = vrot.slane %v1017, 5
        %v1141 = vrot.slane %v1140, 4
        %v1142 = vrot.slane %v1018, 5
        %v1143 = vsel %vm1097, %v1141, %v1142
        %v1144 = vrot.slane %v1142, 4
        %v1145 = vrot.slane %v1019, 5
        %v1146 = vsel %vm1097, %v1144, %v1145
        %v1147 = vrot.slane %v1020, 5
        %v1148 = vrot.slane %v1147, 4
        %v1149 = vrot.slane %v1021, 5
        %v1150 = vsel %vm1097, %v1148, %v1149
        %v1151 = vrot.slane %v1149, 4
        %v1152 = vrot.slane %v1022, 5
        %v1153 = vsel %vm1097, %v1151, %v1152
        %v1154 = vrot.slane %v1023, 5
        %v1155 = vrot.slane %v1154, 4
        %v1156 = vrot.slane %v1024, 5
        %v1157 = vsel %vm1097, %v1155, %v1156
        %v1158 = vrot.slane %v1156, 4
        %v1159 = vrot.slane %v1025, 5
        %v1160 = vsel %vm1097, %v1158, %v1159
        %v1161 = vrot.slane %v1026, 5
        %v1162 = vrot.slane %v1161, 4
        %v1163 = vrot.slane %v1027, 5
        %v1164 = vsel %vm1097, %v1162, %v1163
        %v1165 = vrot.slane %v1163, 4
        %v1166 = vrot.slane %v1028, 5
        %v1167 = vsel %vm1097, %v1165, %v1166
        %v1168 = vrot.slane %v1029, 5
        %v1169 = vrot.slane %v1168, 4
        %v1170 = vrot.slane %v1030, 5
        %v1171 = vsel %vm1097, %v1169, %v1170
        %v1172 = vrot.slane %v1170, 4
        %v1173 = vrot.slane %v1031, 5
        %v1174 = vsel %vm1097, %v1172, %v1173
        %v1175 = vrot.slane %v1032, 5
        %v1176 = vrot.slane %v1175, 4
        %v1177 = vrot.slane %v1033, 5
        %v1178 = vsel %vm1097, %v1176, %v1177
        %v1179 = vrot.slane %v1177, 4
        %v1180 = vrot.slane %v1034, 5
        %v1181 = vsel %vm1097, %v1179, %v1180
        %v1182 = vrot.slane %v1035, 5
        %v1183 = vrot.slane %v1182, 4
        %v1184 = vrot.slane %v1036, 5
        %v1185 = vsel %vm1097, %v1183, %v1184
        %v1186 = vrot.slane %v1184, 4
        %v1187 = vrot.slane %v1037, 5
        %v1188 = vsel %vm1097, %v1186, %v1187
        %v1189 = vrot.slane %v1038, 5
        %v1190 = vrot.slane %v1189, 4
        %v1191 = vrot.slane %v1039, 5
        %v1192 = vsel %vm1097, %v1190, %v1191
        %v1193 = vrot.slane %v1191, 4
        %v1194 = vrot.slane %v1040, 5
        %v1195 = vsel %vm1097, %v1193, %v1194
        %v1196 = vrot.slane %v1041, 5
        %v1197 = vrot.slane %v1196, 4
        %v1198 = vrot.slane %v1042, 5
        %v1199 = vsel %vm1097, %v1197, %v1198
        %v1200 = vrot.slane %v1198, 4
        %v1201 = vrot.slane %v1043, 5
        %v1202 = vsel %vm1097, %v1200, %v1201
        %v1203 = vrot.slane %v1044, 5
        %v1204 = vrot.slane %v1203, 4
        %v1205 = vrot.slane %v1045, 5
        %v1206 = vsel %vm1097, %v1204, %v1205
        %v1207 = vrot.slane %v1205, 4
        %v1208 = vrot.slane %v1046, 5
        %v1209 = vsel %vm1097, %v1207, %v1208
        %v1210 = vunpack.c.l.b16 %v1101
        %v1211 = vunpack.c.l.b16 %v1104
        %v1212 = vunpack.c.l.b16 %v1108
        %v1213 = vunpack.c.l.b16 %v1111
        %v1214 = vunpack.c.l.b16 %v1115
        %v1215 = vunpack.c.l.b16 %v1118
        %v1216 = vunpack.c.l.b16 %v1122
        %v1217 = vunpack.c.l.b16 %v1125
        %v1218 = vunpack.c.l.b16 %v1129
        %v1219 = vunpack.c.l.b16 %v1132
        %v1220 = vunpack.c.l.b16 %v1136
        %v1221 = vunpack.c.l.b16 %v1139
        %v1222 = vunpack.c.l.b16 %v1143
        %v1223 = vunpack.c.l.b16 %v1146
        %v1224 = vunpack.c.l.b16 %v1150
        %v1225 = vunpack.c.l.b16 %v1153
        %v1226 = vunpack.c.l.b16 %v1157
        %v1227 = vunpack.c.l.b16 %v1160
        %v1228 = vunpack.c.l.b16 %v1164
        %v1229 = vunpack.c.l.b16 %v1167
        %v1230 = vunpack.c.l.b16 %v1171
        %v1231 = vunpack.c.l.b16 %v1174
        %v1232 = vunpack.c.l.b16 %v1178
        %v1233 = vunpack.c.l.b16 %v1181
        %v1234 = vunpack.c.l.b16 %v1185
        %v1235 = vunpack.c.l.b16 %v1188
        %v1236 = vunpack.c.l.b16 %v1192
        %v1237 = vunpack.c.l.b16 %v1195
        %v1238 = vunpack.c.l.b16 %v1199
        %v1239 = vunpack.c.l.b16 %v1202
        %v1240 = vunpack.c.l.b16 %v1206
        %v1241 = vunpack.c.l.b16 %v1209
        %v1242 = vpack.c.b16 %v1211, %v1210
        %v1243 = vpack.c.b16 %v1213, %v1212
        %v1244 = vpack.c.b16 %v1215, %v1214
        %v1245 = vpack.c.b16 %v1217, %v1216
        %v1246 = vpack.c.b16 %v1219, %v1218
        %v1247 = vpack.c.b16 %v1221, %v1220
        %v1248 = vpack.c.b16 %v1223, %v1222
        %v1249 = vpack.c.b16 %v1225, %v1224
        %v1250 = vpack.c.b16 %v1227, %v1226
        %v1251 = vpack.c.b16 %v1229, %v1228
        %v1252 = vpack.c.b16 %v1231, %v1230
        %v1253 = vpack.c.b16 %v1233, %v1232
        %v1254 = vpack.c.b16 %v1235, %v1234
        %v1255 = vpack.c.b16 %v1237, %v1236
        %v1256 = vpack.c.b16 %v1239, %v1238
        %v1257 = vpack.c.b16 %v1241, %v1240
        %1258 = vrot.lane.b32.xlu0 %v1242, 72
        %v1259 = vpop.permute.xlu0 %1258
        %1260 = vrot.lane.b32.xlu0 %v1243, 72
        %v1261 = vpop.permute.xlu0 %1260
        %1262 = vrot.lane.b32.xlu0 %v1244, 72
        %v1263 = vpop.permute.xlu0 %1262
        %1264 = vrot.lane.b32.xlu0 %v1245, 72
        %v1265 = vpop.permute.xlu0 %1264
        %1266 = vrot.lane.b32.xlu0 %v1246, 72
        %v1267 = vpop.permute.xlu0 %1266
        %1268 = vrot.lane.b32.xlu0 %v1247, 72
        %v1269 = vpop.permute.xlu0 %1268
        %1270 = vrot.lane.b32.xlu0 %v1248, 72
        %v1271 = vpop.permute.xlu0 %1270
        %1272 = vrot.lane.b32.xlu0 %v1249, 72
        %v1273 = vpop.permute.xlu0 %1272
        %1274 = vrot.lane.b32.xlu0 %v1250, 72
        %v1275 = vpop.permute.xlu0 %1274
        %1276 = vrot.lane.b32.xlu0 %v1251, 72
        %v1277 = vpop.permute.xlu0 %1276
        %1278 = vrot.lane.b32.xlu0 %v1252, 72
        %v1279 = vpop.permute.xlu0 %1278
        %1280 = vrot.lane.b32.xlu0 %v1253, 72
        %v1281 = vpop.permute.xlu0 %1280
        %1282 = vrot.lane.b32.xlu0 %v1254, 72
        %v1283 = vpop.permute.xlu0 %1282
        %1284 = vrot.lane.b32.xlu0 %v1255, 72
        %v1285 = vpop.permute.xlu0 %1284
        %1286 = vrot.lane.b32.xlu0 %v1256, 72
        %v1287 = vpop.permute.xlu0 %1286
        %1288 = vrot.lane.b32.xlu0 %v1257, 72
        %v1289 = vpop.permute.xlu0 %1288
        %vm1306 = vcmask 884288
        %1307 = vst.msk [vmem:[#allocation2] sm:$0xff] %vm1306, %v1259
        %1308 = vst.msk [vmem:[#allocation2 + $0x18] sm:$0xff] %vm1306, %v1261
        %1309 = vst.msk [vmem:[#allocation2 + $0x30] sm:$0xff] %vm1306, %v1263
        %1310 = vst.msk [vmem:[#allocation2 + $0x48] sm:$0xff] %vm1306, %v1265
        %1311 = vst.msk [vmem:[#allocation2 + $0x60] sm:$0xff] %vm1306, %v1267
        %1312 = vst.msk [vmem:[#allocation2 + $0x78] sm:$0xff] %vm1306, %v1269
        %1313 = vst.msk [vmem:[#allocation2 + $0x90] sm:$0xff] %vm1306, %v1271
        %1314 = vst.msk [vmem:[#allocation2 + $0xa8] sm:$0xff] %vm1306, %v1273
        %1315 = vst.msk [vmem:[#allocation2 + $0xc0] sm:$0xff] %vm1306, %v1275
        %1316 = vst.msk [vmem:[#allocation2 + $0xd8] sm:$0xff] %vm1306, %v1277
        %1317 = vst.msk [vmem:[#allocation2 + $0xf0] sm:$0xff] %vm1306, %v1279
        %1318 = vst.msk [vmem:[#allocation2 + $0x108] sm:$0xff] %vm1306, %v1281
        %1319 = vst.msk [vmem:[#allocation2 + $0x120] sm:$0xff] %vm1306, %v1283
        %1320 = vst.msk [vmem:[#allocation2 + $0x138] sm:$0xff] %vm1306, %v1285
        %1321 = vst.msk [vmem:[#allocation2 + $0x150] sm:$0xff] %vm1306, %v1287
        %1322 = vst.msk [vmem:[#allocation2 + $0x168] sm:$0xff] %vm1306, %v1289
        %s1323 = scalar_lea.vmem %s291, 12
        %v1324 = vld [vmem:[%s1323] sm:$0xf]
        %v1325 = vld [vmem:[%s1323 + $0x4] sm:$0xf]
        %v1326 = vld [vmem:[%s1323 + $0xc] sm:$0xf]
        %v1327 = vld [vmem:[%s1323 + $0x10] sm:$0xf]
        %v1328 = vld [vmem:[%s1323 + $0x18] sm:$0xf]
        %v1329 = vld [vmem:[%s1323 + $0x1c] sm:$0xf]
        %v1330 = vld [vmem:[%s1323 + $0x24] sm:$0xf]
        %v1331 = vld [vmem:[%s1323 + $0x28] sm:$0xf]
        %v1332 = vld [vmem:[%s1323 + $0x30] sm:$0xf]
        %v1333 = vld [vmem:[%s1323 + $0x34] sm:$0xf]
        %v1334 = vld [vmem:[%s1323 + $0x3c] sm:$0xf]
        %v1335 = vld [vmem:[%s1323 + $0x40] sm:$0xf]
        %v1336 = vld [vmem:[%s1323 + $0x48] sm:$0xf]
        %v1337 = vld [vmem:[%s1323 + $0x4c] sm:$0xf]
        %v1338 = vld [vmem:[%s1323 + $0x54] sm:$0xf]
        %v1339 = vld [vmem:[%s1323 + $0x58] sm:$0xf]
        %v1340 = vld [vmem:[%s1323 + $0x60] sm:$0xf]
        %v1341 = vld [vmem:[%s1323 + $0x64] sm:$0xf]
        %v1342 = vld [vmem:[%s1323 + $0x6c] sm:$0xf]
        %v1343 = vld [vmem:[%s1323 + $0x70] sm:$0xf]
        %v1344 = vld [vmem:[%s1323 + $0x78] sm:$0xf]
        %v1345 = vld [vmem:[%s1323 + $0x7c] sm:$0xf]
        %v1346 = vld [vmem:[%s1323 + $0x84] sm:$0xf]
        %v1347 = vld [vmem:[%s1323 + $0x88] sm:$0xf]
        %v1348 = vld [vmem:[%s1323 + $0x90] sm:$0xf]
        %v1349 = vld [vmem:[%s1323 + $0x94] sm:$0xf]
        %v1350 = vld [vmem:[%s1323 + $0x9c] sm:$0xf]
        %v1351 = vld [vmem:[%s1323 + $0xa0] sm:$0xf]
        %v1352 = vld [vmem:[%s1323 + $0xa8] sm:$0xf]
        %v1353 = vld [vmem:[%s1323 + $0xac] sm:$0xf]
        %v1354 = vld [vmem:[%s1323 + $0xb4] sm:$0xf]
        %v1355 = vld [vmem:[%s1323 + $0xb8] sm:$0xf]
        %v1388 = vunpack.c.l.b16 %v1324
        %v1389 = vunpack.c.l.b16 %v1325
        %v1390 = vunpack.c.l.b16 %v1326
        %v1391 = vunpack.c.l.b16 %v1327
        %v1392 = vunpack.c.l.b16 %v1328
        %v1393 = vunpack.c.l.b16 %v1329
        %v1394 = vunpack.c.l.b16 %v1330
        %v1395 = vunpack.c.l.b16 %v1331
        %v1396 = vunpack.c.l.b16 %v1332
        %v1397 = vunpack.c.l.b16 %v1333
        %v1398 = vunpack.c.l.b16 %v1334
        %v1399 = vunpack.c.l.b16 %v1335
        %v1400 = vunpack.c.l.b16 %v1336
        %v1401 = vunpack.c.l.b16 %v1337
        %v1402 = vunpack.c.l.b16 %v1338
        %v1403 = vunpack.c.l.b16 %v1339
        %v1404 = vunpack.c.l.b16 %v1340
        %v1405 = vunpack.c.l.b16 %v1341
        %v1406 = vunpack.c.l.b16 %v1342
        %v1407 = vunpack.c.l.b16 %v1343
        %v1408 = vunpack.c.l.b16 %v1344
        %v1409 = vunpack.c.l.b16 %v1345
        %v1410 = vunpack.c.l.b16 %v1346
        %v1411 = vunpack.c.l.b16 %v1347
        %v1412 = vunpack.c.l.b16 %v1348
        %v1413 = vunpack.c.l.b16 %v1349
        %v1414 = vunpack.c.l.b16 %v1350
        %v1415 = vunpack.c.l.b16 %v1351
        %v1416 = vunpack.c.l.b16 %v1352
        %v1417 = vunpack.c.l.b16 %v1353
        %v1418 = vunpack.c.l.b16 %v1354
        %v1419 = vunpack.c.l.b16 %v1355
        %v1420 = vpack.c.b16 %v1389, %v1388
        %v1421 = vpack.c.b16 %v1391, %v1390
        %v1422 = vpack.c.b16 %v1393, %v1392
        %v1423 = vpack.c.b16 %v1395, %v1394
        %v1424 = vpack.c.b16 %v1397, %v1396
        %v1425 = vpack.c.b16 %v1399, %v1398
        %v1426 = vpack.c.b16 %v1401, %v1400
        %v1427 = vpack.c.b16 %v1403, %v1402
        %v1428 = vpack.c.b16 %v1405, %v1404
        %v1429 = vpack.c.b16 %v1407, %v1406
        %v1430 = vpack.c.b16 %v1409, %v1408
        %v1431 = vpack.c.b16 %v1411, %v1410
        %v1432 = vpack.c.b16 %v1413, %v1412
        %v1433 = vpack.c.b16 %v1415, %v1414
        %v1434 = vpack.c.b16 %v1417, %v1416
        %v1435 = vpack.c.b16 %v1419, %v1418
        %1436 = vrot.lane.b32.xlu0 %v1420, 108
        %v1437 = vpop.permute.xlu0 %1436
        %1438 = vrot.lane.b32.xlu0 %v1421, 108
        %v1439 = vpop.permute.xlu0 %1438
        %1440 = vrot.lane.b32.xlu0 %v1422, 108
        %v1441 = vpop.permute.xlu0 %1440
        %1442 = vrot.lane.b32.xlu0 %v1423, 108
        %v1443 = vpop.permute.xlu0 %1442
        %1444 = vrot.lane.b32.xlu0 %v1424, 108
        %v1445 = vpop.permute.xlu0 %1444
        %1446 = vrot.lane.b32.xlu0 %v1425, 108
        %v1447 = vpop.permute.xlu0 %1446
        %1448 = vrot.lane.b32.xlu0 %v1426, 108
        %v1449 = vpop.permute.xlu0 %1448
        %1450 = vrot.lane.b32.xlu0 %v1427, 108
        %v1451 = vpop.permute.xlu0 %1450
        %1452 = vrot.lane.b32.xlu0 %v1428, 108
        %v1453 = vpop.permute.xlu0 %1452
        %1454 = vrot.lane.b32.xlu0 %v1429, 108
        %v1455 = vpop.permute.xlu0 %1454
        %1456 = vrot.lane.b32.xlu0 %v1430, 108
        %v1457 = vpop.permute.xlu0 %1456
        %1458 = vrot.lane.b32.xlu0 %v1431, 108
        %v1459 = vpop.permute.xlu0 %1458
        %1460 = vrot.lane.b32.xlu0 %v1432, 108
        %v1461 = vpop.permute.xlu0 %1460
        %1462 = vrot.lane.b32.xlu0 %v1433, 108
        %v1463 = vpop.permute.xlu0 %1462
        %1464 = vrot.lane.b32.xlu0 %v1434, 108
        %v1465 = vpop.permute.xlu0 %1464
        %1466 = vrot.lane.b32.xlu0 %v1435, 108
        %v1467 = vpop.permute.xlu0 %1466
        %vm1484 = vcmask 1048416
        %1485 = vst.msk [vmem:[#allocation2] sm:$0xff] %vm1484, %v1437
        %vm1486 = vcmask 130048
        %1487 = vst.msk [vmem:[#allocation2 + $0x8] sm:$0xff] %vm1486, %v1437
        %1488 = vst.msk [vmem:[#allocation2 + $0x18] sm:$0xff] %vm1484, %v1439
        %1489 = vst.msk [vmem:[#allocation2 + $0x20] sm:$0xff] %vm1486, %v1439
        %1490 = vst.msk [vmem:[#allocation2 + $0x30] sm:$0xff] %vm1484, %v1441
        %1491 = vst.msk [vmem:[#allocation2 + $0x38] sm:$0xff] %vm1486, %v1441
        %1492 = vst.msk [vmem:[#allocation2 + $0x48] sm:$0xff] %vm1484, %v1443
        %1493 = vst.msk [vmem:[#allocation2 + $0x50] sm:$0xff] %vm1486, %v1443
        %1494 = vst.msk [vmem:[#allocation2 + $0x60] sm:$0xff] %vm1484, %v1445
        %1495 = vst.msk [vmem:[#allocation2 + $0x68] sm:$0xff] %vm1486, %v1445
        %1496 = vst.msk [vmem:[#allocation2 + $0x78] sm:$0xff] %vm1484, %v1447
        %1497 = vst.msk [vmem:[#allocation2 + $0x80] sm:$0xff] %vm1486, %v1447
        %1498 = vst.msk [vmem:[#allocation2 + $0x90] sm:$0xff] %vm1484, %v1449
        %1499 = vst.msk [vmem:[#allocation2 + $0x98] sm:$0xff] %vm1486, %v1449
        %1500 = vst.msk [vmem:[#allocation2 + $0xa8] sm:$0xff] %vm1484, %v1451
        %1501 = vst.msk [vmem:[#allocation2 + $0xb0] sm:$0xff] %vm1486, %v1451
        %1502 = vst.msk [vmem:[#allocation2 + $0xc0] sm:$0xff] %vm1484, %v1453
        %1503 = vst.msk [vmem:[#allocation2 + $0xc8] sm:$0xff] %vm1486, %v1453
        %1504 = vst.msk [vmem:[#allocation2 + $0xd8] sm:$0xff] %vm1484, %v1455
        %1505 = vst.msk [vmem:[#allocation2 + $0xe0] sm:$0xff] %vm1486, %v1455
        %1506 = vst.msk [vmem:[#allocation2 + $0xf0] sm:$0xff] %vm1484, %v1457
        %1507 = vst.msk [vmem:[#allocation2 + $0xf8] sm:$0xff] %vm1486, %v1457
        %1508 = vst.msk [vmem:[#allocation2 + $0x108] sm:$0xff] %vm1484, %v1459
        %1509 = vst.msk [vmem:[#allocation2 + $0x110] sm:$0xff] %vm1486, %v1459
        %1510 = vst.msk [vmem:[#allocation2 + $0x120] sm:$0xff] %vm1484, %v1461
        %1511 = vst.msk [vmem:[#allocation2 + $0x128] sm:$0xff] %vm1486, %v1461
        %1512 = vst.msk [vmem:[#allocation2 + $0x138] sm:$0xff] %vm1484, %v1463
        %1513 = vst.msk [vmem:[#allocation2 + $0x140] sm:$0xff] %vm1486, %v1463
        %1514 = vst.msk [vmem:[#allocation2 + $0x150] sm:$0xff] %vm1484, %v1465
        %1515 = vst.msk [vmem:[#allocation2 + $0x158] sm:$0xff] %vm1486, %v1465
        %1516 = vst.msk [vmem:[#allocation2 + $0x168] sm:$0xff] %vm1484, %v1467
        %1517 = vst.msk [vmem:[#allocation2 + $0x170] sm:$0xff] %vm1486, %v1467
        %v1518 = vld [vmem:[%s1323] sm:$0xf]
        %v1519 = vld [vmem:[%s1323 + $0x4] sm:$0xf]
        %v1520 = vld [vmem:[%s1323 + $0x8] sm:$0x1]
        %v1521 = vld [vmem:[%s1323 + $0xc] sm:$0xf]
        %v1522 = vld [vmem:[%s1323 + $0x10] sm:$0xf]
        %v1523 = vld [vmem:[%s1323 + $0x14] sm:$0x1]
        %v1524 = vld [vmem:[%s1323 + $0x18] sm:$0xf]
        %v1525 = vld [vmem:[%s1323 + $0x1c] sm:$0xf]
        %v1526 = vld [vmem:[%s1323 + $0x20] sm:$0x1]
        %v1527 = vld [vmem:[%s1323 + $0x24] sm:$0xf]
        %v1528 = vld [vmem:[%s1323 + $0x28] sm:$0xf]
        %v1529 = vld [vmem:[%s1323 + $0x2c] sm:$0x1]
        %v1530 = vld [vmem:[%s1323 + $0x30] sm:$0xf]
        %v1531 = vld [vmem:[%s1323 + $0x34] sm:$0xf]
        %v1532 = vld [vmem:[%s1323 + $0x38] sm:$0x1]
        %v1533 = vld [vmem:[%s1323 + $0x3c] sm:$0xf]
        %v1534 = vld [vmem:[%s1323 + $0x40] sm:$0xf]
        %v1535 = vld [vmem:[%s1323 + $0x44] sm:$0x1]
        %v1536 = vld [vmem:[%s1323 + $0x48] sm:$0xf]
        %v1537 = vld [vmem:[%s1323 + $0x4c] sm:$0xf]
        %v1538 = vld [vmem:[%s1323 + $0x50] sm:$0x1]
        %v1539 = vld [vmem:[%s1323 + $0x54] sm:$0xf]
        %v1540 = vld [vmem:[%s1323 + $0x58] sm:$0xf]
        %v1541 = vld [vmem:[%s1323 + $0x5c] sm:$0x1]
        %v1542 = vld [vmem:[%s1323 + $0x60] sm:$0xf]
        %v1543 = vld [vmem:[%s1323 + $0x64] sm:$0xf]
        %v1544 = vld [vmem:[%s1323 + $0x68] sm:$0x1]
        %v1545 = vld [vmem:[%s1323 + $0x6c] sm:$0xf]
        %v1546 = vld [vmem:[%s1323 + $0x70] sm:$0xf]
        %v1547 = vld [vmem:[%s1323 + $0x74] sm:$0x1]
        %v1548 = vld [vmem:[%s1323 + $0x78] sm:$0xf]
        %v1549 = vld [vmem:[%s1323 + $0x7c] sm:$0xf]
        %v1550 = vld [vmem:[%s1323 + $0x80] sm:$0x1]
        %v1551 = vld [vmem:[%s1323 + $0x84] sm:$0xf]
        %v1552 = vld [vmem:[%s1323 + $0x88] sm:$0xf]
        %v1553 = vld [vmem:[%s1323 + $0x8c] sm:$0x1]
        %v1554 = vld [vmem:[%s1323 + $0x90] sm:$0xf]
        %v1555 = vld [vmem:[%s1323 + $0x94] sm:$0xf]
        %v1556 = vld [vmem:[%s1323 + $0x98] sm:$0x1]
        %v1557 = vld [vmem:[%s1323 + $0x9c] sm:$0xf]
        %v1558 = vld [vmem:[%s1323 + $0xa0] sm:$0xf]
        %v1559 = vld [vmem:[%s1323 + $0xa4] sm:$0x1]
        %v1560 = vld [vmem:[%s1323 + $0xa8] sm:$0xf]
        %v1561 = vld [vmem:[%s1323 + $0xac] sm:$0xf]
        %v1562 = vld [vmem:[%s1323 + $0xb0] sm:$0x1]
        %v1563 = vld [vmem:[%s1323 + $0xb4] sm:$0xf]
        %v1564 = vld [vmem:[%s1323 + $0xb8] sm:$0xf]
        %v1565 = vld [vmem:[%s1323 + $0xbc] sm:$0x1]
        %v1567 = vshrl.u32 %v1518, 16
        %v1569 = vrot.slane %v1567, 4
        %v1570 = vshll.u32 %v1518, 16
        %v1572 = vrot.slane %v1570, 5
        %v1573 = vor.u32 %v1569, %v1572
        %v1574 = vrot.slane %v1573, 4
        %v1576 = vshll.u32 %v1519, 16
        %v1578 = vrot.slane %v1576, 5
        %v1579 = vsel %vm501, %v1574, %v1578
        %v1580 = vshrl.u32 %v1519, 16
        %v1582 = vrot.slane %v1580, 4
        %v1583 = vor.u32 %v1582, %v1578
        %v1584 = vrot.slane %v1583, 4
        %v1586 = vshll.u32 %v1520, 16
        %v1588 = vrot.slane %v1586, 5
        %v1589 = vsel %vm501, %v1584, %v1588
        %v1591 = vshrl.u32 %v1521, 16
        %v1593 = vrot.slane %v1591, 4
        %v1594 = vshll.u32 %v1521, 16
        %v1596 = vrot.slane %v1594, 5
        %v1597 = vor.u32 %v1593, %v1596
        %v1598 = vrot.slane %v1597, 4
        %v1600 = vshll.u32 %v1522, 16
        %v1602 = vrot.slane %v1600, 5
        %v1603 = vsel %vm501, %v1598, %v1602
        %v1604 = vshrl.u32 %v1522, 16
        %v1606 = vrot.slane %v1604, 4
        %v1607 = vor.u32 %v1606, %v1602
        %v1608 = vrot.slane %v1607, 4
        %v1610 = vshll.u32 %v1523, 16
        %v1612 = vrot.slane %v1610, 5
        %v1613 = vsel %vm501, %v1608, %v1612
        %v1615 = vshrl.u32 %v1524, 16
        %v1617 = vrot.slane %v1615, 4
        %v1618 = vshll.u32 %v1524, 16
        %v1620 = vrot.slane %v1618, 5
        %v1621 = vor.u32 %v1617, %v1620
        %v1622 = vrot.slane %v1621, 4
        %v1624 = vshll.u32 %v1525, 16
        %v1626 = vrot.slane %v1624, 5
        %v1627 = vsel %vm501, %v1622, %v1626
        %v1628 = vshrl.u32 %v1525, 16
        %v1630 = vrot.slane %v1628, 4
        %v1631 = vor.u32 %v1630, %v1626
        %v1632 = vrot.slane %v1631, 4
        %v1634 = vshll.u32 %v1526, 16
        %v1636 = vrot.slane %v1634, 5
        %v1637 = vsel %vm501, %v1632, %v1636
        %v1639 = vshrl.u32 %v1527, 16
        %v1641 = vrot.slane %v1639, 4
        %v1642 = vshll.u32 %v1527, 16
        %v1644 = vrot.slane %v1642, 5
        %v1645 = vor.u32 %v1641, %v1644
        %v1646 = vrot.slane %v1645, 4
        %v1648 = vshll.u32 %v1528, 16
        %v1650 = vrot.slane %v1648, 5
        %v1651 = vsel %vm501, %v1646, %v1650
        %v1652 = vshrl.u32 %v1528, 16
        %v1654 = vrot.slane %v1652, 4
        %v1655 = vor.u32 %v1654, %v1650
        %v1656 = vrot.slane %v1655, 4
        %v1658 = vshll.u32 %v1529, 16
        %v1660 = vrot.slane %v1658, 5
        %v1661 = vsel %vm501, %v1656, %v1660
        %v1663 = vshrl.u32 %v1530, 16
        %v1665 = vrot.slane %v1663, 4
        %v1666 = vshll.u32 %v1530, 16
        %v1668 = vrot.slane %v1666, 5
        %v1669 = vor.u32 %v1665, %v1668
        %v1670 = vrot.slane %v1669, 4
        %v1672 = vshll.u32 %v1531, 16
        %v1674 = vrot.slane %v1672, 5
        %v1675 = vsel %vm501, %v1670, %v1674
        %v1676 = vshrl.u32 %v1531, 16
        %v1678 = vrot.slane %v1676, 4
        %v1679 = vor.u32 %v1678, %v1674
        %v1680 = vrot.slane %v1679, 4
        %v1682 = vshll.u32 %v1532, 16
        %v1684 = vrot.slane %v1682, 5
        %v1685 = vsel %vm501, %v1680, %v1684
        %v1687 = vshrl.u32 %v1533, 16
        %v1689 = vrot.slane %v1687, 4
        %v1690 = vshll.u32 %v1533, 16
        %v1692 = vrot.slane %v1690, 5
        %v1693 = vor.u32 %v1689, %v1692
        %v1694 = vrot.slane %v1693, 4
        %v1696 = vshll.u32 %v1534, 16
        %v1698 = vrot.slane %v1696, 5
        %v1699 = vsel %vm501, %v1694, %v1698
        %v1700 = vshrl.u32 %v1534, 16
        %v1702 = vrot.slane %v1700, 4
        %v1703 = vor.u32 %v1702, %v1698
        %v1704 = vrot.slane %v1703, 4
        %v1706 = vshll.u32 %v1535, 16
        %v1708 = vrot.slane %v1706, 5
        %v1709 = vsel %vm501, %v1704, %v1708
        %v1711 = vshrl.u32 %v1536, 16
        %v1713 = vrot.slane %v1711, 4
        %v1714 = vshll.u32 %v1536, 16
        %v1716 = vrot.slane %v1714, 5
        %v1717 = vor.u32 %v1713, %v1716
        %v1718 = vrot.slane %v1717, 4
        %v1720 = vshll.u32 %v1537, 16
        %v1722 = vrot.slane %v1720, 5
        %v1723 = vsel %vm501, %v1718, %v1722
        %v1724 = vshrl.u32 %v1537, 16
        %v1726 = vrot.slane %v1724, 4
        %v1727 = vor.u32 %v1726, %v1722
        %v1728 = vrot.slane %v1727, 4
        %v1730 = vshll.u32 %v1538, 16
        %v1732 = vrot.slane %v1730, 5
        %v1733 = vsel %vm501, %v1728, %v1732
        %v1735 = vshrl.u32 %v1539, 16
        %v1737 = vrot.slane %v1735, 4
        %v1738 = vshll.u32 %v1539, 16
        %v1740 = vrot.slane %v1738, 5
        %v1741 = vor.u32 %v1737, %v1740
        %v1742 = vrot.slane %v1741, 4
        %v1744 = vshll.u32 %v1540, 16
        %v1746 = vrot.slane %v1744, 5
        %v1747 = vsel %vm501, %v1742, %v1746
        %v1748 = vshrl.u32 %v1540, 16
        %v1750 = vrot.slane %v1748, 4
        %v1751 = vor.u32 %v1750, %v1746
        %v1752 = vrot.slane %v1751, 4
        %v1754 = vshll.u32 %v1541, 16
        %v1756 = vrot.slane %v1754, 5
        %v1757 = vsel %vm501, %v1752, %v1756
        %v1759 = vshrl.u32 %v1542, 16
        %v1761 = vrot.slane %v1759, 4
        %v1762 = vshll.u32 %v1542, 16
        %v1764 = vrot.slane %v1762, 5
        %v1765 = vor.u32 %v1761, %v1764
        %v1766 = vrot.slane %v1765, 4
        %v1768 = vshll.u32 %v1543, 16
        %v1770 = vrot.slane %v1768, 5
        %v1771 = vsel %vm501, %v1766, %v1770
        %v1772 = vshrl.u32 %v1543, 16
        %v1774 = vrot.slane %v1772, 4
        %v1775 = vor.u32 %v1774, %v1770
        %v1776 = vrot.slane %v1775, 4
        %v1778 = vshll.u32 %v1544, 16
        %v1780 = vrot.slane %v1778, 5
        %v1781 = vsel %vm501, %v1776, %v1780
        %v1783 = vshrl.u32 %v1545, 16
        %v1785 = vrot.slane %v1783, 4
        %v1786 = vshll.u32 %v1545, 16
        %v1788 = vrot.slane %v1786, 5
        %v1789 = vor.u32 %v1785, %v1788
        %v1790 = vrot.slane %v1789, 4
        %v1792 = vshll.u32 %v1546, 16
        %v1794 = vrot.slane %v1792, 5
        %v1795 = vsel %vm501, %v1790, %v1794
        %v1796 = vshrl.u32 %v1546, 16
        %v1798 = vrot.slane %v1796, 4
        %v1799 = vor.u32 %v1798, %v1794
        %v1800 = vrot.slane %v1799, 4
        %v1802 = vshll.u32 %v1547, 16
        %v1804 = vrot.slane %v1802, 5
        %v1805 = vsel %vm501, %v1800, %v1804
        %v1807 = vshrl.u32 %v1548, 16
        %v1809 = vrot.slane %v1807, 4
        %v1810 = vshll.u32 %v1548, 16
        %v1812 = vrot.slane %v1810, 5
        %v1813 = vor.u32 %v1809, %v1812
        %v1814 = vrot.slane %v1813, 4
        %v1816 = vshll.u32 %v1549, 16
        %v1818 = vrot.slane %v1816, 5
        %v1819 = vsel %vm501, %v1814, %v1818
        %v1820 = vshrl.u32 %v1549, 16
        %v1822 = vrot.slane %v1820, 4
        %v1823 = vor.u32 %v1822, %v1818
        %v1824 = vrot.slane %v1823, 4
        %v1826 = vshll.u32 %v1550, 16
        %v1828 = vrot.slane %v1826, 5
        %v1829 = vsel %vm501, %v1824, %v1828
        %v1831 = vshrl.u32 %v1551, 16
        %v1833 = vrot.slane %v1831, 4
        %v1834 = vshll.u32 %v1551, 16
        %v1836 = vrot.slane %v1834, 5
        %v1837 = vor.u32 %v1833, %v1836
        %v1838 = vrot.slane %v1837, 4
        %v1840 = vshll.u32 %v1552, 16
        %v1842 = vrot.slane %v1840, 5
        %v1843 = vsel %vm501, %v1838, %v1842
        %v1844 = vshrl.u32 %v1552, 16
        %v1846 = vrot.slane %v1844, 4
        %v1847 = vor.u32 %v1846, %v1842
        %v1848 = vrot.slane %v1847, 4
        %v1850 = vshll.u32 %v1553, 16
        %v1852 = vrot.slane %v1850, 5
        %v1853 = vsel %vm501, %v1848, %v1852
        %v1855 = vshrl.u32 %v1554, 16
        %v1857 = vrot.slane %v1855, 4
        %v1858 = vshll.u32 %v1554, 16
        %v1860 = vrot.slane %v1858, 5
        %v1861 = vor.u32 %v1857, %v1860
        %v1862 = vrot.slane %v1861, 4
        %v1864 = vshll.u32 %v1555, 16
        %v1866 = vrot.slane %v1864, 5
        %v1867 = vsel %vm501, %v1862, %v1866
        %v1868 = vshrl.u32 %v1555, 16
        %v1870 = vrot.slane %v1868, 4
        %v1871 = vor.u32 %v1870, %v1866
        %v1872 = vrot.slane %v1871, 4
        %v1874 = vshll.u32 %v1556, 16
        %v1876 = vrot.slane %v1874, 5
        %v1877 = vsel %vm501, %v1872, %v1876
        %v1879 = vshrl.u32 %v1557, 16
        %v1881 = vrot.slane %v1879, 4
        %v1882 = vshll.u32 %v1557, 16
        %v1884 = vrot.slane %v1882, 5
        %v1885 = vor.u32 %v1881, %v1884
        %v1886 = vrot.slane %v1885, 4
        %v1888 = vshll.u32 %v1558, 16
        %v1890 = vrot.slane %v1888, 5
        %v1891 = vsel %vm501, %v1886, %v1890
        %v1892 = vshrl.u32 %v1558, 16
        %v1894 = vrot.slane %v1892, 4
        %v1895 = vor.u32 %v1894, %v1890
        %v1896 = vrot.slane %v1895, 4
        %v1898 = vshll.u32 %v1559, 16
        %v1900 = vrot.slane %v1898, 5
        %v1901 = vsel %vm501, %v1896, %v1900
        %v1903 = vshrl.u32 %v1560, 16
        %v1905 = vrot.slane %v1903, 4
        %v1906 = vshll.u32 %v1560, 16
        %v1908 = vrot.slane %v1906, 5
        %v1909 = vor.u32 %v1905, %v1908
        %v1910 = vrot.slane %v1909, 4
        %v1912 = vshll.u32 %v1561, 16
        %v1914 = vrot.slane %v1912, 5
        %v1915 = vsel %vm501, %v1910, %v1914
        %v1916 = vshrl.u32 %v1561, 16
        %v1918 = vrot.slane %v1916, 4
        %v1919 = vor.u32 %v1918, %v1914
        %v1920 = vrot.slane %v1919, 4
        %v1922 = vshll.u32 %v1562, 16
        %v1924 = vrot.slane %v1922, 5
        %v1925 = vsel %vm501, %v1920, %v1924
        %v1927 = vshrl.u32 %v1563, 16
        %v1929 = vrot.slane %v1927, 4
        %v1930 = vshll.u32 %v1563, 16
        %v1932 = vrot.slane %v1930, 5
        %v1933 = vor.u32 %v1929, %v1932
        %v1934 = vrot.slane %v1933, 4
        %v1936 = vshll.u32 %v1564, 16
        %v1938 = vrot.slane %v1936, 5
        %v1939 = vsel %vm501, %v1934, %v1938
        %v1940 = vshrl.u32 %v1564, 16
        %v1942 = vrot.slane %v1940, 4
        %v1943 = vor.u32 %v1942, %v1938
        %v1944 = vrot.slane %v1943, 4
        %v1946 = vshll.u32 %v1565, 16
        %v1948 = vrot.slane %v1946, 5
        %v1949 = vsel %vm501, %v1944, %v1948
        %v1950 = vunpack.c.l.b16 %v1579
        %v1951 = vunpack.c.l.b16 %v1589
        %v1952 = vunpack.c.l.b16 %v1603
        %v1953 = vunpack.c.l.b16 %v1613
        %v1954 = vunpack.c.l.b16 %v1627
        %v1955 = vunpack.c.l.b16 %v1637
        %v1956 = vunpack.c.l.b16 %v1651
        %v1957 = vunpack.c.l.b16 %v1661
        %v1958 = vunpack.c.l.b16 %v1675
        %v1959 = vunpack.c.l.b16 %v1685
        %v1960 = vunpack.c.l.b16 %v1699
        %v1961 = vunpack.c.l.b16 %v1709
        %v1962 = vunpack.c.l.b16 %v1723
        %v1963 = vunpack.c.l.b16 %v1733
        %v1964 = vunpack.c.l.b16 %v1747
        %v1965 = vunpack.c.l.b16 %v1757
        %v1966 = vunpack.c.l.b16 %v1771
        %v1967 = vunpack.c.l.b16 %v1781
        %v1968 = vunpack.c.l.b16 %v1795
        %v1969 = vunpack.c.l.b16 %v1805
        %v1970 = vunpack.c.l.b16 %v1819
        %v1971 = vunpack.c.l.b16 %v1829
        %v1972 = vunpack.c.l.b16 %v1843
        %v1973 = vunpack.c.l.b16 %v1853
        %v1974 = vunpack.c.l.b16 %v1867
        %v1975 = vunpack.c.l.b16 %v1877
        %v1976 = vunpack.c.l.b16 %v1891
        %v1977 = vunpack.c.l.b16 %v1901
        %v1978 = vunpack.c.l.b16 %v1915
        %v1979 = vunpack.c.l.b16 %v1925
        %v1980 = vunpack.c.l.b16 %v1939
        %v1981 = vunpack.c.l.b16 %v1949
        %v1982 = vpack.c.b16 %v1951, %v1950
        %v1983 = vpack.c.b16 %v1953, %v1952
        %v1984 = vpack.c.b16 %v1955, %v1954
        %v1985 = vpack.c.b16 %v1957, %v1956
        %v1986 = vpack.c.b16 %v1959, %v1958
        %v1987 = vpack.c.b16 %v1961, %v1960
        %v1988 = vpack.c.b16 %v1963, %v1962
        %v1989 = vpack.c.b16 %v1965, %v1964
        %v1990 = vpack.c.b16 %v1967, %v1966
        %v1991 = vpack.c.b16 %v1969, %v1968
        %v1992 = vpack.c.b16 %v1971, %v1970
        %v1993 = vpack.c.b16 %v1973, %v1972
        %v1994 = vpack.c.b16 %v1975, %v1974
        %v1995 = vpack.c.b16 %v1977, %v1976
        %v1996 = vpack.c.b16 %v1979, %v1978
        %v1997 = vpack.c.b16 %v1981, %v1980
        %1998 = vrot.lane.b32.xlu0 %v1982, 16
        %v1999 = vpop.permute.xlu0 %1998
        %2000 = vrot.lane.b32.xlu0 %v1983, 16
        %v2001 = vpop.permute.xlu0 %2000
        %2002 = vrot.lane.b32.xlu0 %v1984, 16
        %v2003 = vpop.permute.xlu0 %2002
        %2004 = vrot.lane.b32.xlu0 %v1985, 16
        %v2005 = vpop.permute.xlu0 %2004
        %2006 = vrot.lane.b32.xlu0 %v1986, 16
        %v2007 = vpop.permute.xlu0 %2006
        %2008 = vrot.lane.b32.xlu0 %v1987, 16
        %v2009 = vpop.permute.xlu0 %2008
        %2010 = vrot.lane.b32.xlu0 %v1988, 16
        %v2011 = vpop.permute.xlu0 %2010
        %2012 = vrot.lane.b32.xlu0 %v1989, 16
        %v2013 = vpop.permute.xlu0 %2012
        %2014 = vrot.lane.b32.xlu0 %v1990, 16
        %v2015 = vpop.permute.xlu0 %2014
        %2016 = vrot.lane.b32.xlu0 %v1991, 16
        %v2017 = vpop.permute.xlu0 %2016
        %2018 = vrot.lane.b32.xlu0 %v1992, 16
        %v2019 = vpop.permute.xlu0 %2018
        %2020 = vrot.lane.b32.xlu0 %v1993, 16
        %v2021 = vpop.permute.xlu0 %2020
        %2022 = vrot.lane.b32.xlu0 %v1994, 16
        %v2023 = vpop.permute.xlu0 %2022
        %2024 = vrot.lane.b32.xlu0 %v1995, 16
        %v2025 = vpop.permute.xlu0 %2024
        %2026 = vrot.lane.b32.xlu0 %v1996, 16
        %v2027 = vpop.permute.xlu0 %2026
        %2028 = vrot.lane.b32.xlu0 %v1997, 16
        %v2029 = vpop.permute.xlu0 %2028
        %vm2046 = vcmask 425088
        %2047 = vst.msk [vmem:[#allocation2 + $0x8] sm:$0xff] %vm2046, %v1999
        %2048 = vst.msk [vmem:[#allocation2 + $0x20] sm:$0xff] %vm2046, %v2001
        %2049 = vst.msk [vmem:[#allocation2 + $0x38] sm:$0xff] %vm2046, %v2003
        %2050 = vst.msk [vmem:[#allocation2 + $0x50] sm:$0xff] %vm2046, %v2005
        %2051 = vst.msk [vmem:[#allocation2 + $0x68] sm:$0xff] %vm2046, %v2007
        %2052 = vst.msk [vmem:[#allocation2 + $0x80] sm:$0xff] %vm2046, %v2009
        %2053 = vst.msk [vmem:[#allocation2 + $0x98] sm:$0xff] %vm2046, %v2011
        %2054 = vst.msk [vmem:[#allocation2 + $0xb0] sm:$0xff] %vm2046, %v2013
        %2055 = vst.msk [vmem:[#allocation2 + $0xc8] sm:$0xff] %vm2046, %v2015
        %2056 = vst.msk [vmem:[#allocation2 + $0xe0] sm:$0xff] %vm2046, %v2017
        %2057 = vst.msk [vmem:[#allocation2 + $0xf8] sm:$0xff] %vm2046, %v2019
        %2058 = vst.msk [vmem:[#allocation2 + $0x110] sm:$0xff] %vm2046, %v2021
        %2059 = vst.msk [vmem:[#allocation2 + $0x128] sm:$0xff] %vm2046, %v2023
        %2060 = vst.msk [vmem:[#allocation2 + $0x140] sm:$0xff] %vm2046, %v2025
        %2061 = vst.msk [vmem:[#allocation2 + $0x158] sm:$0xff] %vm2046, %v2027
        %2062 = vst.msk [vmem:[#allocation2 + $0x170] sm:$0xff] %vm2046, %v2029
        %v2063 = vld [vmem:[%s1323] sm:$0xe]
        %v2064 = vld [vmem:[%s1323 + $0x4] sm:$0xf]
        %v2065 = vld [vmem:[%s1323 + $0x8] sm:$0x1]
        %v2066 = vld [vmem:[%s1323 + $0xc] sm:$0xe]
        %v2067 = vld [vmem:[%s1323 + $0x10] sm:$0xf]
        %v2068 = vld [vmem:[%s1323 + $0x14] sm:$0x1]
        %v2069 = vld [vmem:[%s1323 + $0x18] sm:$0xe]
        %v2070 = vld [vmem:[%s1323 + $0x1c] sm:$0xf]
        %v2071 = vld [vmem:[%s1323 + $0x20] sm:$0x1]
        %v2072 = vld [vmem:[%s1323 + $0x24] sm:$0xe]
        %v2073 = vld [vmem:[%s1323 + $0x28] sm:$0xf]
        %v2074 = vld [vmem:[%s1323 + $0x2c] sm:$0x1]
        %v2075 = vld [vmem:[%s1323 + $0x30] sm:$0xe]
        %v2076 = vld [vmem:[%s1323 + $0x34] sm:$0xf]
        %v2077 = vld [vmem:[%s1323 + $0x38] sm:$0x1]
        %v2078 = vld [vmem:[%s1323 + $0x3c] sm:$0xe]
        %v2079 = vld [vmem:[%s1323 + $0x40] sm:$0xf]
        %v2080 = vld [vmem:[%s1323 + $0x44] sm:$0x1]
        %v2081 = vld [vmem:[%s1323 + $0x48] sm:$0xe]
        %v2082 = vld [vmem:[%s1323 + $0x4c] sm:$0xf]
        %v2083 = vld [vmem:[%s1323 + $0x50] sm:$0x1]
        %v2084 = vld [vmem:[%s1323 + $0x54] sm:$0xe]
        %v2085 = vld [vmem:[%s1323 + $0x58] sm:$0xf]
        %v2086 = vld [vmem:[%s1323 + $0x5c] sm:$0x1]
        %v2087 = vld [vmem:[%s1323 + $0x60] sm:$0xe]
        %v2088 = vld [vmem:[%s1323 + $0x64] sm:$0xf]
        %v2089 = vld [vmem:[%s1323 + $0x68] sm:$0x1]
        %v2090 = vld [vmem:[%s1323 + $0x6c] sm:$0xe]
        %v2091 = vld [vmem:[%s1323 + $0x70] sm:$0xf]
        %v2092 = vld [vmem:[%s1323 + $0x74] sm:$0x1]
        %v2093 = vld [vmem:[%s1323 + $0x78] sm:$0xe]
        %v2094 = vld [vmem:[%s1323 + $0x7c] sm:$0xf]
        %v2095 = vld [vmem:[%s1323 + $0x80] sm:$0x1]
        %v2096 = vld [vmem:[%s1323 + $0x84] sm:$0xe]
        %v2097 = vld [vmem:[%s1323 + $0x88] sm:$0xf]
        %v2098 = vld [vmem:[%s1323 + $0x8c] sm:$0x1]
        %v2099 = vld [vmem:[%s1323 + $0x90] sm:$0xe]
        %v2100 = vld [vmem:[%s1323 + $0x94] sm:$0xf]
        %v2101 = vld [vmem:[%s1323 + $0x98] sm:$0x1]
        %v2102 = vld [vmem:[%s1323 + $0x9c] sm:$0xe]
        %v2103 = vld [vmem:[%s1323 + $0xa0] sm:$0xf]
        %v2104 = vld [vmem:[%s1323 + $0xa4] sm:$0x1]
        %v2105 = vld [vmem:[%s1323 + $0xa8] sm:$0xe]
        %v2106 = vld [vmem:[%s1323 + $0xac] sm:$0xf]
        %v2107 = vld [vmem:[%s1323 + $0xb0] sm:$0x1]
        %v2108 = vld [vmem:[%s1323 + $0xb4] sm:$0xe]
        %v2109 = vld [vmem:[%s1323 + $0xb8] sm:$0xf]
        %v2110 = vld [vmem:[%s1323 + $0xbc] sm:$0x1]
        %v2159 = vrot.slane %v2063, 5
        %v2160 = vrot.slane %v2159, 4
        %v2161 = vrot.slane %v2064, 5
        %v2162 = vsel %vm1097, %v2160, %v2161
        %v2163 = vrot.slane %v2161, 4
        %v2164 = vrot.slane %v2065, 5
        %v2165 = vsel %vm1097, %v2163, %v2164
        %v2166 = vrot.slane %v2066, 5
        %v2167 = vrot.slane %v2166, 4
        %v2168 = vrot.slane %v2067, 5
        %v2169 = vsel %vm1097, %v2167, %v2168
        %v2170 = vrot.slane %v2168, 4
        %v2171 = vrot.slane %v2068, 5
        %v2172 = vsel %vm1097, %v2170, %v2171
        %v2173 = vrot.slane %v2069, 5
        %v2174 = vrot.slane %v2173, 4
        %v2175 = vrot.slane %v2070, 5
        %v2176 = vsel %vm1097, %v2174, %v2175
        %v2177 = vrot.slane %v2175, 4
        %v2178 = vrot.slane %v2071, 5
        %v2179 = vsel %vm1097, %v2177, %v2178
        %v2180 = vrot.slane %v2072, 5
        %v2181 = vrot.slane %v2180, 4
        %v2182 = vrot.slane %v2073, 5
        %v2183 = vsel %vm1097, %v2181, %v2182
        %v2184 = vrot.slane %v2182, 4
        %v2185 = vrot.slane %v2074, 5
        %v2186 = vsel %vm1097, %v2184, %v2185
        %v2187 = vrot.slane %v2075, 5
        %v2188 = vrot.slane %v2187, 4
        %v2189 = vrot.slane %v2076, 5
        %v2190 = vsel %vm1097, %v2188, %v2189
        %v2191 = vrot.slane %v2189, 4
        %v2192 = vrot.slane %v2077, 5
        %v2193 = vsel %vm1097, %v2191, %v2192
        %v2194 = vrot.slane %v2078, 5
        %v2195 = vrot.slane %v2194, 4
        %v2196 = vrot.slane %v2079, 5
        %v2197 = vsel %vm1097, %v2195, %v2196
        %v2198 = vrot.slane %v2196, 4
        %v2199 = vrot.slane %v2080, 5
        %v2200 = vsel %vm1097, %v2198, %v2199
        %v2201 = vrot.slane %v2081, 5
        %v2202 = vrot.slane %v2201, 4
        %v2203 = vrot.slane %v2082, 5
        %v2204 = vsel %vm1097, %v2202, %v2203
        %v2205 = vrot.slane %v2203, 4
        %v2206 = vrot.slane %v2083, 5
        %v2207 = vsel %vm1097, %v2205, %v2206
        %v2208 = vrot.slane %v2084, 5
        %v2209 = vrot.slane %v2208, 4
        %v2210 = vrot.slane %v2085, 5
        %v2211 = vsel %vm1097, %v2209, %v2210
        %v2212 = vrot.slane %v2210, 4
        %v2213 = vrot.slane %v2086, 5
        %v2214 = vsel %vm1097, %v2212, %v2213
        %v2215 = vrot.slane %v2087, 5
        %v2216 = vrot.slane %v2215, 4
        %v2217 = vrot.slane %v2088, 5
        %v2218 = vsel %vm1097, %v2216, %v2217
        %v2219 = vrot.slane %v2217, 4
        %v2220 = vrot.slane %v2089, 5
        %v2221 = vsel %vm1097, %v2219, %v2220
        %v2222 = vrot.slane %v2090, 5
        %v2223 = vrot.slane %v2222, 4
        %v2224 = vrot.slane %v2091, 5
        %v2225 = vsel %vm1097, %v2223, %v2224
        %v2226 = vrot.slane %v2224, 4
        %v2227 = vrot.slane %v2092, 5
        %v2228 = vsel %vm1097, %v2226, %v2227
        %v2229 = vrot.slane %v2093, 5
        %v2230 = vrot.slane %v2229, 4
        %v2231 = vrot.slane %v2094, 5
        %v2232 = vsel %vm1097, %v2230, %v2231
        %v2233 = vrot.slane %v2231, 4
        %v2234 = vrot.slane %v2095, 5
        %v2235 = vsel %vm1097, %v2233, %v2234
        %v2236 = vrot.slane %v2096, 5
        %v2237 = vrot.slane %v2236, 4
        %v2238 = vrot.slane %v2097, 5
        %v2239 = vsel %vm1097, %v2237, %v2238
        %v2240 = vrot.slane %v2238, 4
        %v2241 = vrot.slane %v2098, 5
        %v2242 = vsel %vm1097, %v2240, %v2241
        %v2243 = vrot.slane %v2099, 5
        %v2244 = vrot.slane %v2243, 4
        %v2245 = vrot.slane %v2100, 5
        %v2246 = vsel %vm1097, %v2244, %v2245
        %v2247 = vrot.slane %v2245, 4
        %v2248 = vrot.slane %v2101, 5
        %v2249 = vsel %vm1097, %v2247, %v2248
        %v2250 = vrot.slane %v2102, 5
        %v2251 = vrot.slane %v2250, 4
        %v2252 = vrot.slane %v2103, 5
        %v2253 = vsel %vm1097, %v2251, %v2252
        %v2254 = vrot.slane %v2252, 4
        %v2255 = vrot.slane %v2104, 5
        %v2256 = vsel %vm1097, %v2254, %v2255
        %v2257 = vrot.slane %v2105, 5
        %v2258 = vrot.slane %v2257, 4
        %v2259 = vrot.slane %v2106, 5
        %v2260 = vsel %vm1097, %v2258, %v2259
        %v2261 = vrot.slane %v2259, 4
        %v2262 = vrot.slane %v2107, 5
        %v2263 = vsel %vm1097, %v2261, %v2262
        %v2264 = vrot.slane %v2108, 5
        %v2265 = vrot.slane %v2264, 4
        %v2266 = vrot.slane %v2109, 5
        %v2267 = vsel %vm1097, %v2265, %v2266
        %v2268 = vrot.slane %v2266, 4
        %v2269 = vrot.slane %v2110, 5
        %v2270 = vsel %vm1097, %v2268, %v2269
        %v2271 = vunpack.c.l.b16 %v2162
        %v2272 = vunpack.c.l.b16 %v2165
        %v2273 = vunpack.c.l.b16 %v2169
        %v2274 = vunpack.c.l.b16 %v2172
        %v2275 = vunpack.c.l.b16 %v2176
        %v2276 = vunpack.c.l.b16 %v2179
        %v2277 = vunpack.c.l.b16 %v2183
        %v2278 = vunpack.c.l.b16 %v2186
        %v2279 = vunpack.c.l.b16 %v2190
        %v2280 = vunpack.c.l.b16 %v2193
        %v2281 = vunpack.c.l.b16 %v2197
        %v2282 = vunpack.c.l.b16 %v2200
        %v2283 = vunpack.c.l.b16 %v2204
        %v2284 = vunpack.c.l.b16 %v2207
        %v2285 = vunpack.c.l.b16 %v2211
        %v2286 = vunpack.c.l.b16 %v2214
        %v2287 = vunpack.c.l.b16 %v2218
        %v2288 = vunpack.c.l.b16 %v2221
        %v2289 = vunpack.c.l.b16 %v2225
        %v2290 = vunpack.c.l.b16 %v2228
        %v2291 = vunpack.c.l.b16 %v2232
        %v2292 = vunpack.c.l.b16 %v2235
        %v2293 = vunpack.c.l.b16 %v2239
        %v2294 = vunpack.c.l.b16 %v2242
        %v2295 = vunpack.c.l.b16 %v2246
        %v2296 = vunpack.c.l.b16 %v2249
        %v2297 = vunpack.c.l.b16 %v2253
        %v2298 = vunpack.c.l.b16 %v2256
        %v2299 = vunpack.c.l.b16 %v2260
        %v2300 = vunpack.c.l.b16 %v2263
        %v2301 = vunpack.c.l.b16 %v2267
        %v2302 = vunpack.c.l.b16 %v2270
        %v2303 = vpack.c.b16 %v2272, %v2271
        %v2304 = vpack.c.b16 %v2274, %v2273
        %v2305 = vpack.c.b16 %v2276, %v2275
        %v2306 = vpack.c.b16 %v2278, %v2277
        %v2307 = vpack.c.b16 %v2280, %v2279
        %v2308 = vpack.c.b16 %v2282, %v2281
        %v2309 = vpack.c.b16 %v2284, %v2283
        %v2310 = vpack.c.b16 %v2286, %v2285
        %v2311 = vpack.c.b16 %v2288, %v2287
        %v2312 = vpack.c.b16 %v2290, %v2289
        %v2313 = vpack.c.b16 %v2292, %v2291
        %v2314 = vpack.c.b16 %v2294, %v2293
        %v2315 = vpack.c.b16 %v2296, %v2295
        %v2316 = vpack.c.b16 %v2298, %v2297
        %v2317 = vpack.c.b16 %v2300, %v2299
        %v2318 = vpack.c.b16 %v2302, %v2301
        %2319 = vrot.lane.b32.xlu0 %v2303, 52
        %v2320 = vpop.permute.xlu0 %2319
        %2321 = vrot.lane.b32.xlu0 %v2304, 52
        %v2322 = vpop.permute.xlu0 %2321
        %2323 = vrot.lane.b32.xlu0 %v2305, 52
        %v2324 = vpop.permute.xlu0 %2323
        %2325 = vrot.lane.b32.xlu0 %v2306, 52
        %v2326 = vpop.permute.xlu0 %2325
        %2327 = vrot.lane.b32.xlu0 %v2307, 52
        %v2328 = vpop.permute.xlu0 %2327
        %2329 = vrot.lane.b32.xlu0 %v2308, 52
        %v2330 = vpop.permute.xlu0 %2329
        %2331 = vrot.lane.b32.xlu0 %v2309, 52
        %v2332 = vpop.permute.xlu0 %2331
        %2333 = vrot.lane.b32.xlu0 %v2310, 52
        %v2334 = vpop.permute.xlu0 %2333
        %2335 = vrot.lane.b32.xlu0 %v2311, 52
        %v2336 = vpop.permute.xlu0 %2335
        %2337 = vrot.lane.b32.xlu0 %v2312, 52
        %v2338 = vpop.permute.xlu0 %2337
        %2339 = vrot.lane.b32.xlu0 %v2313, 52
        %v2340 = vpop.permute.xlu0 %2339
        %2341 = vrot.lane.b32.xlu0 %v2314, 52
        %v2342 = vpop.permute.xlu0 %2341
        %2343 = vrot.lane.b32.xlu0 %v2315, 52
        %v2344 = vpop.permute.xlu0 %2343
        %2345 = vrot.lane.b32.xlu0 %v2316, 52
        %v2346 = vpop.permute.xlu0 %2345
        %2347 = vrot.lane.b32.xlu0 %v2317, 52
        %v2348 = vpop.permute.xlu0 %2347
        %2349 = vrot.lane.b32.xlu0 %v2318, 52
        %v2350 = vpop.permute.xlu0 %2349
        %vm2367 = vcmask 720288
        %2368 = vst.msk [vmem:[#allocation2 + $0x8] sm:$0xff] %vm2367, %v2320
        %2369 = vst.msk [vmem:[#allocation2 + $0x20] sm:$0xff] %vm2367, %v2322
        %2370 = vst.msk [vmem:[#allocation2 + $0x38] sm:$0xff] %vm2367, %v2324
        %2371 = vst.msk [vmem:[#allocation2 + $0x50] sm:$0xff] %vm2367, %v2326
        %2372 = vst.msk [vmem:[#allocation2 + $0x68] sm:$0xff] %vm2367, %v2328
        %2373 = vst.msk [vmem:[#allocation2 + $0x80] sm:$0xff] %vm2367, %v2330
        %2374 = vst.msk [vmem:[#allocation2 + $0x98] sm:$0xff] %vm2367, %v2332
        %2375 = vst.msk [vmem:[#allocation2 + $0xb0] sm:$0xff] %vm2367, %v2334
        %2376 = vst.msk [vmem:[#allocation2 + $0xc8] sm:$0xff] %vm2367, %v2336
        %2377 = vst.msk [vmem:[#allocation2 + $0xe0] sm:$0xff] %vm2367, %v2338
        %2378 = vst.msk [vmem:[#allocation2 + $0xf8] sm:$0xff] %vm2367, %v2340
        %2379 = vst.msk [vmem:[#allocation2 + $0x110] sm:$0xff] %vm2367, %v2342
        %2380 = vst.msk [vmem:[#allocation2 + $0x128] sm:$0xff] %vm2367, %v2344
        %2381 = vst.msk [vmem:[#allocation2 + $0x140] sm:$0xff] %vm2367, %v2346
        %2382 = vst.msk [vmem:[#allocation2 + $0x158] sm:$0xff] %vm2367, %v2348
        %2383 = vst.msk [vmem:[#allocation2 + $0x170] sm:$0xff] %vm2367, %v2350
        %s2384 = scalar_lea.vmem %s291, 24
        %v2385 = vld [vmem:[%s2384] sm:$0xf]
        %v2386 = vld [vmem:[%s2384 + $0x4] sm:$0xf]
        %v2387 = vld [vmem:[%s2384 + $0xc] sm:$0xf]
        %v2388 = vld [vmem:[%s2384 + $0x10] sm:$0xf]
        %v2389 = vld [vmem:[%s2384 + $0x18] sm:$0xf]
        %v2390 = vld [vmem:[%s2384 + $0x1c] sm:$0xf]
        %v2391 = vld [vmem:[%s2384 + $0x24] sm:$0xf]
        %v2392 = vld [vmem:[%s2384 + $0x28] sm:$0xf]
        %v2393 = vld [vmem:[%s2384 + $0x30] sm:$0xf]
        %v2394 = vld [vmem:[%s2384 + $0x34] sm:$0xf]
        %v2395 = vld [vmem:[%s2384 + $0x3c] sm:$0xf]
        %v2396 = vld [vmem:[%s2384 + $0x40] sm:$0xf]
        %v2397 = vld [vmem:[%s2384 + $0x48] sm:$0xf]
        %v2398 = vld [vmem:[%s2384 + $0x4c] sm:$0xf]
        %v2399 = vld [vmem:[%s2384 + $0x54] sm:$0xf]
        %v2400 = vld [vmem:[%s2384 + $0x58] sm:$0xf]
        %v2401 = vld [vmem:[%s2384 + $0x60] sm:$0xf]
        %v2402 = vld [vmem:[%s2384 + $0x64] sm:$0xf]
        %v2403 = vld [vmem:[%s2384 + $0x6c] sm:$0xf]
        %v2404 = vld [vmem:[%s2384 + $0x70] sm:$0xf]
        %v2405 = vld [vmem:[%s2384 + $0x78] sm:$0xf]
        %v2406 = vld [vmem:[%s2384 + $0x7c] sm:$0xf]
        %v2407 = vld [vmem:[%s2384 + $0x84] sm:$0xf]
        %v2408 = vld [vmem:[%s2384 + $0x88] sm:$0xf]
        %v2409 = vld [vmem:[%s2384 + $0x90] sm:$0xf]
        %v2410 = vld [vmem:[%s2384 + $0x94] sm:$0xf]
        %v2411 = vld [vmem:[%s2384 + $0x9c] sm:$0xf]
        %v2412 = vld [vmem:[%s2384 + $0xa0] sm:$0xf]
        %v2413 = vld [vmem:[%s2384 + $0xa8] sm:$0xf]
        %v2414 = vld [vmem:[%s2384 + $0xac] sm:$0xf]
        %v2415 = vld [vmem:[%s2384 + $0xb4] sm:$0xf]
        %v2416 = vld [vmem:[%s2384 + $0xb8] sm:$0xf]
        %v2449 = vunpack.c.l.b16 %v2385
        %v2450 = vunpack.c.l.b16 %v2386
        %v2451 = vunpack.c.l.b16 %v2387
        %v2452 = vunpack.c.l.b16 %v2388
        %v2453 = vunpack.c.l.b16 %v2389
        %v2454 = vunpack.c.l.b16 %v2390
        %v2455 = vunpack.c.l.b16 %v2391
        %v2456 = vunpack.c.l.b16 %v2392
        %v2457 = vunpack.c.l.b16 %v2393
        %v2458 = vunpack.c.l.b16 %v2394
        %v2459 = vunpack.c.l.b16 %v2395
        %v2460 = vunpack.c.l.b16 %v2396
        %v2461 = vunpack.c.l.b16 %v2397
        %v2462 = vunpack.c.l.b16 %v2398
        %v2463 = vunpack.c.l.b16 %v2399
        %v2464 = vunpack.c.l.b16 %v2400
        %v2465 = vunpack.c.l.b16 %v2401
        %v2466 = vunpack.c.l.b16 %v2402
        %v2467 = vunpack.c.l.b16 %v2403
        %v2468 = vunpack.c.l.b16 %v2404
        %v2469 = vunpack.c.l.b16 %v2405
        %v2470 = vunpack.c.l.b16 %v2406
        %v2471 = vunpack.c.l.b16 %v2407
        %v2472 = vunpack.c.l.b16 %v2408
        %v2473 = vunpack.c.l.b16 %v2409
        %v2474 = vunpack.c.l.b16 %v2410
        %v2475 = vunpack.c.l.b16 %v2411
        %v2476 = vunpack.c.l.b16 %v2412
        %v2477 = vunpack.c.l.b16 %v2413
        %v2478 = vunpack.c.l.b16 %v2414
        %v2479 = vunpack.c.l.b16 %v2415
        %v2480 = vunpack.c.l.b16 %v2416
        %v2481 = vpack.c.b16 %v2450, %v2449
        %v2482 = vpack.c.b16 %v2452, %v2451
        %v2483 = vpack.c.b16 %v2454, %v2453
        %v2484 = vpack.c.b16 %v2456, %v2455
        %v2485 = vpack.c.b16 %v2458, %v2457
        %v2486 = vpack.c.b16 %v2460, %v2459
        %v2487 = vpack.c.b16 %v2462, %v2461
        %v2488 = vpack.c.b16 %v2464, %v2463
        %v2489 = vpack.c.b16 %v2466, %v2465
        %v2490 = vpack.c.b16 %v2468, %v2467
        %v2491 = vpack.c.b16 %v2470, %v2469
        %v2492 = vpack.c.b16 %v2472, %v2471
        %v2493 = vpack.c.b16 %v2474, %v2473
        %v2494 = vpack.c.b16 %v2476, %v2475
        %v2495 = vpack.c.b16 %v2478, %v2477
        %v2496 = vpack.c.b16 %v2480, %v2479
        %2497 = vrot.lane.b32.xlu0 %v2481, 88
        %v2498 = vpop.permute.xlu0 %2497
        %2499 = vrot.lane.b32.xlu0 %v2482, 88
        %v2500 = vpop.permute.xlu0 %2499
        %2501 = vrot.lane.b32.xlu0 %v2483, 88
        %v2502 = vpop.permute.xlu0 %2501
        %2503 = vrot.lane.b32.xlu0 %v2484, 88
        %v2504 = vpop.permute.xlu0 %2503
        %2505 = vrot.lane.b32.xlu0 %v2485, 88
        %v2506 = vpop.permute.xlu0 %2505
        %2507 = vrot.lane.b32.xlu0 %v2486, 88
        %v2508 = vpop.permute.xlu0 %2507
        %2509 = vrot.lane.b32.xlu0 %v2487, 88
        %v2510 = vpop.permute.xlu0 %2509
        %2511 = vrot.lane.b32.xlu0 %v2488, 88
        %v2512 = vpop.permute.xlu0 %2511
        %2513 = vrot.lane.b32.xlu0 %v2489, 88
        %v2514 = vpop.permute.xlu0 %2513
        %2515 = vrot.lane.b32.xlu0 %v2490, 88
        %v2516 = vpop.permute.xlu0 %2515
        %2517 = vrot.lane.b32.xlu0 %v2491, 88
        %v2518 = vpop.permute.xlu0 %2517
        %2519 = vrot.lane.b32.xlu0 %v2492, 88
        %v2520 = vpop.permute.xlu0 %2519
        %2521 = vrot.lane.b32.xlu0 %v2493, 88
        %v2522 = vpop.permute.xlu0 %2521
        %2523 = vrot.lane.b32.xlu0 %v2494, 88
        %v2524 = vpop.permute.xlu0 %2523
        %2525 = vrot.lane.b32.xlu0 %v2495, 88
        %v2526 = vpop.permute.xlu0 %2525
        %2527 = vrot.lane.b32.xlu0 %v2496, 88
        %v2528 = vpop.permute.xlu0 %2527
        %vm2545 = vcmask 1015488
        %2546 = vst.msk [vmem:[#allocation2 + $0x8] sm:$0xff] %vm2545, %v2498
        %2547 = vst.msk [vmem:[#allocation2 + $0x20] sm:$0xff] %vm2545, %v2500
        %2548 = vst.msk [vmem:[#allocation2 + $0x38] sm:$0xff] %vm2545, %v2502
        %2549 = vst.msk [vmem:[#allocation2 + $0x50] sm:$0xff] %vm2545, %v2504
        %2550 = vst.msk [vmem:[#allocation2 + $0x68] sm:$0xff] %vm2545, %v2506
        %2551 = vst.msk [vmem:[#allocation2 + $0x80] sm:$0xff] %vm2545, %v2508
        %2552 = vst.msk [vmem:[#allocation2 + $0x98] sm:$0xff] %vm2545, %v2510
        %2553 = vst.msk [vmem:[#allocation2 + $0xb0] sm:$0xff] %vm2545, %v2512
        %2554 = vst.msk [vmem:[#allocation2 + $0xc8] sm:$0xff] %vm2545, %v2514
        %2555 = vst.msk [vmem:[#allocation2 + $0xe0] sm:$0xff] %vm2545, %v2516
        %2556 = vst.msk [vmem:[#allocation2 + $0xf8] sm:$0xff] %vm2545, %v2518
        %2557 = vst.msk [vmem:[#allocation2 + $0x110] sm:$0xff] %vm2545, %v2520
        %2558 = vst.msk [vmem:[#allocation2 + $0x128] sm:$0xff] %vm2545, %v2522
        %2559 = vst.msk [vmem:[#allocation2 + $0x140] sm:$0xff] %vm2545, %v2524
        %2560 = vst.msk [vmem:[#allocation2 + $0x158] sm:$0xff] %vm2545, %v2526
        %2561 = vst.msk [vmem:[#allocation2 + $0x170] sm:$0xff] %vm2545, %v2528
        %v2562 = vld [vmem:[%s2384] sm:$0xf]
        %v2563 = vld [vmem:[%s2384 + $0x4] sm:$0xf]
        %v2564 = vld [vmem:[%s2384 + $0x8] sm:$0x1]
        %v2565 = vld [vmem:[%s2384 + $0xc] sm:$0xf]
        %v2566 = vld [vmem:[%s2384 + $0x10] sm:$0xf]
        %v2567 = vld [vmem:[%s2384 + $0x14] sm:$0x1]
        %v2568 = vld [vmem:[%s2384 + $0x18] sm:$0xf]
        %v2569 = vld [vmem:[%s2384 + $0x1c] sm:$0xf]
        %v2570 = vld [vmem:[%s2384 + $0x20] sm:$0x1]
        %v2571 = vld [vmem:[%s2384 + $0x24] sm:$0xf]
        %v2572 = vld [vmem:[%s2384 + $0x28] sm:$0xf]
        %v2573 = vld [vmem:[%s2384 + $0x2c] sm:$0x1]
        %v2574 = vld [vmem:[%s2384 + $0x30] sm:$0xf]
        %v2575 = vld [vmem:[%s2384 + $0x34] sm:$0xf]
        %v2576 = vld [vmem:[%s2384 + $0x38] sm:$0x1]
        %v2577 = vld [vmem:[%s2384 + $0x3c] sm:$0xf]
        %v2578 = vld [vmem:[%s2384 + $0x40] sm:$0xf]
        %v2579 = vld [vmem:[%s2384 + $0x44] sm:$0x1]
        %v2580 = vld [vmem:[%s2384 + $0x48] sm:$0xf]
        %v2581 = vld [vmem:[%s2384 + $0x4c] sm:$0xf]
        %v2582 = vld [vmem:[%s2384 + $0x50] sm:$0x1]
        %v2583 = vld [vmem:[%s2384 + $0x54] sm:$0xf]
        %v2584 = vld [vmem:[%s2384 + $0x58] sm:$0xf]
        %v2585 = vld [vmem:[%s2384 + $0x5c] sm:$0x1]
        %v2586 = vld [vmem:[%s2384 + $0x60] sm:$0xf]
        %v2587 = vld [vmem:[%s2384 + $0x64] sm:$0xf]
        %v2588 = vld [vmem:[%s2384 + $0x68] sm:$0x1]
        %v2589 = vld [vmem:[%s2384 + $0x6c] sm:$0xf]
        %v2590 = vld [vmem:[%s2384 + $0x70] sm:$0xf]
        %v2591 = vld [vmem:[%s2384 + $0x74] sm:$0x1]
        %v2592 = vld [vmem:[%s2384 + $0x78] sm:$0xf]
        %v2593 = vld [vmem:[%s2384 + $0x7c] sm:$0xf]
        %v2594 = vld [vmem:[%s2384 + $0x80] sm:$0x1]
        %v2595 = vld [vmem:[%s2384 + $0x84] sm:$0xf]
        %v2596 = vld [vmem:[%s2384 + $0x88] sm:$0xf]
        %v2597 = vld [vmem:[%s2384 + $0x8c] sm:$0x1]
        %v2598 = vld [vmem:[%s2384 + $0x90] sm:$0xf]
        %v2599 = vld [vmem:[%s2384 + $0x94] sm:$0xf]
        %v2600 = vld [vmem:[%s2384 + $0x98] sm:$0x1]
        %v2601 = vld [vmem:[%s2384 + $0x9c] sm:$0xf]
        %v2602 = vld [vmem:[%s2384 + $0xa0] sm:$0xf]
        %v2603 = vld [vmem:[%s2384 + $0xa4] sm:$0x1]
        %v2604 = vld [vmem:[%s2384 + $0xa8] sm:$0xf]
        %v2605 = vld [vmem:[%s2384 + $0xac] sm:$0xf]
        %v2606 = vld [vmem:[%s2384 + $0xb0] sm:$0x1]
        %v2607 = vld [vmem:[%s2384 + $0xb4] sm:$0xf]
        %v2608 = vld [vmem:[%s2384 + $0xb8] sm:$0xf]
        %v2609 = vld [vmem:[%s2384 + $0xbc] sm:$0x1]
        %v2611 = vshrl.u32 %v2562, 16
        %v2613 = vrot.slane %v2611, 4
        %v2614 = vshll.u32 %v2562, 16
        %v2616 = vrot.slane %v2614, 5
        %v2617 = vor.u32 %v2613, %v2616
        %v2618 = vrot.slane %v2617, 4
        %v2620 = vshll.u32 %v2563, 16
        %v2622 = vrot.slane %v2620, 5
        %v2623 = vsel %vm501, %v2618, %v2622
        %v2624 = vshrl.u32 %v2563, 16
        %v2626 = vrot.slane %v2624, 4
        %v2627 = vor.u32 %v2626, %v2622
        %v2628 = vrot.slane %v2627, 4
        %v2630 = vshll.u32 %v2564, 16
        %v2632 = vrot.slane %v2630, 5
        %v2633 = vsel %vm501, %v2628, %v2632
        %v2635 = vshrl.u32 %v2565, 16
        %v2637 = vrot.slane %v2635, 4
        %v2638 = vshll.u32 %v2565, 16
        %v2640 = vrot.slane %v2638, 5
        %v2641 = vor.u32 %v2637, %v2640
        %v2642 = vrot.slane %v2641, 4
        %v2644 = vshll.u32 %v2566, 16
        %v2646 = vrot.slane %v2644, 5
        %v2647 = vsel %vm501, %v2642, %v2646
        %v2648 = vshrl.u32 %v2566, 16
        %v2650 = vrot.slane %v2648, 4
        %v2651 = vor.u32 %v2650, %v2646
        %v2652 = vrot.slane %v2651, 4
        %v2654 = vshll.u32 %v2567, 16
        %v2656 = vrot.slane %v2654, 5
        %v2657 = vsel %vm501, %v2652, %v2656
        %v2659 = vshrl.u32 %v2568, 16
        %v2661 = vrot.slane %v2659, 4
        %v2662 = vshll.u32 %v2568, 16
        %v2664 = vrot.slane %v2662, 5
        %v2665 = vor.u32 %v2661, %v2664
        %v2666 = vrot.slane %v2665, 4
        %v2668 = vshll.u32 %v2569, 16
        %v2670 = vrot.slane %v2668, 5
        %v2671 = vsel %vm501, %v2666, %v2670
        %v2672 = vshrl.u32 %v2569, 16
        %v2674 = vrot.slane %v2672, 4
        %v2675 = vor.u32 %v2674, %v2670
        %v2676 = vrot.slane %v2675, 4
        %v2678 = vshll.u32 %v2570, 16
        %v2680 = vrot.slane %v2678, 5
        %v2681 = vsel %vm501, %v2676, %v2680
        %v2683 = vshrl.u32 %v2571, 16
        %v2685 = vrot.slane %v2683, 4
        %v2686 = vshll.u32 %v2571, 16
        %v2688 = vrot.slane %v2686, 5
        %v2689 = vor.u32 %v2685, %v2688
        %v2690 = vrot.slane %v2689, 4
        %v2692 = vshll.u32 %v2572, 16
        %v2694 = vrot.slane %v2692, 5
        %v2695 = vsel %vm501, %v2690, %v2694
        %v2696 = vshrl.u32 %v2572, 16
        %v2698 = vrot.slane %v2696, 4
        %v2699 = vor.u32 %v2698, %v2694
        %v2700 = vrot.slane %v2699, 4
        %v2702 = vshll.u32 %v2573, 16
        %v2704 = vrot.slane %v2702, 5
        %v2705 = vsel %vm501, %v2700, %v2704
        %v2707 = vshrl.u32 %v2574, 16
        %v2709 = vrot.slane %v2707, 4
        %v2710 = vshll.u32 %v2574, 16
        %v2712 = vrot.slane %v2710, 5
        %v2713 = vor.u32 %v2709, %v2712
        %v2714 = vrot.slane %v2713, 4
        %v2716 = vshll.u32 %v2575, 16
        %v2718 = vrot.slane %v2716, 5
        %v2719 = vsel %vm501, %v2714, %v2718
        %v2720 = vshrl.u32 %v2575, 16
        %v2722 = vrot.slane %v2720, 4
        %v2723 = vor.u32 %v2722, %v2718
        %v2724 = vrot.slane %v2723, 4
        %v2726 = vshll.u32 %v2576, 16
        %v2728 = vrot.slane %v2726, 5
        %v2729 = vsel %vm501, %v2724, %v2728
        %v2731 = vshrl.u32 %v2577, 16
        %v2733 = vrot.slane %v2731, 4
        %v2734 = vshll.u32 %v2577, 16
        %v2736 = vrot.slane %v2734, 5
        %v2737 = vor.u32 %v2733, %v2736
        %v2738 = vrot.slane %v2737, 4
        %v2740 = vshll.u32 %v2578, 16
        %v2742 = vrot.slane %v2740, 5
        %v2743 = vsel %vm501, %v2738, %v2742
        %v2744 = vshrl.u32 %v2578, 16
        %v2746 = vrot.slane %v2744, 4
        %v2747 = vor.u32 %v2746, %v2742
        %v2748 = vrot.slane %v2747, 4
        %v2750 = vshll.u32 %v2579, 16
        %v2752 = vrot.slane %v2750, 5
        %v2753 = vsel %vm501, %v2748, %v2752
        %v2755 = vshrl.u32 %v2580, 16
        %v2757 = vrot.slane %v2755, 4
        %v2758 = vshll.u32 %v2580, 16
        %v2760 = vrot.slane %v2758, 5
        %v2761 = vor.u32 %v2757, %v2760
        %v2762 = vrot.slane %v2761, 4
        %v2764 = vshll.u32 %v2581, 16
        %v2766 = vrot.slane %v2764, 5
        %v2767 = vsel %vm501, %v2762, %v2766
        %v2768 = vshrl.u32 %v2581, 16
        %v2770 = vrot.slane %v2768, 4
        %v2771 = vor.u32 %v2770, %v2766
        %v2772 = vrot.slane %v2771, 4
        %v2774 = vshll.u32 %v2582, 16
        %v2776 = vrot.slane %v2774, 5
        %v2777 = vsel %vm501, %v2772, %v2776
        %v2779 = vshrl.u32 %v2583, 16
        %v2781 = vrot.slane %v2779, 4
        %v2782 = vshll.u32 %v2583, 16
        %v2784 = vrot.slane %v2782, 5
        %v2785 = vor.u32 %v2781, %v2784
        %v2786 = vrot.slane %v2785, 4
        %v2788 = vshll.u32 %v2584, 16
        %v2790 = vrot.slane %v2788, 5
        %v2791 = vsel %vm501, %v2786, %v2790
        %v2792 = vshrl.u32 %v2584, 16
        %v2794 = vrot.slane %v2792, 4
        %v2795 = vor.u32 %v2794, %v2790
        %v2796 = vrot.slane %v2795, 4
        %v2798 = vshll.u32 %v2585, 16
        %v2800 = vrot.slane %v2798, 5
        %v2801 = vsel %vm501, %v2796, %v2800
        %v2803 = vshrl.u32 %v2586, 16
        %v2805 = vrot.slane %v2803, 4
        %v2806 = vshll.u32 %v2586, 16
        %v2808 = vrot.slane %v2806, 5
        %v2809 = vor.u32 %v2805, %v2808
        %v2810 = vrot.slane %v2809, 4
        %v2812 = vshll.u32 %v2587, 16
        %v2814 = vrot.slane %v2812, 5
        %v2815 = vsel %vm501, %v2810, %v2814
        %v2816 = vshrl.u32 %v2587, 16
        %v2818 = vrot.slane %v2816, 4
        %v2819 = vor.u32 %v2818, %v2814
        %v2820 = vrot.slane %v2819, 4
        %v2822 = vshll.u32 %v2588, 16
        %v2824 = vrot.slane %v2822, 5
        %v2825 = vsel %vm501, %v2820, %v2824
        %v2827 = vshrl.u32 %v2589, 16
        %v2829 = vrot.slane %v2827, 4
        %v2830 = vshll.u32 %v2589, 16
        %v2832 = vrot.slane %v2830, 5
        %v2833 = vor.u32 %v2829, %v2832
        %v2834 = vrot.slane %v2833, 4
        %v2836 = vshll.u32 %v2590, 16
        %v2838 = vrot.slane %v2836, 5
        %v2839 = vsel %vm501, %v2834, %v2838
        %v2840 = vshrl.u32 %v2590, 16
        %v2842 = vrot.slane %v2840, 4
        %v2843 = vor.u32 %v2842, %v2838
        %v2844 = vrot.slane %v2843, 4
        %v2846 = vshll.u32 %v2591, 16
        %v2848 = vrot.slane %v2846, 5
        %v2849 = vsel %vm501, %v2844, %v2848
        %v2851 = vshrl.u32 %v2592, 16
        %v2853 = vrot.slane %v2851, 4
        %v2854 = vshll.u32 %v2592, 16
        %v2856 = vrot.slane %v2854, 5
        %v2857 = vor.u32 %v2853, %v2856
        %v2858 = vrot.slane %v2857, 4
        %v2860 = vshll.u32 %v2593, 16
        %v2862 = vrot.slane %v2860, 5
        %v2863 = vsel %vm501, %v2858, %v2862
        %v2864 = vshrl.u32 %v2593, 16
        %v2866 = vrot.slane %v2864, 4
        %v2867 = vor.u32 %v2866, %v2862
        %v2868 = vrot.slane %v2867, 4
        %v2870 = vshll.u32 %v2594, 16
        %v2872 = vrot.slane %v2870, 5
        %v2873 = vsel %vm501, %v2868, %v2872
        %v2875 = vshrl.u32 %v2595, 16
        %v2877 = vrot.slane %v2875, 4
        %v2878 = vshll.u32 %v2595, 16
        %v2880 = vrot.slane %v2878, 5
        %v2881 = vor.u32 %v2877, %v2880
        %v2882 = vrot.slane %v2881, 4
        %v2884 = vshll.u32 %v2596, 16
        %v2886 = vrot.slane %v2884, 5
        %v2887 = vsel %vm501, %v2882, %v2886
        %v2888 = vshrl.u32 %v2596, 16
        %v2890 = vrot.slane %v2888, 4
        %v2891 = vor.u32 %v2890, %v2886
        %v2892 = vrot.slane %v2891, 4
        %v2894 = vshll.u32 %v2597, 16
        %v2896 = vrot.slane %v2894, 5
        %v2897 = vsel %vm501, %v2892, %v2896
        %v2899 = vshrl.u32 %v2598, 16
        %v2901 = vrot.slane %v2899, 4
        %v2902 = vshll.u32 %v2598, 16
        %v2904 = vrot.slane %v2902, 5
        %v2905 = vor.u32 %v2901, %v2904
        %v2906 = vrot.slane %v2905, 4
        %v2908 = vshll.u32 %v2599, 16
        %v2910 = vrot.slane %v2908, 5
        %v2911 = vsel %vm501, %v2906, %v2910
        %v2912 = vshrl.u32 %v2599, 16
        %v2914 = vrot.slane %v2912, 4
        %v2915 = vor.u32 %v2914, %v2910
        %v2916 = vrot.slane %v2915, 4
        %v2918 = vshll.u32 %v2600, 16
        %v2920 = vrot.slane %v2918, 5
        %v2921 = vsel %vm501, %v2916, %v2920
        %v2923 = vshrl.u32 %v2601, 16
        %v2925 = vrot.slane %v2923, 4
        %v2926 = vshll.u32 %v2601, 16
        %v2928 = vrot.slane %v2926, 5
        %v2929 = vor.u32 %v2925, %v2928
        %v2930 = vrot.slane %v2929, 4
        %v2932 = vshll.u32 %v2602, 16
        %v2934 = vrot.slane %v2932, 5
        %v2935 = vsel %vm501, %v2930, %v2934
        %v2936 = vshrl.u32 %v2602, 16
        %v2938 = vrot.slane %v2936, 4
        %v2939 = vor.u32 %v2938, %v2934
        %v2940 = vrot.slane %v2939, 4
        %v2942 = vshll.u32 %v2603, 16
        %v2944 = vrot.slane %v2942, 5
        %v2945 = vsel %vm501, %v2940, %v2944
        %v2947 = vshrl.u32 %v2604, 16
        %v2949 = vrot.slane %v2947, 4
        %v2950 = vshll.u32 %v2604, 16
        %v2952 = vrot.slane %v2950, 5
        %v2953 = vor.u32 %v2949, %v2952
        %v2954 = vrot.slane %v2953, 4
        %v2956 = vshll.u32 %v2605, 16
        %v2958 = vrot.slane %v2956, 5
        %v2959 = vsel %vm501, %v2954, %v2958
        %v2960 = vshrl.u32 %v2605, 16
        %v2962 = vrot.slane %v2960, 4
        %v2963 = vor.u32 %v2962, %v2958
        %v2964 = vrot.slane %v2963, 4
        %v2966 = vshll.u32 %v2606, 16
        %v2968 = vrot.slane %v2966, 5
        %v2969 = vsel %vm501, %v2964, %v2968
        %v2971 = vshrl.u32 %v2607, 16
        %v2973 = vrot.slane %v2971, 4
        %v2974 = vshll.u32 %v2607, 16
        %v2976 = vrot.slane %v2974, 5
        %v2977 = vor.u32 %v2973, %v2976
        %v2978 = vrot.slane %v2977, 4
        %v2980 = vshll.u32 %v2608, 16
        %v2982 = vrot.slane %v2980, 5
        %v2983 = vsel %vm501, %v2978, %v2982
        %v2984 = vshrl.u32 %v2608, 16
        %v2986 = vrot.slane %v2984, 4
        %v2987 = vor.u32 %v2986, %v2982
        %v2988 = vrot.slane %v2987, 4
        %v2990 = vshll.u32 %v2609, 16
        %v2992 = vrot.slane %v2990, 5
        %v2993 = vsel %vm501, %v2988, %v2992
        %v2994 = vunpack.c.l.b16 %v2623
        %v2995 = vunpack.c.l.b16 %v2633
        %v2996 = vunpack.c.l.b16 %v2647
        %v2997 = vunpack.c.l.b16 %v2657
        %v2998 = vunpack.c.l.b16 %v2671
        %v2999 = vunpack.c.l.b16 %v2681
        %v3000 = vunpack.c.l.b16 %v2695
        %v3001 = vunpack.c.l.b16 %v2705
        %v3002 = vunpack.c.l.b16 %v2719
        %v3003 = vunpack.c.l.b16 %v2729
        %v3004 = vunpack.c.l.b16 %v2743
        %v3005 = vunpack.c.l.b16 %v2753
        %v3006 = vunpack.c.l.b16 %v2767
        %v3007 = vunpack.c.l.b16 %v2777
        %v3008 = vunpack.c.l.b16 %v2791
        %v3009 = vunpack.c.l.b16 %v2801
        %v3010 = vunpack.c.l.b16 %v2815
        %v3011 = vunpack.c.l.b16 %v2825
        %v3012 = vunpack.c.l.b16 %v2839
        %v3013 = vunpack.c.l.b16 %v2849
        %v3014 = vunpack.c.l.b16 %v2863
        %v3015 = vunpack.c.l.b16 %v2873
        %v3016 = vunpack.c.l.b16 %v2887
        %v3017 = vunpack.c.l.b16 %v2897
        %v3018 = vunpack.c.l.b16 %v2911
        %v3019 = vunpack.c.l.b16 %v2921
        %v3020 = vunpack.c.l.b16 %v2935
        %v3021 = vunpack.c.l.b16 %v2945
        %v3022 = vunpack.c.l.b16 %v2959
        %v3023 = vunpack.c.l.b16 %v2969
        %v3024 = vunpack.c.l.b16 %v2983
        %v3025 = vunpack.c.l.b16 %v2993
        %v3026 = vpack.c.b16 %v2995, %v2994
        %v3027 = vpack.c.b16 %v2997, %v2996
        %v3028 = vpack.c.b16 %v2999, %v2998
        %v3029 = vpack.c.b16 %v3001, %v3000
        %v3030 = vpack.c.b16 %v3003, %v3002
        %v3031 = vpack.c.b16 %v3005, %v3004
        %v3032 = vpack.c.b16 %v3007, %v3006
        %v3033 = vpack.c.b16 %v3009, %v3008
        %v3034 = vpack.c.b16 %v3011, %v3010
        %v3035 = vpack.c.b16 %v3013, %v3012
        %v3036 = vpack.c.b16 %v3015, %v3014
        %v3037 = vpack.c.b16 %v3017, %v3016
        %v3038 = vpack.c.b16 %v3019, %v3018
        %v3039 = vpack.c.b16 %v3021, %v3020
        %v3040 = vpack.c.b16 %v3023, %v3022
        %v3041 = vpack.c.b16 %v3025, %v3024
        %3042 = vrot.lane.b32.xlu0 %v3026, 124
        %v3043 = vpop.permute.xlu0 %3042
        %3044 = vrot.lane.b32.xlu0 %v3027, 124
        %v3045 = vpop.permute.xlu0 %3044
        %3046 = vrot.lane.b32.xlu0 %v3028, 124
        %v3047 = vpop.permute.xlu0 %3046
        %3048 = vrot.lane.b32.xlu0 %v3029, 124
        %v3049 = vpop.permute.xlu0 %3048
        %3050 = vrot.lane.b32.xlu0 %v3030, 124
        %v3051 = vpop.permute.xlu0 %3050
        %3052 = vrot.lane.b32.xlu0 %v3031, 124
        %v3053 = vpop.permute.xlu0 %3052
        %3054 = vrot.lane.b32.xlu0 %v3032, 124
        %v3055 = vpop.permute.xlu0 %3054
        %3056 = vrot.lane.b32.xlu0 %v3033, 124
        %v3057 = vpop.permute.xlu0 %3056
        %3058 = vrot.lane.b32.xlu0 %v3034, 124
        %v3059 = vpop.permute.xlu0 %3058
        %3060 = vrot.lane.b32.xlu0 %v3035, 124
        %v3061 = vpop.permute.xlu0 %3060
        %3062 = vrot.lane.b32.xlu0 %v3036, 124
        %v3063 = vpop.permute.xlu0 %3062
        %3064 = vrot.lane.b32.xlu0 %v3037, 124
        %v3065 = vpop.permute.xlu0 %3064
        %3066 = vrot.lane.b32.xlu0 %v3038, 124
        %v3067 = vpop.permute.xlu0 %3066
        %3068 = vrot.lane.b32.xlu0 %v3039, 124
        %v3069 = vpop.permute.xlu0 %3068
        %3070 = vrot.lane.b32.xlu0 %v3040, 124
        %v3071 = vpop.permute.xlu0 %3070
        %3072 = vrot.lane.b32.xlu0 %v3041, 124
        %v3073 = vpop.permute.xlu0 %3072
        %vm3090 = vcmask 1048544
        %3091 = vst.msk [vmem:[#allocation2 + $0x8] sm:$0xff] %vm3090, %v3043
        %vm3092 = vcmask 261120
        %3093 = vst.msk [vmem:[#allocation2 + $0x10] sm:$0xff] %vm3092, %v3043
        %3094 = vst.msk [vmem:[#allocation2 + $0x20] sm:$0xff] %vm3090, %v3045
        %3095 = vst.msk [vmem:[#allocation2 + $0x28] sm:$0xff] %vm3092, %v3045
        %3096 = vst.msk [vmem:[#allocation2 + $0x38] sm:$0xff] %vm3090, %v3047
        %3097 = vst.msk [vmem:[#allocation2 + $0x40] sm:$0xff] %vm3092, %v3047
        %3098 = vst.msk [vmem:[#allocation2 + $0x50] sm:$0xff] %vm3090, %v3049
        %3099 = vst.msk [vmem:[#allocation2 + $0x58] sm:$0xff] %vm3092, %v3049
        %3100 = vst.msk [vmem:[#allocation2 + $0x68] sm:$0xff] %vm3090, %v3051
        %3101 = vst.msk [vmem:[#allocation2 + $0x70] sm:$0xff] %vm3092, %v3051
        %3102 = vst.msk [vmem:[#allocation2 + $0x80] sm:$0xff] %vm3090, %v3053
        %3103 = vst.msk [vmem:[#allocation2 + $0x88] sm:$0xff] %vm3092, %v3053
        %3104 = vst.msk [vmem:[#allocation2 + $0x98] sm:$0xff] %vm3090, %v3055
        %3105 = vst.msk [vmem:[#allocation2 + $0xa0] sm:$0xff] %vm3092, %v3055
        %3106 = vst.msk [vmem:[#allocation2 + $0xb0] sm:$0xff] %vm3090, %v3057
        %3107 = vst.msk [vmem:[#allocation2 + $0xb8] sm:$0xff] %vm3092, %v3057
        %3108 = vst.msk [vmem:[#allocation2 + $0xc8] sm:$0xff] %vm3090, %v3059
        %3109 = vst.msk [vmem:[#allocation2 + $0xd0] sm:$0xff] %vm3092, %v3059
        %3110 = vst.msk [vmem:[#allocation2 + $0xe0] sm:$0xff] %vm3090, %v3061
        %3111 = vst.msk [vmem:[#allocation2 + $0xe8] sm:$0xff] %vm3092, %v3061
        %3112 = vst.msk [vmem:[#allocation2 + $0xf8] sm:$0xff] %vm3090, %v3063
        %3113 = vst.msk [vmem:[#allocation2 + $0x100] sm:$0xff] %vm3092, %v3063
        %3114 = vst.msk [vmem:[#allocation2 + $0x110] sm:$0xff] %vm3090, %v3065
        %3115 = vst.msk [vmem:[#allocation2 + $0x118] sm:$0xff] %vm3092, %v3065
        %3116 = vst.msk [vmem:[#allocation2 + $0x128] sm:$0xff] %vm3090, %v3067
        %3117 = vst.msk [vmem:[#allocation2 + $0x130] sm:$0xff] %vm3092, %v3067
        %3118 = vst.msk [vmem:[#allocation2 + $0x140] sm:$0xff] %vm3090, %v3069
        %3119 = vst.msk [vmem:[#allocation2 + $0x148] sm:$0xff] %vm3092, %v3069
        %3120 = vst.msk [vmem:[#allocation2 + $0x158] sm:$0xff] %vm3090, %v3071
        %3121 = vst.msk [vmem:[#allocation2 + $0x160] sm:$0xff] %vm3092, %v3071
        %3122 = vst.msk [vmem:[#allocation2 + $0x170] sm:$0xff] %vm3090, %v3073
        %3123 = vst.msk [vmem:[#allocation2 + $0x178] sm:$0xff] %vm3092, %v3073
        %v3124 = vld [vmem:[%s2384] sm:$0xe]
        %v3125 = vld [vmem:[%s2384 + $0x4] sm:$0xf]
        %v3126 = vld [vmem:[%s2384 + $0x8] sm:$0x1]
        %v3127 = vld [vmem:[%s2384 + $0xc] sm:$0xe]
        %v3128 = vld [vmem:[%s2384 + $0x10] sm:$0xf]
        %v3129 = vld [vmem:[%s2384 + $0x14] sm:$0x1]
        %v3130 = vld [vmem:[%s2384 + $0x18] sm:$0xe]
        %v3131 = vld [vmem:[%s2384 + $0x1c] sm:$0xf]
        %v3132 = vld [vmem:[%s2384 + $0x20] sm:$0x1]
        %v3133 = vld [vmem:[%s2384 + $0x24] sm:$0xe]
        %v3134 = vld [vmem:[%s2384 + $0x28] sm:$0xf]
        %v3135 = vld [vmem:[%s2384 + $0x2c] sm:$0x1]
        %v3136 = vld [vmem:[%s2384 + $0x30] sm:$0xe]
        %v3137 = vld [vmem:[%s2384 + $0x34] sm:$0xf]
        %v3138 = vld [vmem:[%s2384 + $0x38] sm:$0x1]
        %v3139 = vld [vmem:[%s2384 + $0x3c] sm:$0xe]
        %v3140 = vld [vmem:[%s2384 + $0x40] sm:$0xf]
        %v3141 = vld [vmem:[%s2384 + $0x44] sm:$0x1]
        %v3142 = vld [vmem:[%s2384 + $0x48] sm:$0xe]
        %v3143 = vld [vmem:[%s2384 + $0x4c] sm:$0xf]
        %v3144 = vld [vmem:[%s2384 + $0x50] sm:$0x1]
        %v3145 = vld [vmem:[%s2384 + $0x54] sm:$0xe]
        %v3146 = vld [vmem:[%s2384 + $0x58] sm:$0xf]
        %v3147 = vld [vmem:[%s2384 + $0x5c] sm:$0x1]
        %v3148 = vld [vmem:[%s2384 + $0x60] sm:$0xe]
        %v3149 = vld [vmem:[%s2384 + $0x64] sm:$0xf]
        %v3150 = vld [vmem:[%s2384 + $0x68] sm:$0x1]
        %v3151 = vld [vmem:[%s2384 + $0x6c] sm:$0xe]
        %v3152 = vld [vmem:[%s2384 + $0x70] sm:$0xf]
        %v3153 = vld [vmem:[%s2384 + $0x74] sm:$0x1]
        %v3154 = vld [vmem:[%s2384 + $0x78] sm:$0xe]
        %v3155 = vld [vmem:[%s2384 + $0x7c] sm:$0xf]
        %v3156 = vld [vmem:[%s2384 + $0x80] sm:$0x1]
        %v3157 = vld [vmem:[%s2384 + $0x84] sm:$0xe]
        %v3158 = vld [vmem:[%s2384 + $0x88] sm:$0xf]
        %v3159 = vld [vmem:[%s2384 + $0x8c] sm:$0x1]
        %v3160 = vld [vmem:[%s2384 + $0x90] sm:$0xe]
        %v3161 = vld [vmem:[%s2384 + $0x94] sm:$0xf]
        %v3162 = vld [vmem:[%s2384 + $0x98] sm:$0x1]
        %v3163 = vld [vmem:[%s2384 + $0x9c] sm:$0xe]
        %v3164 = vld [vmem:[%s2384 + $0xa0] sm:$0xf]
        %v3165 = vld [vmem:[%s2384 + $0xa4] sm:$0x1]
        %v3166 = vld [vmem:[%s2384 + $0xa8] sm:$0xe]
        %v3167 = vld [vmem:[%s2384 + $0xac] sm:$0xf]
        %v3168 = vld [vmem:[%s2384 + $0xb0] sm:$0x1]
        %v3169 = vld [vmem:[%s2384 + $0xb4] sm:$0xe]
        %v3170 = vld [vmem:[%s2384 + $0xb8] sm:$0xf]
        %v3171 = vld [vmem:[%s2384 + $0xbc] sm:$0x1]
        %v3220 = vrot.slane %v3124, 5
        %v3221 = vrot.slane %v3220, 4
        %v3222 = vrot.slane %v3125, 5
        %v3223 = vsel %vm1097, %v3221, %v3222
        %v3224 = vrot.slane %v3222, 4
        %v3225 = vrot.slane %v3126, 5
        %v3226 = vsel %vm1097, %v3224, %v3225
        %v3227 = vrot.slane %v3127, 5
        %v3228 = vrot.slane %v3227, 4
        %v3229 = vrot.slane %v3128, 5
        %v3230 = vsel %vm1097, %v3228, %v3229
        %v3231 = vrot.slane %v3229, 4
        %v3232 = vrot.slane %v3129, 5
        %v3233 = vsel %vm1097, %v3231, %v3232
        %v3234 = vrot.slane %v3130, 5
        %v3235 = vrot.slane %v3234, 4
        %v3236 = vrot.slane %v3131, 5
        %v3237 = vsel %vm1097, %v3235, %v3236
        %v3238 = vrot.slane %v3236, 4
        %v3239 = vrot.slane %v3132, 5
        %v3240 = vsel %vm1097, %v3238, %v3239
        %v3241 = vrot.slane %v3133, 5
        %v3242 = vrot.slane %v3241, 4
        %v3243 = vrot.slane %v3134, 5
        %v3244 = vsel %vm1097, %v3242, %v3243
        %v3245 = vrot.slane %v3243, 4
        %v3246 = vrot.slane %v3135, 5
        %v3247 = vsel %vm1097, %v3245, %v3246
        %v3248 = vrot.slane %v3136, 5
        %v3249 = vrot.slane %v3248, 4
        %v3250 = vrot.slane %v3137, 5
        %v3251 = vsel %vm1097, %v3249, %v3250
        %v3252 = vrot.slane %v3250, 4
        %v3253 = vrot.slane %v3138, 5
        %v3254 = vsel %vm1097, %v3252, %v3253
        %v3255 = vrot.slane %v3139, 5
        %v3256 = vrot.slane %v3255, 4
        %v3257 = vrot.slane %v3140, 5
        %v3258 = vsel %vm1097, %v3256, %v3257
        %v3259 = vrot.slane %v3257, 4
        %v3260 = vrot.slane %v3141, 5
        %v3261 = vsel %vm1097, %v3259, %v3260
        %v3262 = vrot.slane %v3142, 5
        %v3263 = vrot.slane %v3262, 4
        %v3264 = vrot.slane %v3143, 5
        %v3265 = vsel %vm1097, %v3263, %v3264
        %v3266 = vrot.slane %v3264, 4
        %v3267 = vrot.slane %v3144, 5
        %v3268 = vsel %vm1097, %v3266, %v3267
        %v3269 = vrot.slane %v3145, 5
        %v3270 = vrot.slane %v3269, 4
        %v3271 = vrot.slane %v3146, 5
        %v3272 = vsel %vm1097, %v3270, %v3271
        %v3273 = vrot.slane %v3271, 4
        %v3274 = vrot.slane %v3147, 5
        %v3275 = vsel %vm1097, %v3273, %v3274
        %v3276 = vrot.slane %v3148, 5
        %v3277 = vrot.slane %v3276, 4
        %v3278 = vrot.slane %v3149, 5
        %v3279 = vsel %vm1097, %v3277, %v3278
        %v3280 = vrot.slane %v3278, 4
        %v3281 = vrot.slane %v3150, 5
        %v3282 = vsel %vm1097, %v3280, %v3281
        %v3283 = vrot.slane %v3151, 5
        %v3284 = vrot.slane %v3283, 4
        %v3285 = vrot.slane %v3152, 5
        %v3286 = vsel %vm1097, %v3284, %v3285
        %v3287 = vrot.slane %v3285, 4
        %v3288 = vrot.slane %v3153, 5
        %v3289 = vsel %vm1097, %v3287, %v3288
        %v3290 = vrot.slane %v3154, 5
        %v3291 = vrot.slane %v3290, 4
        %v3292 = vrot.slane %v3155, 5
        %v3293 = vsel %vm1097, %v3291, %v3292
        %v3294 = vrot.slane %v3292, 4
        %v3295 = vrot.slane %v3156, 5
        %v3296 = vsel %vm1097, %v3294, %v3295
        %v3297 = vrot.slane %v3157, 5
        %v3298 = vrot.slane %v3297, 4
        %v3299 = vrot.slane %v3158, 5
        %v3300 = vsel %vm1097, %v3298, %v3299
        %v3301 = vrot.slane %v3299, 4
        %v3302 = vrot.slane %v3159, 5
        %v3303 = vsel %vm1097, %v3301, %v3302
        %v3304 = vrot.slane %v3160, 5
        %v3305 = vrot.slane %v3304, 4
        %v3306 = vrot.slane %v3161, 5
        %v3307 = vsel %vm1097, %v3305, %v3306
        %v3308 = vrot.slane %v3306, 4
        %v3309 = vrot.slane %v3162, 5
        %v3310 = vsel %vm1097, %v3308, %v3309
        %v3311 = vrot.slane %v3163, 5
        %v3312 = vrot.slane %v3311, 4
        %v3313 = vrot.slane %v3164, 5
        %v3314 = vsel %vm1097, %v3312, %v3313
        %v3315 = vrot.slane %v3313, 4
        %v3316 = vrot.slane %v3165, 5
        %v3317 = vsel %vm1097, %v3315, %v3316
        %v3318 = vrot.slane %v3166, 5
        %v3319 = vrot.slane %v3318, 4
        %v3320 = vrot.slane %v3167, 5
        %v3321 = vsel %vm1097, %v3319, %v3320
        %v3322 = vrot.slane %v3320, 4
        %v3323 = vrot.slane %v3168, 5
        %v3324 = vsel %vm1097, %v3322, %v3323
        %v3325 = vrot.slane %v3169, 5
        %v3326 = vrot.slane %v3325, 4
        %v3327 = vrot.slane %v3170, 5
        %v3328 = vsel %vm1097, %v3326, %v3327
        %v3329 = vrot.slane %v3327, 4
        %v3330 = vrot.slane %v3171, 5
        %v3331 = vsel %vm1097, %v3329, %v3330
        %v3332 = vunpack.c.l.b16 %v3223
        %v3333 = vunpack.c.l.b16 %v3226
        %v3334 = vunpack.c.l.b16 %v3230
        %v3335 = vunpack.c.l.b16 %v3233
        %v3336 = vunpack.c.l.b16 %v3237
        %v3337 = vunpack.c.l.b16 %v3240
        %v3338 = vunpack.c.l.b16 %v3244
        %v3339 = vunpack.c.l.b16 %v3247
        %v3340 = vunpack.c.l.b16 %v3251
        %v3341 = vunpack.c.l.b16 %v3254
        %v3342 = vunpack.c.l.b16 %v3258
        %v3343 = vunpack.c.l.b16 %v3261
        %v3344 = vunpack.c.l.b16 %v3265
        %v3345 = vunpack.c.l.b16 %v3268
        %v3346 = vunpack.c.l.b16 %v3272
        %v3347 = vunpack.c.l.b16 %v3275
        %v3348 = vunpack.c.l.b16 %v3279
        %v3349 = vunpack.c.l.b16 %v3282
        %v3350 = vunpack.c.l.b16 %v3286
        %v3351 = vunpack.c.l.b16 %v3289
        %v3352 = vunpack.c.l.b16 %v3293
        %v3353 = vunpack.c.l.b16 %v3296
        %v3354 = vunpack.c.l.b16 %v3300
        %v3355 = vunpack.c.l.b16 %v3303
        %v3356 = vunpack.c.l.b16 %v3307
        %v3357 = vunpack.c.l.b16 %v3310
        %v3358 = vunpack.c.l.b16 %v3314
        %v3359 = vunpack.c.l.b16 %v3317
        %v3360 = vunpack.c.l.b16 %v3321
        %v3361 = vunpack.c.l.b16 %v3324
        %v3362 = vunpack.c.l.b16 %v3328
        %v3363 = vunpack.c.l.b16 %v3331
        %v3364 = vpack.c.b16 %v3333, %v3332
        %v3365 = vpack.c.b16 %v3335, %v3334
        %v3366 = vpack.c.b16 %v3337, %v3336
        %v3367 = vpack.c.b16 %v3339, %v3338
        %v3368 = vpack.c.b16 %v3341, %v3340
        %v3369 = vpack.c.b16 %v3343, %v3342
        %v3370 = vpack.c.b16 %v3345, %v3344
        %v3371 = vpack.c.b16 %v3347, %v3346
        %v3372 = vpack.c.b16 %v3349, %v3348
        %v3373 = vpack.c.b16 %v3351, %v3350
        %v3374 = vpack.c.b16 %v3353, %v3352
        %v3375 = vpack.c.b16 %v3355, %v3354
        %v3376 = vpack.c.b16 %v3357, %v3356
        %v3377 = vpack.c.b16 %v3359, %v3358
        %v3378 = vpack.c.b16 %v3361, %v3360
        %v3379 = vpack.c.b16 %v3363, %v3362
        %3380 = vrot.lane.b32.xlu0 %v3364, 32
        %v3381 = vpop.permute.xlu0 %3380
        %3382 = vrot.lane.b32.xlu0 %v3365, 32
        %v3383 = vpop.permute.xlu0 %3382
        %3384 = vrot.lane.b32.xlu0 %v3366, 32
        %v3385 = vpop.permute.xlu0 %3384
        %3386 = vrot.lane.b32.xlu0 %v3367, 32
        %v3387 = vpop.permute.xlu0 %3386
        %3388 = vrot.lane.b32.xlu0 %v3368, 32
        %v3389 = vpop.permute.xlu0 %3388
        %3390 = vrot.lane.b32.xlu0 %v3369, 32
        %v3391 = vpop.permute.xlu0 %3390
        %3392 = vrot.lane.b32.xlu0 %v3370, 32
        %v3393 = vpop.permute.xlu0 %3392
        %3394 = vrot.lane.b32.xlu0 %v3371, 32
        %v3395 = vpop.permute.xlu0 %3394
        %3396 = vrot.lane.b32.xlu0 %v3372, 32
        %v3397 = vpop.permute.xlu0 %3396
        %3398 = vrot.lane.b32.xlu0 %v3373, 32
        %v3399 = vpop.permute.xlu0 %3398
        %3400 = vrot.lane.b32.xlu0 %v3374, 32
        %v3401 = vpop.permute.xlu0 %3400
        %3402 = vrot.lane.b32.xlu0 %v3375, 32
        %v3403 = vpop.permute.xlu0 %3402
        %3404 = vrot.lane.b32.xlu0 %v3376, 32
        %v3405 = vpop.permute.xlu0 %3404
        %3406 = vrot.lane.b32.xlu0 %v3377, 32
        %v3407 = vpop.permute.xlu0 %3406
        %3408 = vrot.lane.b32.xlu0 %v3378, 32
        %v3409 = vpop.permute.xlu0 %3408
        %3410 = vrot.lane.b32.xlu0 %v3379, 32
        %v3411 = vpop.permute.xlu0 %3410
        %vm3428 = vcmask 556288
        %3429 = vst.msk [vmem:[#allocation2 + $0x10] sm:$0xff] %vm3428, %v3381
        %3430 = vst.msk [vmem:[#allocation2 + $0x28] sm:$0xff] %vm3428, %v3383
        %3431 = vst.msk [vmem:[#allocation2 + $0x40] sm:$0xff] %vm3428, %v3385
        %3432 = vst.msk [vmem:[#allocation2 + $0x58] sm:$0xff] %vm3428, %v3387
        %3433 = vst.msk [vmem:[#allocation2 + $0x70] sm:$0xff] %vm3428, %v3389
        %3434 = vst.msk [vmem:[#allocation2 + $0x88] sm:$0xff] %vm3428, %v3391
        %3435 = vst.msk [vmem:[#allocation2 + $0xa0] sm:$0xff] %vm3428, %v3393
        %3436 = vst.msk [vmem:[#allocation2 + $0xb8] sm:$0xff] %vm3428, %v3395
        %3437 = vst.msk [vmem:[#allocation2 + $0xd0] sm:$0xff] %vm3428, %v3397
        %3438 = vst.msk [vmem:[#allocation2 + $0xe8] sm:$0xff] %vm3428, %v3399
        %3439 = vst.msk [vmem:[#allocation2 + $0x100] sm:$0xff] %vm3428, %v3401
        %3440 = vst.msk [vmem:[#allocation2 + $0x118] sm:$0xff] %vm3428, %v3403
        %3441 = vst.msk [vmem:[#allocation2 + $0x130] sm:$0xff] %vm3428, %v3405
        %3442 = vst.msk [vmem:[#allocation2 + $0x148] sm:$0xff] %vm3428, %v3407
        %3443 = vst.msk [vmem:[#allocation2 + $0x160] sm:$0xff] %vm3428, %v3409
        %3444 = vst.msk [vmem:[#allocation2 + $0x178] sm:$0xff] %vm3428, %v3411
        %v3445 = vld [vmem:[#allocation2] sm:$0xff]
        %v3446 = vld [vmem:[#allocation2 + $0x8] sm:$0xff]
        %v3447 = vld [vmem:[#allocation2 + $0x10] sm:$0xff]
        %v3448 = vld [vmem:[#allocation2 + $0x18] sm:$0xff]
        %v3449 = vld [vmem:[#allocation2 + $0x20] sm:$0xff]
        %v3450 = vld [vmem:[#allocation2 + $0x28] sm:$0xff]
        %v3451 = vld [vmem:[#allocation2 + $0x30] sm:$0xff]
        %v3452 = vld [vmem:[#allocation2 + $0x38] sm:$0xff]
        %v3453 = vld [vmem:[#allocation2 + $0x40] sm:$0xff]
        %v3454 = vld [vmem:[#allocation2 + $0x48] sm:$0xff]
        %v3455 = vld [vmem:[#allocation2 + $0x50] sm:$0xff]
        %v3456 = vld [vmem:[#allocation2 + $0x58] sm:$0xff]
        %v3457 = vld [vmem:[#allocation2 + $0x60] sm:$0xff]
        %v3458 = vld [vmem:[#allocation2 + $0x68] sm:$0xff]
        %v3459 = vld [vmem:[#allocation2 + $0x70] sm:$0xff]
        %v3460 = vld [vmem:[#allocation2 + $0x78] sm:$0xff]
        %v3461 = vld [vmem:[#allocation2 + $0x80] sm:$0xff]
        %v3462 = vld [vmem:[#allocation2 + $0x88] sm:$0xff]
        %v3463 = vld [vmem:[#allocation2 + $0x90] sm:$0xff]
        %v3464 = vld [vmem:[#allocation2 + $0x98] sm:$0xff]
        %v3465 = vld [vmem:[#allocation2 + $0xa0] sm:$0xff]
        %v3466 = vld [vmem:[#allocation2 + $0xa8] sm:$0xff]
        %v3467 = vld [vmem:[#allocation2 + $0xb0] sm:$0xff]
        %v3468 = vld [vmem:[#allocation2 + $0xb8] sm:$0xff]
        %v3469 = vld [vmem:[#allocation2 + $0xc0] sm:$0xff]
        %v3470 = vld [vmem:[#allocation2 + $0xc8] sm:$0xff]
        %v3471 = vld [vmem:[#allocation2 + $0xd0] sm:$0xff]
        %v3472 = vld [vmem:[#allocation2 + $0xd8] sm:$0xff]
        %v3473 = vld [vmem:[#allocation2 + $0xe0] sm:$0xff]
        %v3474 = vld [vmem:[#allocation2 + $0xe8] sm:$0xff]
        %v3475 = vld [vmem:[#allocation2 + $0xf0] sm:$0xff]
        %v3476 = vld [vmem:[#allocation2 + $0xf8] sm:$0xff]
        %v3477 = vld [vmem:[#allocation2 + $0x100] sm:$0xff]
        %v3478 = vld [vmem:[#allocation2 + $0x108] sm:$0xff]
        %v3479 = vld [vmem:[#allocation2 + $0x110] sm:$0xff]
        %v3480 = vld [vmem:[#allocation2 + $0x118] sm:$0xff]
        %v3481 = vld [vmem:[#allocation2 + $0x120] sm:$0xff]
        %v3482 = vld [vmem:[#allocation2 + $0x128] sm:$0xff]
        %v3483 = vld [vmem:[#allocation2 + $0x130] sm:$0xff]
        %v3484 = vld [vmem:[#allocation2 + $0x138] sm:$0xff]
        %v3485 = vld [vmem:[#allocation2 + $0x140] sm:$0xff]
        %v3486 = vld [vmem:[#allocation2 + $0x148] sm:$0xff]
        %v3487 = vld [vmem:[#allocation2 + $0x150] sm:$0xff]
        %v3488 = vld [vmem:[#allocation2 + $0x158] sm:$0xff]
        %v3489 = vld [vmem:[#allocation2 + $0x160] sm:$0xff]
        %v3490 = vld [vmem:[#allocation2 + $0x168] sm:$0xff]
        %v3491 = vld [vmem:[#allocation2 + $0x170] sm:$0xff]
        %v3492 = vld [vmem:[#allocation2 + $0x178] sm:$0xff]
        %v3493 = vld [vmem:[%s1] sm:$0xf]
        %v3494 = vld [vmem:[%s1 + $0x4] sm:$0xf]
        %v3495 = vld [vmem:[%s1 + $0x8] sm:$0xf]
        %v3496 = vld [vmem:[%s1 + $0xc] sm:$0xf]
        %v3497 = vld [vmem:[%s1 + $0x10] sm:$0xf]
        %v3498 = vld [vmem:[%s1 + $0x14] sm:$0xf]
        %v3499 = vld [vmem:[%s1 + $0x18] sm:$0xf]
        %v3500 = vld [vmem:[%s1 + $0x1c] sm:$0xf]
        %v3501 = vld [vmem:[%s1 + $0x20] sm:$0xf]
        %v3502 = vld [vmem:[%s1 + $0x24] sm:$0xf]
        %v3503 = vld [vmem:[%s1 + $0x28] sm:$0xf]
        %v3504 = vld [vmem:[%s1 + $0x2c] sm:$0xf]
        %v3505 = vld [vmem:[%s1 + $0x30] sm:$0xf]
        %v3506 = vld [vmem:[%s1 + $0x34] sm:$0xf]
        %v3507 = vld [vmem:[%s1 + $0x38] sm:$0xf]
        %v3508 = vld [vmem:[%s1 + $0x3c] sm:$0xf]
        %v3509 = vld [vmem:[%s1 + $0x40] sm:$0xf]
        %v3510 = vld [vmem:[%s1 + $0x44] sm:$0xf]
        %v3511 = vld [vmem:[%s1 + $0x48] sm:$0xf]
        %v3512 = vld [vmem:[%s1 + $0x4c] sm:$0xf]
        %v3513 = vld [vmem:[%s1 + $0x50] sm:$0xf]
        %v3514 = vld [vmem:[%s1 + $0x54] sm:$0xf]
        %v3515 = vld [vmem:[%s1 + $0x58] sm:$0xf]
        %v3516 = vld [vmem:[%s1 + $0x5c] sm:$0xf]
        %v3517 = vld [vmem:[%s1 + $0x60] sm:$0xf]
        %v3518 = vld [vmem:[%s1 + $0x64] sm:$0xf]
        %v3519 = vld [vmem:[%s1 + $0x68] sm:$0xf]
        %v3520 = vld [vmem:[%s1 + $0x6c] sm:$0xf]
        %v3521 = vld [vmem:[%s1 + $0x70] sm:$0xf]
        %v3522 = vld [vmem:[%s1 + $0x74] sm:$0xf]
        %v3523 = vld [vmem:[%s1 + $0x78] sm:$0xf]
        %v3524 = vld [vmem:[%s1 + $0x7c] sm:$0xf]
        %v3525 = vld [vmem:[%s1 + $0x80] sm:$0xf]
        %v3526 = vld [vmem:[%s1 + $0x84] sm:$0xf]
        %v3527 = vld [vmem:[%s1 + $0x88] sm:$0xf]
        %v3528 = vld [vmem:[%s1 + $0x8c] sm:$0xf]
        %v3529 = vld [vmem:[%s1 + $0x90] sm:$0xf]
        %v3530 = vld [vmem:[%s1 + $0x94] sm:$0xf]
        %v3531 = vld [vmem:[%s1 + $0x98] sm:$0xf]
        %v3532 = vld [vmem:[%s1 + $0x9c] sm:$0xf]
        %v3533 = vld [vmem:[%s1 + $0xa0] sm:$0x3]
        %v3534 = vld [vmem:[%s2] sm:$0x1]
        %v3536 = vlaneseq
        %v3537 = vshrl.u32 %v3536, 7
        %v3538 = vsub.s32 0, %v3537
        %v3539 = vrot.slane %v3534, %v3538
        %v3582 = vunpack.c.l.b16 %v3493
        %v3583 = vunpack.c.l.b16 %v3494
        %v3584 = vunpack.c.l.b16 %v3495
        %v3585 = vunpack.c.l.b16 %v3496
        %v3586 = vunpack.c.l.b16 %v3497
        %v3587 = vunpack.c.l.b16 %v3498
        %v3588 = vunpack.c.l.b16 %v3499
        %v3589 = vunpack.c.l.b16 %v3500
        %v3590 = vunpack.c.l.b16 %v3501
        %v3591 = vunpack.c.l.b16 %v3502
        %v3592 = vunpack.c.l.b16 %v3503
        %v3593 = vunpack.c.l.b16 %v3504
        %v3594 = vunpack.c.l.b16 %v3505
        %v3595 = vunpack.c.l.b16 %v3506
        %v3596 = vunpack.c.l.b16 %v3507
        %v3597 = vunpack.c.l.b16 %v3508
        %v3598 = vunpack.c.l.b16 %v3509
        %v3599 = vunpack.c.l.b16 %v3510
        %v3600 = vunpack.c.l.b16 %v3511
        %v3601 = vunpack.c.l.b16 %v3512
        %v3602 = vunpack.c.l.b16 %v3513
        %v3603 = vunpack.c.l.b16 %v3514
        %v3604 = vunpack.c.l.b16 %v3515
        %v3605 = vunpack.c.l.b16 %v3516
        %v3606 = vunpack.c.l.b16 %v3517
        %v3607 = vunpack.c.l.b16 %v3518
        %v3608 = vunpack.c.l.b16 %v3519
        %v3609 = vunpack.c.l.b16 %v3520
        %v3610 = vunpack.c.l.b16 %v3521
        %v3611 = vunpack.c.l.b16 %v3522
        %v3612 = vunpack.c.l.b16 %v3523
        %v3613 = vunpack.c.l.b16 %v3524
        %v3614 = vunpack.c.l.b16 %v3525
        %v3615 = vunpack.c.l.b16 %v3526
        %v3616 = vunpack.c.l.b16 %v3527
        %v3617 = vunpack.c.l.b16 %v3528
        %v3618 = vunpack.c.l.b16 %v3529
        %v3619 = vunpack.c.l.b16 %v3530
        %v3620 = vunpack.c.l.b16 %v3531
        %v3621 = vunpack.c.l.b16 %v3532
        %v3622 = vunpack.c.l.b16 %v3533
        %v3623 = vpack.c.b16 %v3583, %v3582
        %v3624 = vpack.c.b16 %v3585, %v3584
        %v3625 = vpack.c.b16 %v3587, %v3586
        %v3626 = vpack.c.b16 %v3589, %v3588
        %v3627 = vpack.c.b16 %v3591, %v3590
        %v3628 = vpack.c.b16 %v3593, %v3592
        %v3629 = vpack.c.b16 %v3595, %v3594
        %v3630 = vpack.c.b16 %v3597, %v3596
        %v3631 = vpack.c.b16 %v3599, %v3598
        %v3632 = vpack.c.b16 %v3601, %v3600
        %v3633 = vpack.c.b16 %v3603, %v3602
        %v3634 = vpack.c.b16 %v3605, %v3604
        %v3635 = vpack.c.b16 %v3607, %v3606
        %v3636 = vpack.c.b16 %v3609, %v3608
        %v3637 = vpack.c.b16 %v3611, %v3610
        %v3638 = vpack.c.b16 %v3613, %v3612
        %v3639 = vpack.c.b16 %v3615, %v3614
        %v3640 = vpack.c.b16 %v3617, %v3616
        %v3641 = vpack.c.b16 %v3619, %v3618
        %v3642 = vpack.c.b16 %v3621, %v3620
        %v3643 = vpack.c.b16 %v3622, %v3622
        %vm3664 = vcmask 556032
        %v3666 = vsel %vm3664, %v3447, 0
        %v3669 = vsel %vm3664, %v3450, 0
        %v3672 = vsel %vm3664, %v3453, 0
        %v3675 = vsel %vm3664, %v3456, 0
        %v3678 = vsel %vm3664, %v3459, 0
        %v3681 = vsel %vm3664, %v3462, 0
        %v3684 = vsel %vm3664, %v3465, 0
        %v3687 = vsel %vm3664, %v3468, 0
        %v3690 = vsel %vm3664, %v3471, 0
        %v3693 = vsel %vm3664, %v3474, 0
        %v3696 = vsel %vm3664, %v3477, 0
        %v3699 = vsel %vm3664, %v3480, 0
        %v3702 = vsel %vm3664, %v3483, 0
        %v3705 = vsel %vm3664, %v3486, 0
        %v3708 = vsel %vm3664, %v3489, 0
        %v3711 = vsel %vm3664, %v3492, 0
        %vm3713 = vcmask 1041408
        %v3715 = vsel %vm3713, %v3643, 0
        %3717 = vmatprep.subr.bf16.mxu0 0
        %3718 = vmatpush1.bf16.msra.mxu0 %v3623
        %3719 = vmatprep.subr.bf16.mxu0 0
        %3720 = vmatpush1.bf16.msra.mxu0 %v3624
        %3721 = vmatprep.subr.bf16.mxu0 0
        %3722 = vmatpush1.bf16.msra.mxu0 %v3625
        %3723 = vmatprep.subr.bf16.mxu0 0
        %3724 = vmatpush1.bf16.msra.mxu0 %v3626
        %3725 = vmatprep.subr.bf16.mxu0 0
        %3726 = vmatpush1.bf16.msra.mxu0 %v3627
        %3727 = vmatprep.subr.bf16.mxu0 0
        %3728 = vmatpush1.bf16.msra.mxu0 %v3628
        %3729 = vmatprep.subr.bf16.mxu0 0
        %3730 = vmatpush1.bf16.msra.mxu0 %v3629
        %3731 = vmatprep.subr.bf16.mxu0 0
        %3732 = vmatpush1.bf16.msra.mxu0 %v3630
        %3733 = vmatprep.subr.bf16.mxu0 0
        %3734 = vmatpush1.bf16.msra.mxu0 %v3631
        %3735 = vmatprep.subr.bf16.mxu0 0
        %3736 = vmatpush1.bf16.msra.mxu0 %v3632
        %3737 = vmatprep.subr.bf16.mxu0 0
        %3738 = vmatpush1.bf16.msra.mxu0 %v3633
        %3739 = vmatprep.subr.bf16.mxu0 0
        %3740 = vmatpush1.bf16.msra.mxu0 %v3634
        %3741 = vmatprep.subr.bf16.mxu0 0
        %3742 = vmatpush1.bf16.msra.mxu0 %v3635
        %3743 = vmatprep.subr.bf16.mxu0 0
        %3744 = vmatpush1.bf16.msra.mxu0 %v3636
        %3745 = vmatprep.subr.bf16.mxu0 0
        %3746 = vmatpush1.bf16.msra.mxu0 %v3637
        %3747 = vmatprep.subr.bf16.mxu0 0
        %3748 = vmatpush1.bf16.msra.mxu0 %v3638
        %3749 = vmatprep.mubr.bf16.mxu0 %v3446
        %3750 = vmatmul.mubr.bf16.gmra.mrb[0].mxu0 %v3445
        %v3751 = vpop.f32.mrb[0].mxu0
        %v3752 = vadd.f32 %v3539, %v3751
        %v3753 = vpop.f32.mrb[0].mxu0
        %v3754 = vpop.f32.mrb[0].mxu0
        %v3755 = vadd.f32 %v3539, %v3754
        %v3756 = vpop.f32.mrb[0].mxu0
        %3757 = vmatprep.mubr.bf16.mxu0 %v3449
        %3758 = vmatmul.mubr.bf16.gmra.mrb[0].mxu0 %v3448
        %v3759 = vpop.f32.mrb[0].mxu0
        %v3760 = vadd.f32 %v3539, %v3759
        %v3761 = vpop.f32.mrb[0].mxu0
        %v3762 = vpop.f32.mrb[0].mxu0
        %v3763 = vadd.f32 %v3539, %v3762
        %v3764 = vpop.f32.mrb[0].mxu0
        %3765 = vmatprep.mubr.bf16.mxu0 %v3452
        %3766 = vmatmul.mubr.bf16.gmra.mrb[0].mxu0 %v3451
        %v3767 = vpop.f32.mrb[0].mxu0
        %v3768 = vadd.f32 %v3539, %v3767
        %v3769 = vpop.f32.mrb[0].mxu0
        %v3770 = vpop.f32.mrb[0].mxu0
        %v3771 = vadd.f32 %v3539, %v3770
        %v3772 = vpop.f32.mrb[0].mxu0
        %3773 = vmatprep.mubr.bf16.mxu0 %v3455
        %3774 = vmatmul.mubr.bf16.gmra.mrb[0].mxu0 %v3454
        %v3775 = vpop.f32.mrb[0].mxu0
        %v3776 = vadd.f32 %v3539, %v3775
        %v3777 = vpop.f32.mrb[0].mxu0
        %v3778 = vpop.f32.mrb[0].mxu0
        %v3779 = vadd.f32 %v3539, %v3778
        %v3780 = vpop.f32.mrb[0].mxu0
        %3781 = vmatprep.mubr.bf16.mxu0 %v3458
        %3782 = vmatmul.mubr.bf16.gmra.mrb[0].mxu0 %v3457
        %v3783 = vpop.f32.mrb[0].mxu0
        %v3784 = vadd.f32 %v3539, %v3783
        %v3785 = vpop.f32.mrb[0].mxu0
        %v3786 = vpop.f32.mrb[0].mxu0
        %v3787 = vadd.f32 %v3539, %v3786
        %v3788 = vpop.f32.mrb[0].mxu0
        %3789 = vmatprep.mubr.bf16.mxu0 %v3461
        %3790 = vmatmul.mubr.bf16.gmra.mrb[0].mxu0 %v3460
        %v3791 = vpop.f32.mrb[0].mxu0
        %v3792 = vadd.f32 %v3539, %v3791
        %v3793 = vpop.f32.mrb[0].mxu0
        %v3794 = vpop.f32.mrb[0].mxu0
        %v3795 = vadd.f32 %v3539, %v3794
        %v3796 = vpop.f32.mrb[0].mxu0
        %3797 = vmatprep.mubr.bf16.mxu0 %v3464
        %3798 = vmatmul.mubr.bf16.gmra.mrb[0].mxu0 %v3463
        %v3799 = vpop.f32.mrb[0].mxu0
        %v3800 = vadd.f32 %v3539, %v3799
        %v3801 = vpop.f32.mrb[0].mxu0
        %v3802 = vpop.f32.mrb[0].mxu0
        %v3803 = vadd.f32 %v3539, %v3802
        %v3804 = vpop.f32.mrb[0].mxu0
        %3805 = vmatprep.mubr.bf16.mxu0 %v3467
        %3806 = vmatmul.mubr.bf16.gmra.mrb[0].mxu0 %v3466
        %v3807 = vpop.f32.mrb[0].mxu0
        %v3808 = vadd.f32 %v3539, %v3807
        %v3809 = vpop.f32.mrb[0].mxu0
        %v3810 = vpop.f32.mrb[0].mxu0
        %v3811 = vadd.f32 %v3539, %v3810
        %v3812 = vpop.f32.mrb[0].mxu0
        %3813 = vmatprep.mubr.bf16.mxu0 %v3470
        %3814 = vmatmul.mubr.bf16.gmra.mrb[0].mxu0 %v3469
        %v3815 = vpop.f32.mrb[0].mxu0
        %v3816 = vadd.f32 %v3539, %v3815
        %v3817 = vpop.f32.mrb[0].mxu0
        %v3818 = vpop.f32.mrb[0].mxu0
        %v3819 = vadd.f32 %v3539, %v3818
        %v3820 = vpop.f32.mrb[0].mxu0
        %3821 = vmatprep.mubr.bf16.mxu0 %v3473
        %3822 = vmatmul.mubr.bf16.gmra.mrb[0].mxu0 %v3472
        %v3823 = vpop.f32.mrb[0].mxu0
        %v3824 = vadd.f32 %v3539, %v3823
        %v3825 = vpop.f32.mrb[0].mxu0
        %v3826 = vpop.f32.mrb[0].mxu0
        %v3827 = vadd.f32 %v3539, %v3826
        %v3828 = vpop.f32.mrb[0].mxu0
        %3829 = vmatprep.mubr.bf16.mxu0 %v3476
        %3830 = vmatmul.mubr.bf16.gmra.mrb[0].mxu0 %v3475
        %v3831 = vpop.f32.mrb[0].mxu0
        %v3832 = vadd.f32 %v3539, %v3831
        %v3833 = vpop.f32.mrb[0].mxu0
        %v3834 = vpop.f32.mrb[0].mxu0
        %v3835 = vadd.f32 %v3539, %v3834
        %v3836 = vpop.f32.mrb[0].mxu0
        %3837 = vmatprep.mubr.bf16.mxu0 %v3479
        %3838 = vmatmul.mubr.bf16.gmra.mrb[0].mxu0 %v3478
        %v3839 = vpop.f32.mrb[0].mxu0
        %v3840 = vadd.f32 %v3539, %v3839
        %v3841 = vpop.f32.mrb[0].mxu0
        %v3842 = vpop.f32.mrb[0].mxu0
        %v3843 = vadd.f32 %v3539, %v3842
        %v3844 = vpop.f32.mrb[0].mxu0
        %3845 = vmatprep.mubr.bf16.mxu0 %v3482
        %3846 = vmatmul.mubr.bf16.gmra.mrb[0].mxu0 %v3481
        %v3847 = vpop.f32.mrb[0].mxu0
        %v3848 = vadd.f32 %v3539, %v3847
        %v3849 = vpop.f32.mrb[0].mxu0
        %v3850 = vpop.f32.mrb[0].mxu0
        %v3851 = vadd.f32 %v3539, %v3850
        %v3852 = vpop.f32.mrb[0].mxu0
        %3853 = vmatprep.mubr.bf16.mxu0 %v3485
        %3854 = vmatmul.mubr.bf16.gmra.mrb[0].mxu0 %v3484
        %v3855 = vpop.f32.mrb[0].mxu0
        %v3856 = vadd.f32 %v3539, %v3855
        %v3857 = vpop.f32.mrb[0].mxu0
        %v3858 = vpop.f32.mrb[0].mxu0
        %v3859 = vadd.f32 %v3539, %v3858
        %v3860 = vpop.f32.mrb[0].mxu0
        %3861 = vmatprep.mubr.bf16.mxu0 %v3488
        %3862 = vmatmul.mubr.bf16.gmra.mrb[0].mxu0 %v3487
        %v3863 = vpop.f32.mrb[0].mxu0
        %v3864 = vadd.f32 %v3539, %v3863
        %v3865 = vpop.f32.mrb[0].mxu0
        %v3866 = vpop.f32.mrb[0].mxu0
        %v3867 = vadd.f32 %v3539, %v3866
        %v3868 = vpop.f32.mrb[0].mxu0
        %3869 = vmatprep.mubr.bf16.mxu0 %v3491
        %3870 = vmatmul.mubr.bf16.gmra.mrb[0].mxu0 %v3490
        %v3871 = vpop.f32.mrb[0].mxu0
        %v3872 = vadd.f32 %v3539, %v3871
        %v3873 = vpop.f32.mrb[0].mxu0
        %v3874 = vpop.f32.mrb[0].mxu0
        %v3875 = vadd.f32 %v3539, %v3874
        %v3876 = vpop.f32.mrb[0].mxu0
        %3877 = vdwg.mxu0
        %3878 = vmatprep.subr.bf16.mxu0 0
        %3879 = vmatpush1.bf16.msra.mxu0 %v3639
        %3880 = vmatprep.subr.bf16.mxu0 0
        %3881 = vmatpush1.bf16.msra.mxu0 %v3640
        %3882 = vmatprep.subr.bf16.mxu0 0
        %3883 = vmatpush1.bf16.msra.mxu0 %v3641
        %3884 = vmatprep.subr.bf16.mxu0 0
        %3885 = vmatpush1.bf16.msra.mxu0 %v3642
        %3886 = vmatprep.subr.bf16.mxu0 0
        %3887 = vmatpush1.bf16.msra.mxu0 %v3715
        %3888 = vmatprep.subr.bf16.mxu0 0
        %3889 = vmatpush1.bf16.msra.mxu0 0
        %3890 = vmatprep.subr.bf16.mxu0 0
        %3891 = vmatpush1.bf16.msra.mxu0 0
        %3892 = vmatprep.subr.bf16.mxu0 0
        %3893 = vmatpush1.bf16.msra.mxu0 0
        %3894 = vmatprep.subr.bf16.mxu0 0
        %3895 = vmatpush1.bf16.msra.mxu0 0
        %3896 = vmatprep.subr.bf16.mxu0 0
        %3897 = vmatpush1.bf16.msra.mxu0 0
        %3898 = vmatprep.subr.bf16.mxu0 0
        %3899 = vmatpush1.bf16.msra.mxu0 0
        %3900 = vmatprep.subr.bf16.mxu0 0
        %3901 = vmatpush1.bf16.msra.mxu0 0
        %3902 = vmatprep.subr.bf16.mxu0 0
        %3903 = vmatpush1.bf16.msra.mxu0 0
        %3904 = vmatprep.subr.bf16.mxu0 0
        %3905 = vmatpush1.bf16.msra.mxu0 0
        %3906 = vmatprep.subr.bf16.mxu0 0
        %3907 = vmatpush1.bf16.msra.mxu0 0
        %3908 = vmatprep.subr.bf16.mxu0 0
        %3909 = vmatpush1.bf16.msra.mxu0 0
        %3910 = vmatprep.mubr.bf16.mxu0 0
        %3911 = vmatmul.mubr.bf16.gmra.mrb[0].mxu0 %v3666
        %v3912 = vpop.f32.mrb[0].mxu0
        %v3913 = vadd.f32 %v3752, %v3912
        %v3914 = vpop.f32.mrb[0].mxu0
        %v3915 = vpop.f32.mrb[0].mxu0
        %v3916 = vadd.f32 %v3755, %v3915
        %v3917 = vpop.f32.mrb[0].mxu0
        %3918 = vmatprep.mubr.bf16.mxu0 0
        %3919 = vmatmul.mubr.bf16.gmra.mrb[0].mxu0 %v3669
        %v3920 = vpop.f32.mrb[0].mxu0
        %v3921 = vadd.f32 %v3760, %v3920
        %v3922 = vpop.f32.mrb[0].mxu0
        %v3923 = vpop.f32.mrb[0].mxu0
        %v3924 = vadd.f32 %v3763, %v3923
        %v3925 = vpop.f32.mrb[0].mxu0
        %3926 = vmatprep.mubr.bf16.mxu0 0
        %3927 = vmatmul.mubr.bf16.gmra.mrb[0].mxu0 %v3672
        %v3928 = vpop.f32.mrb[0].mxu0
        %v3929 = vadd.f32 %v3768, %v3928
        %v3930 = vpop.f32.mrb[0].mxu0
        %v3931 = vpop.f32.mrb[0].mxu0
        %v3932 = vadd.f32 %v3771, %v3931
        %v3933 = vpop.f32.mrb[0].mxu0
        %3934 = vmatprep.mubr.bf16.mxu0 0
        %3935 = vmatmul.mubr.bf16.gmra.mrb[0].mxu0 %v3675
        %v3936 = vpop.f32.mrb[0].mxu0
        %v3937 = vadd.f32 %v3776, %v3936
        %v3938 = vpop.f32.mrb[0].mxu0
        %v3939 = vpop.f32.mrb[0].mxu0
        %v3940 = vadd.f32 %v3779, %v3939
        %v3941 = vpop.f32.mrb[0].mxu0
        %3942 = vmatprep.mubr.bf16.mxu0 0
        %3943 = vmatmul.mubr.bf16.gmra.mrb[0].mxu0 %v3678
        %v3944 = vpop.f32.mrb[0].mxu0
        %v3945 = vadd.f32 %v3784, %v3944
        %v3946 = vpop.f32.mrb[0].mxu0
        %v3947 = vpop.f32.mrb[0].mxu0
        %v3948 = vadd.f32 %v3787, %v3947
        %v3949 = vpop.f32.mrb[0].mxu0
        %3950 = vmatprep.mubr.bf16.mxu0 0
        %3951 = vmatmul.mubr.bf16.gmra.mrb[0].mxu0 %v3681
        %v3952 = vpop.f32.mrb[0].mxu0
        %v3953 = vadd.f32 %v3792, %v3952
        %v3954 = vpop.f32.mrb[0].mxu0
        %v3955 = vpop.f32.mrb[0].mxu0
        %v3956 = vadd.f32 %v3795, %v3955
        %v3957 = vpop.f32.mrb[0].mxu0
        %3958 = vmatprep.mubr.bf16.mxu0 0
        %3959 = vmatmul.mubr.bf16.gmra.mrb[0].mxu0 %v3684
        %v3960 = vpop.f32.mrb[0].mxu0
        %v3961 = vadd.f32 %v3800, %v3960
        %v3962 = vpop.f32.mrb[0].mxu0
        %v3963 = vpop.f32.mrb[0].mxu0
        %v3964 = vadd.f32 %v3803, %v3963
        %v3965 = vpop.f32.mrb[0].mxu0
        %3966 = vmatprep.mubr.bf16.mxu0 0
        %3967 = vmatmul.mubr.bf16.gmra.mrb[0].mxu0 %v3687
        %v3968 = vpop.f32.mrb[0].mxu0
        %v3969 = vadd.f32 %v3808, %v3968
        %v3970 = vpop.f32.mrb[0].mxu0
        %v3971 = vpop.f32.mrb[0].mxu0
        %v3972 = vadd.f32 %v3811, %v3971
        %v3973 = vpop.f32.mrb[0].mxu0
        %3974 = vmatprep.mubr.bf16.mxu0 0
        %3975 = vmatmul.mubr.bf16.gmra.mrb[0].mxu0 %v3690
        %v3976 = vpop.f32.mrb[0].mxu0
        %v3977 = vadd.f32 %v3816, %v3976
        %v3978 = vpop.f32.mrb[0].mxu0
        %v3979 = vpop.f32.mrb[0].mxu0
        %v3980 = vadd.f32 %v3819, %v3979
        %v3981 = vpop.f32.mrb[0].mxu0
        %3982 = vmatprep.mubr.bf16.mxu0 0
        %3983 = vmatmul.mubr.bf16.gmra.mrb[0].mxu0 %v3693
        %v3984 = vpop.f32.mrb[0].mxu0
        %v3985 = vadd.f32 %v3824, %v3984
        %v3986 = vpop.f32.mrb[0].mxu0
        %v3987 = vpop.f32.mrb[0].mxu0
        %v3988 = vadd.f32 %v3827, %v3987
        %v3989 = vpop.f32.mrb[0].mxu0
        %3990 = vmatprep.mubr.bf16.mxu0 0
        %3991 = vmatmul.mubr.bf16.gmra.mrb[0].mxu0 %v3696
        %v3992 = vpop.f32.mrb[0].mxu0
        %v3993 = vadd.f32 %v3832, %v3992
        %v3994 = vpop.f32.mrb[0].mxu0
        %v3995 = vpop.f32.mrb[0].mxu0
        %v3996 = vadd.f32 %v3835, %v3995
        %v3997 = vpop.f32.mrb[0].mxu0
        %3998 = vmatprep.mubr.bf16.mxu0 0
        %3999 = vmatmul.mubr.bf16.gmra.mrb[0].mxu0 %v3699
        %v4000 = vpop.f32.mrb[0].mxu0
        %v4001 = vadd.f32 %v3840, %v4000
        %v4002 = vpop.f32.mrb[0].mxu0
        %v4003 = vpop.f32.mrb[0].mxu0
        %v4004 = vadd.f32 %v3843, %v4003
        %v4005 = vpop.f32.mrb[0].mxu0
        %4006 = vmatprep.mubr.bf16.mxu0 0
        %4007 = vmatmul.mubr.bf16.gmra.mrb[0].mxu0 %v3702
        %v4008 = vpop.f32.mrb[0].mxu0
        %v4009 = vadd.f32 %v3848, %v4008
        %v4010 = vpop.f32.mrb[0].mxu0
        %v4011 = vpop.f32.mrb[0].mxu0
        %v4012 = vadd.f32 %v3851, %v4011
        %v4013 = vpop.f32.mrb[0].mxu0
        %4014 = vmatprep.mubr.bf16.mxu0 0
        %4015 = vmatmul.mubr.bf16.gmra.mrb[0].mxu0 %v3705
        %v4016 = vpop.f32.mrb[0].mxu0
        %v4017 = vadd.f32 %v3856, %v4016
        %v4018 = vpop.f32.mrb[0].mxu0
        %v4019 = vpop.f32.mrb[0].mxu0
        %v4020 = vadd.f32 %v3859, %v4019
        %v4021 = vpop.f32.mrb[0].mxu0
        %4022 = vmatprep.mubr.bf16.mxu0 0
        %4023 = vmatmul.mubr.bf16.gmra.mrb[0].mxu0 %v3708
        %v4024 = vpop.f32.mrb[0].mxu0
        %v4025 = vadd.f32 %v3864, %v4024
        %v4026 = vpop.f32.mrb[0].mxu0
        %v4027 = vpop.f32.mrb[0].mxu0
        %v4028 = vadd.f32 %v3867, %v4027
        %v4029 = vpop.f32.mrb[0].mxu0
        %4030 = vmatprep.mubr.bf16.mxu0 0
        %4031 = vmatmul.mubr.bf16.gmra.mrb[0].mxu0 %v3711
        %v4032 = vpop.f32.mrb[0].mxu0
        %v4033 = vadd.f32 %v3872, %v4032
        %v4034 = vpop.f32.mrb[0].mxu0
        %v4035 = vpop.f32.mrb[0].mxu0
        %v4036 = vadd.f32 %v3875, %v4035
        %v4037 = vpop.f32.mrb[0].mxu0
        %4038 = vdwg.mxu0
        %v4039 = vxor.u32 %v3913, 2147483648
        %v4040 = vxor.u32 %v3916, 2147483648
        %v4041 = vxor.u32 %v3921, 2147483648
        %v4042 = vxor.u32 %v3924, 2147483648
        %v4043 = vxor.u32 %v3929, 2147483648
        %v4044 = vxor.u32 %v3932, 2147483648
        %v4045 = vxor.u32 %v3937, 2147483648
        %v4046 = vxor.u32 %v3940, 2147483648
        %v4047 = vxor.u32 %v3945, 2147483648
        %v4048 = vxor.u32 %v3948, 2147483648
        %v4049 = vxor.u32 %v3953, 2147483648
        %v4050 = vxor.u32 %v3956, 2147483648
        %v4051 = vxor.u32 %v3961, 2147483648
        %v4052 = vxor.u32 %v3964, 2147483648
        %v4053 = vxor.u32 %v3969, 2147483648
        %v4054 = vxor.u32 %v3972, 2147483648
        %v4055 = vxor.u32 %v3977, 2147483648
        %v4056 = vxor.u32 %v3980, 2147483648
        %v4057 = vxor.u32 %v3985, 2147483648
        %v4058 = vxor.u32 %v3988, 2147483648
        %v4059 = vxor.u32 %v3993, 2147483648
        %v4060 = vxor.u32 %v3996, 2147483648
        %v4061 = vxor.u32 %v4001, 2147483648
        %v4062 = vxor.u32 %v4004, 2147483648
        %v4063 = vxor.u32 %v4009, 2147483648
        %v4064 = vxor.u32 %v4012, 2147483648
        %v4065 = vxor.u32 %v4017, 2147483648
        %v4066 = vxor.u32 %v4020, 2147483648
        %v4067 = vxor.u32 %v4025, 2147483648
        %v4068 = vxor.u32 %v4028, 2147483648
        %v4069 = vxor.u32 %v4033, 2147483648
        %v4070 = vxor.u32 %v4036, 2147483648
        %v4071 = vmul.f32 %v4039, 1.442695
        %v4072 = vpow.pop %v4071
        %v4073 = vmul.f32 %v4040, 1.442695
        %v4074 = vpow.pop %v4073
        %v4075 = vmul.f32 %v4041, 1.442695
        %v4076 = vpow.pop %v4075
        %v4077 = vmul.f32 %v4042, 1.442695
        %v4078 = vpow.pop %v4077
        %v4079 = vmul.f32 %v4043, 1.442695
        %v4080 = vpow.pop %v4079
        %v4081 = vmul.f32 %v4044, 1.442695
        %v4082 = vpow.pop %v4081
        %v4083 = vmul.f32 %v4045, 1.442695
        %v4084 = vpow.pop %v4083
        %v4085 = vmul.f32 %v4046, 1.442695
        %v4086 = vpow.pop %v4085
        %v4087 = vmul.f32 %v4047, 1.442695
        %v4088 = vpow.pop %v4087
        %v4089 = vmul.f32 %v4048, 1.442695
        %v4090 = vpow.pop %v4089
        %v4091 = vmul.f32 %v4049, 1.442695
        %v4092 = vpow.pop %v4091
        %v4093 = vmul.f32 %v4050, 1.442695
        %v4094 = vpow.pop %v4093
        %v4095 = vmul.f32 %v4051, 1.442695
        %v4096 = vpow.pop %v4095
        %v4097 = vmul.f32 %v4052, 1.442695
        %v4098 = vpow.pop %v4097
        %v4099 = vmul.f32 %v4053, 1.442695
        %v4100 = vpow.pop %v4099
        %v4101 = vmul.f32 %v4054, 1.442695
        %v4102 = vpow.pop %v4101
        %v4103 = vmul.f32 %v4055, 1.442695
        %v4104 = vpow.pop %v4103
        %v4105 = vmul.f32 %v4056, 1.442695
        %v4106 = vpow.pop %v4105
        %v4107 = vmul.f32 %v4057, 1.442695
        %v4108 = vpow.pop %v4107
        %v4109 = vmul.f32 %v4058, 1.442695
        %v4110 = vpow.pop %v4109
        %v4111 = vmul.f32 %v4059, 1.442695
        %v4112 = vpow.pop %v4111
        %v4113 = vmul.f32 %v4060, 1.442695
        %v4114 = vpow.pop %v4113
        %v4115 = vmul.f32 %v4061, 1.442695
        %v4116 = vpow.pop %v4115
        %v4117 = vmul.f32 %v4062, 1.442695
        %v4118 = vpow.pop %v4117
        %v4119 = vmul.f32 %v4063, 1.442695
        %v4120 = vpow.pop %v4119
        %v4121 = vmul.f32 %v4064, 1.442695
        %v4122 = vpow.pop %v4121
        %v4123 = vmul.f32 %v4065, 1.442695
        %v4124 = vpow.pop %v4123
        %v4125 = vmul.f32 %v4066, 1.442695
        %v4126 = vpow.pop %v4125
        %v4127 = vmul.f32 %v4067, 1.442695
        %v4128 = vpow.pop %v4127
        %v4129 = vmul.f32 %v4068, 1.442695
        %v4130 = vpow.pop %v4129
        %v4131 = vmul.f32 %v4069, 1.442695
        %v4132 = vpow.pop %v4131
        %v4133 = vmul.f32 %v4070, 1.442695
        %v4134 = vpow.pop %v4133
        %v4135 = vadd.f32 %v4072, 1.0
        %v4136 = vadd.f32 %v4074, 1.0
        %v4137 = vadd.f32 %v4076, 1.0
        %v4138 = vadd.f32 %v4078, 1.0
        %v4139 = vadd.f32 %v4080, 1.0
        %v4140 = vadd.f32 %v4082, 1.0
        %v4141 = vadd.f32 %v4084, 1.0
        %v4142 = vadd.f32 %v4086, 1.0
        %v4143 = vadd.f32 %v4088, 1.0
        %v4144 = vadd.f32 %v4090, 1.0
        %v4145 = vadd.f32 %v4092, 1.0
        %v4146 = vadd.f32 %v4094, 1.0
        %v4147 = vadd.f32 %v4096, 1.0
        %v4148 = vadd.f32 %v4098, 1.0
        %v4149 = vadd.f32 %v4100, 1.0
        %v4150 = vadd.f32 %v4102, 1.0
        %v4151 = vadd.f32 %v4104, 1.0
        %v4152 = vadd.f32 %v4106, 1.0
        %v4153 = vadd.f32 %v4108, 1.0
        %v4154 = vadd.f32 %v4110, 1.0
        %v4155 = vadd.f32 %v4112, 1.0
        %v4156 = vadd.f32 %v4114, 1.0
        %v4157 = vadd.f32 %v4116, 1.0
        %v4158 = vadd.f32 %v4118, 1.0
        %v4159 = vadd.f32 %v4120, 1.0
        %v4160 = vadd.f32 %v4122, 1.0
        %v4161 = vadd.f32 %v4124, 1.0
        %v4162 = vadd.f32 %v4126, 1.0
        %v4163 = vadd.f32 %v4128, 1.0
        %v4164 = vadd.f32 %v4130, 1.0
        %v4165 = vadd.f32 %v4132, 1.0
        %v4166 = vadd.f32 %v4134, 1.0
        %v4167 = vrcp.pop %v4135
        %v4168 = vmul.f32 1.0, %v4167
        %v4169 = vrcp.pop %v4136
        %v4170 = vmul.f32 1.0, %v4169
        %v4171 = vrcp.pop %v4137
        %v4172 = vmul.f32 1.0, %v4171
        %v4173 = vrcp.pop %v4138
        %v4174 = vmul.f32 1.0, %v4173
        %v4175 = vrcp.pop %v4139
        %v4176 = vmul.f32 1.0, %v4175
        %v4177 = vrcp.pop %v4140
        %v4178 = vmul.f32 1.0, %v4177
        %v4179 = vrcp.pop %v4141
        %v4180 = vmul.f32 1.0, %v4179
        %v4181 = vrcp.pop %v4142
        %v4182 = vmul.f32 1.0, %v4181
        %v4183 = vrcp.pop %v4143
        %v4184 = vmul.f32 1.0, %v4183
        %v4185 = vrcp.pop %v4144
        %v4186 = vmul.f32 1.0, %v4185
        %v4187 = vrcp.pop %v4145
        %v4188 = vmul.f32 1.0, %v4187
        %v4189 = vrcp.pop %v4146
        %v4190 = vmul.f32 1.0, %v4189
        %v4191 = vrcp.pop %v4147
        %v4192 = vmul.f32 1.0, %v4191
        %v4193 = vrcp.pop %v4148
        %v4194 = vmul.f32 1.0, %v4193
        %v4195 = vrcp.pop %v4149
        %v4196 = vmul.f32 1.0, %v4195
        %v4197 = vrcp.pop %v4150
        %v4198 = vmul.f32 1.0, %v4197
        %v4199 = vrcp.pop %v4151
        %v4200 = vmul.f32 1.0, %v4199
        %v4201 = vrcp.pop %v4152
        %v4202 = vmul.f32 1.0, %v4201
        %v4203 = vrcp.pop %v4153
        %v4204 = vmul.f32 1.0, %v4203
        %v4205 = vrcp.pop %v4154
        %v4206 = vmul.f32 1.0, %v4205
        %v4207 = vrcp.pop %v4155
        %v4208 = vmul.f32 1.0, %v4207
        %v4209 = vrcp.pop %v4156
        %v4210 = vmul.f32 1.0, %v4209
        %v4211 = vrcp.pop %v4157
        %v4212 = vmul.f32 1.0, %v4211
        %v4213 = vrcp.pop %v4158
        %v4214 = vmul.f32 1.0, %v4213
        %v4215 = vrcp.pop %v4159
        %v4216 = vmul.f32 1.0, %v4215
        %v4217 = vrcp.pop %v4160
        %v4218 = vmul.f32 1.0, %v4217
        %v4219 = vrcp.pop %v4161
        %v4220 = vmul.f32 1.0, %v4219
        %v4221 = vrcp.pop %v4162
        %v4222 = vmul.f32 1.0, %v4221
        %v4223 = vrcp.pop %v4163
        %v4224 = vmul.f32 1.0, %v4223
        %v4225 = vrcp.pop %v4164
        %v4226 = vmul.f32 1.0, %v4225
        %v4227 = vrcp.pop %v4165
        %v4228 = vmul.f32 1.0, %v4227
        %v4229 = vrcp.pop %v4166
        %v4230 = vmul.f32 1.0, %v4229
        %v4231 = vtanh.pop %v3913
        %v4232 = vtanh.pop %v3916
        %v4233 = vtanh.pop %v3921
        %v4234 = vtanh.pop %v3924
        %v4235 = vtanh.pop %v3929
        %v4236 = vtanh.pop %v3932
        %v4237 = vtanh.pop %v3937
        %v4238 = vtanh.pop %v3940
        %v4239 = vtanh.pop %v3945
        %v4240 = vtanh.pop %v3948
        %v4241 = vtanh.pop %v3953
        %v4242 = vtanh.pop %v3956
        %v4243 = vtanh.pop %v3961
        %v4244 = vtanh.pop %v3964
        %v4245 = vtanh.pop %v3969
        %v4246 = vtanh.pop %v3972
        %v4247 = vtanh.pop %v3977
        %v4248 = vtanh.pop %v3980
        %v4249 = vtanh.pop %v3985
        %v4250 = vtanh.pop %v3988
        %v4251 = vtanh.pop %v3993
        %v4252 = vtanh.pop %v3996
        %v4253 = vtanh.pop %v4001
        %v4254 = vtanh.pop %v4004
        %v4255 = vtanh.pop %v4009
        %v4256 = vtanh.pop %v4012
        %v4257 = vtanh.pop %v4017
        %v4258 = vtanh.pop %v4020
        %v4259 = vtanh.pop %v4025
        %v4260 = vtanh.pop %v4028
        %v4261 = vtanh.pop %v4033
        %v4262 = vtanh.pop %v4036
        %v4263 = vld [vmem:[%s301] sm:$0xff]
        %v4264 = vld [vmem:[%s301 + $0x8] sm:$0xff]
        %v4265 = vld [vmem:[%s301 + $0x10] sm:$0xff]
        %v4266 = vld [vmem:[%s301 + $0x18] sm:$0xff]
        %v4267 = vld [vmem:[%s301 + $0x20] sm:$0xff]
        %v4268 = vld [vmem:[%s301 + $0x28] sm:$0xff]
        %v4269 = vld [vmem:[%s301 + $0x30] sm:$0xff]
        %v4270 = vld [vmem:[%s301 + $0x38] sm:$0xff]
        %v4271 = vld [vmem:[%s301 + $0x40] sm:$0xff]
        %v4272 = vld [vmem:[%s301 + $0x48] sm:$0xff]
        %v4273 = vld [vmem:[%s301 + $0x50] sm:$0xff]
        %v4274 = vld [vmem:[%s301 + $0x58] sm:$0xff]
        %v4275 = vld [vmem:[%s301 + $0x60] sm:$0xff]
        %v4276 = vld [vmem:[%s301 + $0x68] sm:$0xff]
        %v4277 = vld [vmem:[%s301 + $0x70] sm:$0xff]
        %v4278 = vld [vmem:[%s301 + $0x78] sm:$0xff]
        %v4279 = vld [vmem:[%s301 + $0x80] sm:$0xff]
        %v4280 = vld [vmem:[%s301 + $0x88] sm:$0xff]
        %v4281 = vld [vmem:[%s301 + $0x90] sm:$0xff]
        %v4282 = vld [vmem:[%s301 + $0x98] sm:$0xff]
        %v4283 = vld [vmem:[%s301 + $0xa0] sm:$0xff]
        %v4284 = vld [vmem:[%s301 + $0xa8] sm:$0xff]
        %v4285 = vld [vmem:[%s301 + $0xb0] sm:$0xff]
        %v4286 = vld [vmem:[%s301 + $0xb8] sm:$0xff]
        %v4287 = vld [vmem:[%s301 + $0xc0] sm:$0xff]
        %v4288 = vld [vmem:[%s301 + $0xc8] sm:$0xff]
        %v4289 = vld [vmem:[%s301 + $0xd0] sm:$0xff]
        %v4290 = vld [vmem:[%s301 + $0xd8] sm:$0xff]
        %v4291 = vld [vmem:[%s301 + $0xe0] sm:$0xff]
        %v4292 = vld [vmem:[%s301 + $0xe8] sm:$0xff]
        %v4293 = vld [vmem:[%s301 + $0xf0] sm:$0xff]
        %v4294 = vld [vmem:[%s301 + $0xf8] sm:$0xff]
        %4327 = vrot.lane.b32.xlu0 %v4263, 32
        %v4328 = vpop.permute.xlu0 %4327
        %4329 = vrot.lane.b32.xlu0 %v4264, 32
        %v4330 = vpop.permute.xlu0 %4329
        %4331 = vrot.lane.b32.xlu0 %v4265, 32
        %v4332 = vpop.permute.xlu0 %4331
        %4333 = vrot.lane.b32.xlu0 %v4266, 32
        %v4334 = vpop.permute.xlu0 %4333
        %4335 = vrot.lane.b32.xlu0 %v4267, 32
        %v4336 = vpop.permute.xlu0 %4335
        %4337 = vrot.lane.b32.xlu0 %v4268, 32
        %v4338 = vpop.permute.xlu0 %4337
        %4339 = vrot.lane.b32.xlu0 %v4269, 32
        %v4340 = vpop.permute.xlu0 %4339
        %4341 = vrot.lane.b32.xlu0 %v4270, 32
        %v4342 = vpop.permute.xlu0 %4341
        %4343 = vrot.lane.b32.xlu0 %v4271, 32
        %v4344 = vpop.permute.xlu0 %4343
        %4345 = vrot.lane.b32.xlu0 %v4272, 32
        %v4346 = vpop.permute.xlu0 %4345
        %4347 = vrot.lane.b32.xlu0 %v4273, 32
        %v4348 = vpop.permute.xlu0 %4347
        %4349 = vrot.lane.b32.xlu0 %v4274, 32
        %v4350 = vpop.permute.xlu0 %4349
        %4351 = vrot.lane.b32.xlu0 %v4275, 32
        %v4352 = vpop.permute.xlu0 %4351
        %4353 = vrot.lane.b32.xlu0 %v4276, 32
        %v4354 = vpop.permute.xlu0 %4353
        %4355 = vrot.lane.b32.xlu0 %v4277, 32
        %v4356 = vpop.permute.xlu0 %4355
        %4357 = vrot.lane.b32.xlu0 %v4278, 32
        %v4358 = vpop.permute.xlu0 %4357
        %4359 = vrot.lane.b32.xlu0 %v4279, 32
        %v4360 = vpop.permute.xlu0 %4359
        %4361 = vrot.lane.b32.xlu0 %v4280, 32
        %v4362 = vpop.permute.xlu0 %4361
        %4363 = vrot.lane.b32.xlu0 %v4281, 32
        %v4364 = vpop.permute.xlu0 %4363
        %4365 = vrot.lane.b32.xlu0 %v4282, 32
        %v4366 = vpop.permute.xlu0 %4365
        %4367 = vrot.lane.b32.xlu0 %v4283, 32
        %v4368 = vpop.permute.xlu0 %4367
        %4369 = vrot.lane.b32.xlu0 %v4284, 32
        %v4370 = vpop.permute.xlu0 %4369
        %4371 = vrot.lane.b32.xlu0 %v4285, 32
        %v4372 = vpop.permute.xlu0 %4371
        %4373 = vrot.lane.b32.xlu0 %v4286, 32
        %v4374 = vpop.permute.xlu0 %4373
        %4375 = vrot.lane.b32.xlu0 %v4287, 32
        %v4376 = vpop.permute.xlu0 %4375
        %4377 = vrot.lane.b32.xlu0 %v4288, 32
        %v4378 = vpop.permute.xlu0 %4377
        %4379 = vrot.lane.b32.xlu0 %v4289, 32
        %v4380 = vpop.permute.xlu0 %4379
        %4381 = vrot.lane.b32.xlu0 %v4290, 32
        %v4382 = vpop.permute.xlu0 %4381
        %4383 = vrot.lane.b32.xlu0 %v4291, 32
        %v4384 = vpop.permute.xlu0 %4383
        %4385 = vrot.lane.b32.xlu0 %v4292, 32
        %v4386 = vpop.permute.xlu0 %4385
        %4387 = vrot.lane.b32.xlu0 %v4293, 32
        %v4388 = vpop.permute.xlu0 %4387
        %4389 = vrot.lane.b32.xlu0 %v4294, 32
        %v4390 = vpop.permute.xlu0 %4389
        %v4423 = vmul.f32 %v4168, %v4328
        %v4424 = vmul.f32 %v4170, %v4330
        %v4425 = vmul.f32 %v4172, %v4332
        %v4426 = vmul.f32 %v4174, %v4334
        %v4427 = vmul.f32 %v4176, %v4336
        %v4428 = vmul.f32 %v4178, %v4338
        %v4429 = vmul.f32 %v4180, %v4340
        %v4430 = vmul.f32 %v4182, %v4342
        %v4431 = vmul.f32 %v4184, %v4344
        %v4432 = vmul.f32 %v4186, %v4346
        %v4433 = vmul.f32 %v4188, %v4348
        %v4434 = vmul.f32 %v4190, %v4350
        %v4435 = vmul.f32 %v4192, %v4352
        %v4436 = vmul.f32 %v4194, %v4354
        %v4437 = vmul.f32 %v4196, %v4356
        %v4438 = vmul.f32 %v4198, %v4358
        %v4439 = vmul.f32 %v4200, %v4360
        %v4440 = vmul.f32 %v4202, %v4362
        %v4441 = vmul.f32 %v4204, %v4364
        %v4442 = vmul.f32 %v4206, %v4366
        %v4443 = vmul.f32 %v4208, %v4368
        %v4444 = vmul.f32 %v4210, %v4370
        %v4445 = vmul.f32 %v4212, %v4372
        %v4446 = vmul.f32 %v4214, %v4374
        %v4447 = vmul.f32 %v4216, %v4376
        %v4448 = vmul.f32 %v4218, %v4378
        %v4449 = vmul.f32 %v4220, %v4380
        %v4450 = vmul.f32 %v4222, %v4382
        %v4451 = vmul.f32 %v4224, %v4384
        %v4452 = vmul.f32 %v4226, %v4386
        %v4453 = vmul.f32 %v4228, %v4388
        %v4454 = vmul.f32 %v4230, %v4390
        %4487 = vrot.lane.b32.xlu0 %v4231, 32
        %v4488 = vpop.permute.xlu0 %4487
        %4489 = vrot.lane.b32.xlu0 %v4232, 32
        %v4490 = vpop.permute.xlu0 %4489
        %4491 = vrot.lane.b32.xlu0 %v4233, 32
        %v4492 = vpop.permute.xlu0 %4491
        %4493 = vrot.lane.b32.xlu0 %v4234, 32
        %v4494 = vpop.permute.xlu0 %4493
        %4495 = vrot.lane.b32.xlu0 %v4235, 32
        %v4496 = vpop.permute.xlu0 %4495
        %4497 = vrot.lane.b32.xlu0 %v4236, 32
        %v4498 = vpop.permute.xlu0 %4497
        %4499 = vrot.lane.b32.xlu0 %v4237, 32
        %v4500 = vpop.permute.xlu0 %4499
        %4501 = vrot.lane.b32.xlu0 %v4238, 32
        %v4502 = vpop.permute.xlu0 %4501
        %4503 = vrot.lane.b32.xlu0 %v4239, 32
        %v4504 = vpop.permute.xlu0 %4503
        %4505 = vrot.lane.b32.xlu0 %v4240, 32
        %v4506 = vpop.permute.xlu0 %4505
        %4507 = vrot.lane.b32.xlu0 %v4241, 32
        %v4508 = vpop.permute.xlu0 %4507
        %4509 = vrot.lane.b32.xlu0 %v4242, 32
        %v4510 = vpop.permute.xlu0 %4509
        %4511 = vrot.lane.b32.xlu0 %v4243, 32
        %v4512 = vpop.permute.xlu0 %4511
        %4513 = vrot.lane.b32.xlu0 %v4244, 32
        %v4514 = vpop.permute.xlu0 %4513
        %4515 = vrot.lane.b32.xlu0 %v4245, 32
        %v4516 = vpop.permute.xlu0 %4515
        %4517 = vrot.lane.b32.xlu0 %v4246, 32
        %v4518 = vpop.permute.xlu0 %4517
        %4519 = vrot.lane.b32.xlu0 %v4247, 32
        %v4520 = vpop.permute.xlu0 %4519
        %4521 = vrot.lane.b32.xlu0 %v4248, 32
        %v4522 = vpop.permute.xlu0 %4521
        %4523 = vrot.lane.b32.xlu0 %v4249, 32
        %v4524 = vpop.permute.xlu0 %4523
        %4525 = vrot.lane.b32.xlu0 %v4250, 32
        %v4526 = vpop.permute.xlu0 %4525
        %4527 = vrot.lane.b32.xlu0 %v4251, 32
        %v4528 = vpop.permute.xlu0 %4527
        %4529 = vrot.lane.b32.xlu0 %v4252, 32
        %v4530 = vpop.permute.xlu0 %4529
        %4531 = vrot.lane.b32.xlu0 %v4253, 32
        %v4532 = vpop.permute.xlu0 %4531
        %4533 = vrot.lane.b32.xlu0 %v4254, 32
        %v4534 = vpop.permute.xlu0 %4533
        %4535 = vrot.lane.b32.xlu0 %v4255, 32
        %v4536 = vpop.permute.xlu0 %4535
        %4537 = vrot.lane.b32.xlu0 %v4256, 32
        %v4538 = vpop.permute.xlu0 %4537
        %4539 = vrot.lane.b32.xlu0 %v4257, 32
        %v4540 = vpop.permute.xlu0 %4539
        %4541 = vrot.lane.b32.xlu0 %v4258, 32
        %v4542 = vpop.permute.xlu0 %4541
        %4543 = vrot.lane.b32.xlu0 %v4259, 32
        %v4544 = vpop.permute.xlu0 %4543
        %4545 = vrot.lane.b32.xlu0 %v4260, 32
        %v4546 = vpop.permute.xlu0 %4545
        %4547 = vrot.lane.b32.xlu0 %v4261, 32
        %v4548 = vpop.permute.xlu0 %4547
        %4549 = vrot.lane.b32.xlu0 %v4262, 32
        %v4550 = vpop.permute.xlu0 %4549
        %v4583 = vmul.f32 %v4168, %v4488
        %v4584 = vmul.f32 %v4170, %v4490
        %v4585 = vmul.f32 %v4172, %v4492
        %v4586 = vmul.f32 %v4174, %v4494
        %v4587 = vmul.f32 %v4176, %v4496
        %v4588 = vmul.f32 %v4178, %v4498
        %v4589 = vmul.f32 %v4180, %v4500
        %v4590 = vmul.f32 %v4182, %v4502
        %v4591 = vmul.f32 %v4184, %v4504
        %v4592 = vmul.f32 %v4186, %v4506
        %v4593 = vmul.f32 %v4188, %v4508
        %v4594 = vmul.f32 %v4190, %v4510
        %v4595 = vmul.f32 %v4192, %v4512
        %v4596 = vmul.f32 %v4194, %v4514
        %v4597 = vmul.f32 %v4196, %v4516
        %v4598 = vmul.f32 %v4198, %v4518
        %v4599 = vmul.f32 %v4200, %v4520
        %v4600 = vmul.f32 %v4202, %v4522
        %v4601 = vmul.f32 %v4204, %v4524
        %v4602 = vmul.f32 %v4206, %v4526
        %v4603 = vmul.f32 %v4208, %v4528
        %v4604 = vmul.f32 %v4210, %v4530
        %v4605 = vmul.f32 %v4212, %v4532
        %v4606 = vmul.f32 %v4214, %v4534
        %v4607 = vmul.f32 %v4216, %v4536
        %v4608 = vmul.f32 %v4218, %v4538
        %v4609 = vmul.f32 %v4220, %v4540
        %v4610 = vmul.f32 %v4222, %v4542
        %v4611 = vmul.f32 %v4224, %v4544
        %v4612 = vmul.f32 %v4226, %v4546
        %v4613 = vmul.f32 %v4228, %v4548
        %v4614 = vmul.f32 %v4230, %v4550
        %4647 = vrot.lane.b32.xlu0 %v4583, 32
        %v4648 = vpop.permute.xlu0 %4647
        %4649 = vrot.lane.b32.xlu0 %v4584, 32
        %v4650 = vpop.permute.xlu0 %4649
        %4651 = vrot.lane.b32.xlu0 %v4585, 32
        %v4652 = vpop.permute.xlu0 %4651
        %4653 = vrot.lane.b32.xlu0 %v4586, 32
        %v4654 = vpop.permute.xlu0 %4653
        %4655 = vrot.lane.b32.xlu0 %v4587, 32
        %v4656 = vpop.permute.xlu0 %4655
        %4657 = vrot.lane.b32.xlu0 %v4588, 32
        %v4658 = vpop.permute.xlu0 %4657
        %4659 = vrot.lane.b32.xlu0 %v4589, 32
        %v4660 = vpop.permute.xlu0 %4659
        %4661 = vrot.lane.b32.xlu0 %v4590, 32
        %v4662 = vpop.permute.xlu0 %4661
        %4663 = vrot.lane.b32.xlu0 %v4591, 32
        %v4664 = vpop.permute.xlu0 %4663
        %4665 = vrot.lane.b32.xlu0 %v4592, 32
        %v4666 = vpop.permute.xlu0 %4665
        %4667 = vrot.lane.b32.xlu0 %v4593, 32
        %v4668 = vpop.permute.xlu0 %4667
        %4669 = vrot.lane.b32.xlu0 %v4594, 32
        %v4670 = vpop.permute.xlu0 %4669
        %4671 = vrot.lane.b32.xlu0 %v4595, 32
        %v4672 = vpop.permute.xlu0 %4671
        %4673 = vrot.lane.b32.xlu0 %v4596, 32
        %v4674 = vpop.permute.xlu0 %4673
        %4675 = vrot.lane.b32.xlu0 %v4597, 32
        %v4676 = vpop.permute.xlu0 %4675
        %4677 = vrot.lane.b32.xlu0 %v4598, 32
        %v4678 = vpop.permute.xlu0 %4677
        %4679 = vrot.lane.b32.xlu0 %v4599, 32
        %v4680 = vpop.permute.xlu0 %4679
        %4681 = vrot.lane.b32.xlu0 %v4600, 32
        %v4682 = vpop.permute.xlu0 %4681
        %4683 = vrot.lane.b32.xlu0 %v4601, 32
        %v4684 = vpop.permute.xlu0 %4683
        %4685 = vrot.lane.b32.xlu0 %v4602, 32
        %v4686 = vpop.permute.xlu0 %4685
        %4687 = vrot.lane.b32.xlu0 %v4603, 32
        %v4688 = vpop.permute.xlu0 %4687
        %4689 = vrot.lane.b32.xlu0 %v4604, 32
        %v4690 = vpop.permute.xlu0 %4689
        %4691 = vrot.lane.b32.xlu0 %v4605, 32
        %v4692 = vpop.permute.xlu0 %4691
        %4693 = vrot.lane.b32.xlu0 %v4606, 32
        %v4694 = vpop.permute.xlu0 %4693
        %4695 = vrot.lane.b32.xlu0 %v4607, 32
        %v4696 = vpop.permute.xlu0 %4695
        %4697 = vrot.lane.b32.xlu0 %v4608, 32
        %v4698 = vpop.permute.xlu0 %4697
        %4699 = vrot.lane.b32.xlu0 %v4609, 32
        %v4700 = vpop.permute.xlu0 %4699
        %4701 = vrot.lane.b32.xlu0 %v4610, 32
        %v4702 = vpop.permute.xlu0 %4701
        %4703 = vrot.lane.b32.xlu0 %v4611, 32
        %v4704 = vpop.permute.xlu0 %4703
        %4705 = vrot.lane.b32.xlu0 %v4612, 32
        %v4706 = vpop.permute.xlu0 %4705
        %4707 = vrot.lane.b32.xlu0 %v4613, 32
        %v4708 = vpop.permute.xlu0 %4707
        %4709 = vrot.lane.b32.xlu0 %v4614, 32
        %v4710 = vpop.permute.xlu0 %4709
        %v4743 = vadd.f32 %v4423, %v4648
        %v4744 = vadd.f32 %v4424, %v4650
        %v4745 = vadd.f32 %v4425, %v4652
        %v4746 = vadd.f32 %v4426, %v4654
        %v4747 = vadd.f32 %v4427, %v4656
        %v4748 = vadd.f32 %v4428, %v4658
        %v4749 = vadd.f32 %v4429, %v4660
        %v4750 = vadd.f32 %v4430, %v4662
        %v4751 = vadd.f32 %v4431, %v4664
        %v4752 = vadd.f32 %v4432, %v4666
        %v4753 = vadd.f32 %v4433, %v4668
        %v4754 = vadd.f32 %v4434, %v4670
        %v4755 = vadd.f32 %v4435, %v4672
        %v4756 = vadd.f32 %v4436, %v4674
        %v4757 = vadd.f32 %v4437, %v4676
        %v4758 = vadd.f32 %v4438, %v4678
        %v4759 = vadd.f32 %v4439, %v4680
        %v4760 = vadd.f32 %v4440, %v4682
        %v4761 = vadd.f32 %v4441, %v4684
        %v4762 = vadd.f32 %v4442, %v4686
        %v4763 = vadd.f32 %v4443, %v4688
        %v4764 = vadd.f32 %v4444, %v4690
        %v4765 = vadd.f32 %v4445, %v4692
        %v4766 = vadd.f32 %v4446, %v4694
        %v4767 = vadd.f32 %v4447, %v4696
        %v4768 = vadd.f32 %v4448, %v4698
        %v4769 = vadd.f32 %v4449, %v4700
        %v4770 = vadd.f32 %v4450, %v4702
        %v4771 = vadd.f32 %v4451, %v4704
        %v4772 = vadd.f32 %v4452, %v4706
        %v4773 = vadd.f32 %v4453, %v4708
        %v4774 = vadd.f32 %v4454, %v4710
        %v4775 = vtanh.pop %v4743
        %v4776 = vtanh.pop %v4744
        %v4777 = vtanh.pop %v4745
        %v4778 = vtanh.pop %v4746
        %v4779 = vtanh.pop %v4747
        %v4780 = vtanh.pop %v4748
        %v4781 = vtanh.pop %v4749
        %v4782 = vtanh.pop %v4750
        %v4783 = vtanh.pop %v4751
        %v4784 = vtanh.pop %v4752
        %v4785 = vtanh.pop %v4753
        %v4786 = vtanh.pop %v4754
        %v4787 = vtanh.pop %v4755
        %v4788 = vtanh.pop %v4756
        %v4789 = vtanh.pop %v4757
        %v4790 = vtanh.pop %v4758
        %v4791 = vtanh.pop %v4759
        %v4792 = vtanh.pop %v4760
        %v4793 = vtanh.pop %v4761
        %v4794 = vtanh.pop %v4762
        %v4795 = vtanh.pop %v4763
        %v4796 = vtanh.pop %v4764
        %v4797 = vtanh.pop %v4765
        %v4798 = vtanh.pop %v4766
        %v4799 = vtanh.pop %v4767
        %v4800 = vtanh.pop %v4768
        %v4801 = vtanh.pop %v4769
        %v4802 = vtanh.pop %v4770
        %v4803 = vtanh.pop %v4771
        %v4804 = vtanh.pop %v4772
        %v4805 = vtanh.pop %v4773
        %v4806 = vtanh.pop %v4774
        %4839 = vrot.lane.b32.xlu0 %v4775, 32
        %v4840 = vpop.permute.xlu0 %4839
        %4841 = vrot.lane.b32.xlu0 %v4776, 32
        %v4842 = vpop.permute.xlu0 %4841
        %4843 = vrot.lane.b32.xlu0 %v4777, 32
        %v4844 = vpop.permute.xlu0 %4843
        %4845 = vrot.lane.b32.xlu0 %v4778, 32
        %v4846 = vpop.permute.xlu0 %4845
        %4847 = vrot.lane.b32.xlu0 %v4779, 32
        %v4848 = vpop.permute.xlu0 %4847
        %4849 = vrot.lane.b32.xlu0 %v4780, 32
        %v4850 = vpop.permute.xlu0 %4849
        %4851 = vrot.lane.b32.xlu0 %v4781, 32
        %v4852 = vpop.permute.xlu0 %4851
        %4853 = vrot.lane.b32.xlu0 %v4782, 32
        %v4854 = vpop.permute.xlu0 %4853
        %4855 = vrot.lane.b32.xlu0 %v4783, 32
        %v4856 = vpop.permute.xlu0 %4855
        %4857 = vrot.lane.b32.xlu0 %v4784, 32
        %v4858 = vpop.permute.xlu0 %4857
        %4859 = vrot.lane.b32.xlu0 %v4785, 32
        %v4860 = vpop.permute.xlu0 %4859
        %4861 = vrot.lane.b32.xlu0 %v4786, 32
        %v4862 = vpop.permute.xlu0 %4861
        %4863 = vrot.lane.b32.xlu0 %v4787, 32
        %v4864 = vpop.permute.xlu0 %4863
        %4865 = vrot.lane.b32.xlu0 %v4788, 32
        %v4866 = vpop.permute.xlu0 %4865
        %4867 = vrot.lane.b32.xlu0 %v4789, 32
        %v4868 = vpop.permute.xlu0 %4867
        %4869 = vrot.lane.b32.xlu0 %v4790, 32
        %v4870 = vpop.permute.xlu0 %4869
        %4871 = vrot.lane.b32.xlu0 %v4791, 32
        %v4872 = vpop.permute.xlu0 %4871
        %4873 = vrot.lane.b32.xlu0 %v4792, 32
        %v4874 = vpop.permute.xlu0 %4873
        %4875 = vrot.lane.b32.xlu0 %v4793, 32
        %v4876 = vpop.permute.xlu0 %4875
        %4877 = vrot.lane.b32.xlu0 %v4794, 32
        %v4878 = vpop.permute.xlu0 %4877
        %4879 = vrot.lane.b32.xlu0 %v4795, 32
        %v4880 = vpop.permute.xlu0 %4879
        %4881 = vrot.lane.b32.xlu0 %v4796, 32
        %v4882 = vpop.permute.xlu0 %4881
        %4883 = vrot.lane.b32.xlu0 %v4797, 32
        %v4884 = vpop.permute.xlu0 %4883
        %4885 = vrot.lane.b32.xlu0 %v4798, 32
        %v4886 = vpop.permute.xlu0 %4885
        %4887 = vrot.lane.b32.xlu0 %v4799, 32
        %v4888 = vpop.permute.xlu0 %4887
        %4889 = vrot.lane.b32.xlu0 %v4800, 32
        %v4890 = vpop.permute.xlu0 %4889
        %4891 = vrot.lane.b32.xlu0 %v4801, 32
        %v4892 = vpop.permute.xlu0 %4891
        %4893 = vrot.lane.b32.xlu0 %v4802, 32
        %v4894 = vpop.permute.xlu0 %4893
        %4895 = vrot.lane.b32.xlu0 %v4803, 32
        %v4896 = vpop.permute.xlu0 %4895
        %4897 = vrot.lane.b32.xlu0 %v4804, 32
        %v4898 = vpop.permute.xlu0 %4897
        %4899 = vrot.lane.b32.xlu0 %v4805, 32
        %v4900 = vpop.permute.xlu0 %4899
        %4901 = vrot.lane.b32.xlu0 %v4806, 32
        %v4902 = vpop.permute.xlu0 %4901
        %v4935 = vmul.f32 %v4168, %v4840
        %v4936 = vmul.f32 %v4170, %v4842
        %v4937 = vmul.f32 %v4172, %v4844
        %v4938 = vmul.f32 %v4174, %v4846
        %v4939 = vmul.f32 %v4176, %v4848
        %v4940 = vmul.f32 %v4178, %v4850
        %v4941 = vmul.f32 %v4180, %v4852
        %v4942 = vmul.f32 %v4182, %v4854
        %v4943 = vmul.f32 %v4184, %v4856
        %v4944 = vmul.f32 %v4186, %v4858
        %v4945 = vmul.f32 %v4188, %v4860
        %v4946 = vmul.f32 %v4190, %v4862
        %v4947 = vmul.f32 %v4192, %v4864
        %v4948 = vmul.f32 %v4194, %v4866
        %v4949 = vmul.f32 %v4196, %v4868
        %v4950 = vmul.f32 %v4198, %v4870
        %v4951 = vmul.f32 %v4200, %v4872
        %v4952 = vmul.f32 %v4202, %v4874
        %v4953 = vmul.f32 %v4204, %v4876
        %v4954 = vmul.f32 %v4206, %v4878
        %v4955 = vmul.f32 %v4208, %v4880
        %v4956 = vmul.f32 %v4210, %v4882
        %v4957 = vmul.f32 %v4212, %v4884
        %v4958 = vmul.f32 %v4214, %v4886
        %v4959 = vmul.f32 %v4216, %v4888
        %v4960 = vmul.f32 %v4218, %v4890
        %v4961 = vmul.f32 %v4220, %v4892
        %v4962 = vmul.f32 %v4222, %v4894
        %v4963 = vmul.f32 %v4224, %v4896
        %v4964 = vmul.f32 %v4226, %v4898
        %v4965 = vmul.f32 %v4228, %v4900
        %v4966 = vmul.f32 %v4230, %v4902
        %4999 = vrot.lane.b32.xlu0 %v4935, 64
        %v5000 = vpop.permute.xlu0 %4999
        %5001 = vrot.lane.b32.xlu0 %v4936, 64
        %v5002 = vpop.permute.xlu0 %5001
        %5003 = vrot.lane.b32.xlu0 %v4937, 64
        %v5004 = vpop.permute.xlu0 %5003
        %5005 = vrot.lane.b32.xlu0 %v4938, 64
        %v5006 = vpop.permute.xlu0 %5005
        %5007 = vrot.lane.b32.xlu0 %v4939, 64
        %v5008 = vpop.permute.xlu0 %5007
        %5009 = vrot.lane.b32.xlu0 %v4940, 64
        %v5010 = vpop.permute.xlu0 %5009
        %5011 = vrot.lane.b32.xlu0 %v4941, 64
        %v5012 = vpop.permute.xlu0 %5011
        %5013 = vrot.lane.b32.xlu0 %v4942, 64
        %v5014 = vpop.permute.xlu0 %5013
        %5015 = vrot.lane.b32.xlu0 %v4943, 64
        %v5016 = vpop.permute.xlu0 %5015
        %5017 = vrot.lane.b32.xlu0 %v4944, 64
        %v5018 = vpop.permute.xlu0 %5017
        %5019 = vrot.lane.b32.xlu0 %v4945, 64
        %v5020 = vpop.permute.xlu0 %5019
        %5021 = vrot.lane.b32.xlu0 %v4946, 64
        %v5022 = vpop.permute.xlu0 %5021
        %5023 = vrot.lane.b32.xlu0 %v4947, 64
        %v5024 = vpop.permute.xlu0 %5023
        %5025 = vrot.lane.b32.xlu0 %v4948, 64
        %v5026 = vpop.permute.xlu0 %5025
        %5027 = vrot.lane.b32.xlu0 %v4949, 64
        %v5028 = vpop.permute.xlu0 %5027
        %5029 = vrot.lane.b32.xlu0 %v4950, 64
        %v5030 = vpop.permute.xlu0 %5029
        %5031 = vrot.lane.b32.xlu0 %v4951, 64
        %v5032 = vpop.permute.xlu0 %5031
        %5033 = vrot.lane.b32.xlu0 %v4952, 64
        %v5034 = vpop.permute.xlu0 %5033
        %5035 = vrot.lane.b32.xlu0 %v4953, 64
        %v5036 = vpop.permute.xlu0 %5035
        %5037 = vrot.lane.b32.xlu0 %v4954, 64
        %v5038 = vpop.permute.xlu0 %5037
        %5039 = vrot.lane.b32.xlu0 %v4955, 64
        %v5040 = vpop.permute.xlu0 %5039
        %5041 = vrot.lane.b32.xlu0 %v4956, 64
        %v5042 = vpop.permute.xlu0 %5041
        %5043 = vrot.lane.b32.xlu0 %v4957, 64
        %v5044 = vpop.permute.xlu0 %5043
        %5045 = vrot.lane.b32.xlu0 %v4958, 64
        %v5046 = vpop.permute.xlu0 %5045
        %5047 = vrot.lane.b32.xlu0 %v4959, 64
        %v5048 = vpop.permute.xlu0 %5047
        %5049 = vrot.lane.b32.xlu0 %v4960, 64
        %v5050 = vpop.permute.xlu0 %5049
        %5051 = vrot.lane.b32.xlu0 %v4961, 64
        %v5052 = vpop.permute.xlu0 %5051
        %5053 = vrot.lane.b32.xlu0 %v4962, 64
        %v5054 = vpop.permute.xlu0 %5053
        %5055 = vrot.lane.b32.xlu0 %v4963, 64
        %v5056 = vpop.permute.xlu0 %5055
        %5057 = vrot.lane.b32.xlu0 %v4964, 64
        %v5058 = vpop.permute.xlu0 %5057
        %5059 = vrot.lane.b32.xlu0 %v4965, 64
        %v5060 = vpop.permute.xlu0 %5059
        %5061 = vrot.lane.b32.xlu0 %v4966, 64
        %v5062 = vpop.permute.xlu0 %5061
        %5095 = vst.msk [vmem:[%s275] sm:$0xff] %vm3092, %v5000
        %5096 = vst.msk [vmem:[%s275 + $0x8] sm:$0xff] %vm3092, %v5002
        %5097 = vst.msk [vmem:[%s275 + $0x10] sm:$0xff] %vm3092, %v5004
        %5098 = vst.msk [vmem:[%s275 + $0x18] sm:$0xff] %vm3092, %v5006
        %5099 = vst.msk [vmem:[%s275 + $0x20] sm:$0xff] %vm3092, %v5008
        %5100 = vst.msk [vmem:[%s275 + $0x28] sm:$0xff] %vm3092, %v5010
        %5101 = vst.msk [vmem:[%s275 + $0x30] sm:$0xff] %vm3092, %v5012
        %5102 = vst.msk [vmem:[%s275 + $0x38] sm:$0xff] %vm3092, %v5014
        %5103 = vst.msk [vmem:[%s275 + $0x40] sm:$0xff] %vm3092, %v5016
        %5104 = vst.msk [vmem:[%s275 + $0x48] sm:$0xff] %vm3092, %v5018
        %5105 = vst.msk [vmem:[%s275 + $0x50] sm:$0xff] %vm3092, %v5020
        %5106 = vst.msk [vmem:[%s275 + $0x58] sm:$0xff] %vm3092, %v5022
        %5107 = vst.msk [vmem:[%s275 + $0x60] sm:$0xff] %vm3092, %v5024
        %5108 = vst.msk [vmem:[%s275 + $0x68] sm:$0xff] %vm3092, %v5026
        %5109 = vst.msk [vmem:[%s275 + $0x70] sm:$0xff] %vm3092, %v5028
        %5110 = vst.msk [vmem:[%s275 + $0x78] sm:$0xff] %vm3092, %v5030
        %5111 = vst.msk [vmem:[%s275 + $0x80] sm:$0xff] %vm3092, %v5032
        %5112 = vst.msk [vmem:[%s275 + $0x88] sm:$0xff] %vm3092, %v5034
        %5113 = vst.msk [vmem:[%s275 + $0x90] sm:$0xff] %vm3092, %v5036
        %5114 = vst.msk [vmem:[%s275 + $0x98] sm:$0xff] %vm3092, %v5038
        %5115 = vst.msk [vmem:[%s275 + $0xa0] sm:$0xff] %vm3092, %v5040
        %5116 = vst.msk [vmem:[%s275 + $0xa8] sm:$0xff] %vm3092, %v5042
        %5117 = vst.msk [vmem:[%s275 + $0xb0] sm:$0xff] %vm3092, %v5044
        %5118 = vst.msk [vmem:[%s275 + $0xb8] sm:$0xff] %vm3092, %v5046
        %5119 = vst.msk [vmem:[%s275 + $0xc0] sm:$0xff] %vm3092, %v5048
        %5120 = vst.msk [vmem:[%s275 + $0xc8] sm:$0xff] %vm3092, %v5050
        %5121 = vst.msk [vmem:[%s275 + $0xd0] sm:$0xff] %vm3092, %v5052
        %5122 = vst.msk [vmem:[%s275 + $0xd8] sm:$0xff] %vm3092, %v5054
        %5123 = vst.msk [vmem:[%s275 + $0xe0] sm:$0xff] %vm3092, %v5056
        %5124 = vst.msk [vmem:[%s275 + $0xe8] sm:$0xff] %vm3092, %v5058
        %5125 = vst.msk [vmem:[%s275 + $0xf0] sm:$0xff] %vm3092, %v5060
        %5126 = vst.msk [vmem:[%s275 + $0xf8] sm:$0xff] %vm3092, %v5062
        %5159 = vrot.lane.b32.xlu0 %v4743, 96
        %v5160 = vpop.permute.xlu0 %5159
        %5161 = vrot.lane.b32.xlu0 %v4744, 96
        %v5162 = vpop.permute.xlu0 %5161
        %5163 = vrot.lane.b32.xlu0 %v4745, 96
        %v5164 = vpop.permute.xlu0 %5163
        %5165 = vrot.lane.b32.xlu0 %v4746, 96
        %v5166 = vpop.permute.xlu0 %5165
        %5167 = vrot.lane.b32.xlu0 %v4747, 96
        %v5168 = vpop.permute.xlu0 %5167
        %5169 = vrot.lane.b32.xlu0 %v4748, 96
        %v5170 = vpop.permute.xlu0 %5169
        %5171 = vrot.lane.b32.xlu0 %v4749, 96
        %v5172 = vpop.permute.xlu0 %5171
        %5173 = vrot.lane.b32.xlu0 %v4750, 96
        %v5174 = vpop.permute.xlu0 %5173
        %5175 = vrot.lane.b32.xlu0 %v4751, 96
        %v5176 = vpop.permute.xlu0 %5175
        %5177 = vrot.lane.b32.xlu0 %v4752, 96
        %v5178 = vpop.permute.xlu0 %5177
        %5179 = vrot.lane.b32.xlu0 %v4753, 96
        %v5180 = vpop.permute.xlu0 %5179
        %5181 = vrot.lane.b32.xlu0 %v4754, 96
        %v5182 = vpop.permute.xlu0 %5181
        %5183 = vrot.lane.b32.xlu0 %v4755, 96
        %v5184 = vpop.permute.xlu0 %5183
        %5185 = vrot.lane.b32.xlu0 %v4756, 96
        %v5186 = vpop.permute.xlu0 %5185
        %5187 = vrot.lane.b32.xlu0 %v4757, 96
        %v5188 = vpop.permute.xlu0 %5187
        %5189 = vrot.lane.b32.xlu0 %v4758, 96
        %v5190 = vpop.permute.xlu0 %5189
        %5191 = vrot.lane.b32.xlu0 %v4759, 96
        %v5192 = vpop.permute.xlu0 %5191
        %5193 = vrot.lane.b32.xlu0 %v4760, 96
        %v5194 = vpop.permute.xlu0 %5193
        %5195 = vrot.lane.b32.xlu0 %v4761, 96
        %v5196 = vpop.permute.xlu0 %5195
        %5197 = vrot.lane.b32.xlu0 %v4762, 96
        %v5198 = vpop.permute.xlu0 %5197
        %5199 = vrot.lane.b32.xlu0 %v4763, 96
        %v5200 = vpop.permute.xlu0 %5199
        %5201 = vrot.lane.b32.xlu0 %v4764, 96
        %v5202 = vpop.permute.xlu0 %5201
        %5203 = vrot.lane.b32.xlu0 %v4765, 96
        %v5204 = vpop.permute.xlu0 %5203
        %5205 = vrot.lane.b32.xlu0 %v4766, 96
        %v5206 = vpop.permute.xlu0 %5205
        %5207 = vrot.lane.b32.xlu0 %v4767, 96
        %v5208 = vpop.permute.xlu0 %5207
        %5209 = vrot.lane.b32.xlu0 %v4768, 96
        %v5210 = vpop.permute.xlu0 %5209
        %5211 = vrot.lane.b32.xlu0 %v4769, 96
        %v5212 = vpop.permute.xlu0 %5211
        %5213 = vrot.lane.b32.xlu0 %v4770, 96
        %v5214 = vpop.permute.xlu0 %5213
        %5215 = vrot.lane.b32.xlu0 %v4771, 96
        %v5216 = vpop.permute.xlu0 %5215
        %5217 = vrot.lane.b32.xlu0 %v4772, 96
        %v5218 = vpop.permute.xlu0 %5217
        %5219 = vrot.lane.b32.xlu0 %v4773, 96
        %v5220 = vpop.permute.xlu0 %5219
        %5221 = vrot.lane.b32.xlu0 %v4774, 96
        %v5222 = vpop.permute.xlu0 %5221
        %5255 = vst.msk [vmem:[%s282] sm:$0xff] %vm3092, %v5160
        %5256 = vst.msk [vmem:[%s282 + $0x8] sm:$0xff] %vm3092, %v5162
        %5257 = vst.msk [vmem:[%s282 + $0x10] sm:$0xff] %vm3092, %v5164
        %5258 = vst.msk [vmem:[%s282 + $0x18] sm:$0xff] %vm3092, %v5166
        %5259 = vst.msk [vmem:[%s282 + $0x20] sm:$0xff] %vm3092, %v5168
        %5260 = vst.msk [vmem:[%s282 + $0x28] sm:$0xff] %vm3092, %v5170
        %5261 = vst.msk [vmem:[%s282 + $0x30] sm:$0xff] %vm3092, %v5172
        %5262 = vst.msk [vmem:[%s282 + $0x38] sm:$0xff] %vm3092, %v5174
        %5263 = vst.msk [vmem:[%s282 + $0x40] sm:$0xff] %vm3092, %v5176
        %5264 = vst.msk [vmem:[%s282 + $0x48] sm:$0xff] %vm3092, %v5178
        %5265 = vst.msk [vmem:[%s282 + $0x50] sm:$0xff] %vm3092, %v5180
        %5266 = vst.msk [vmem:[%s282 + $0x58] sm:$0xff] %vm3092, %v5182
        %5267 = vst.msk [vmem:[%s282 + $0x60] sm:$0xff] %vm3092, %v5184
        %5268 = vst.msk [vmem:[%s282 + $0x68] sm:$0xff] %vm3092, %v5186
        %5269 = vst.msk [vmem:[%s282 + $0x70] sm:$0xff] %vm3092, %v5188
        %5270 = vst.msk [vmem:[%s282 + $0x78] sm:$0xff] %vm3092, %v5190
        %5271 = vst.msk [vmem:[%s282 + $0x80] sm:$0xff] %vm3092, %v5192
        %5272 = vst.msk [vmem:[%s282 + $0x88] sm:$0xff] %vm3092, %v5194
        %5273 = vst.msk [vmem:[%s282 + $0x90] sm:$0xff] %vm3092, %v5196
        %5274 = vst.msk [vmem:[%s282 + $0x98] sm:$0xff] %vm3092, %v5198
        %5275 = vst.msk [vmem:[%s282 + $0xa0] sm:$0xff] %vm3092, %v5200
        %5276 = vst.msk [vmem:[%s282 + $0xa8] sm:$0xff] %vm3092, %v5202
        %5277 = vst.msk [vmem:[%s282 + $0xb0] sm:$0xff] %vm3092, %v5204
        %5278 = vst.msk [vmem:[%s282 + $0xb8] sm:$0xff] %vm3092, %v5206
        %5279 = vst.msk [vmem:[%s282 + $0xc0] sm:$0xff] %vm3092, %v5208
        %5280 = vst.msk [vmem:[%s282 + $0xc8] sm:$0xff] %vm3092, %v5210
        %5281 = vst.msk [vmem:[%s282 + $0xd0] sm:$0xff] %vm3092, %v5212
        %5282 = vst.msk [vmem:[%s282 + $0xd8] sm:$0xff] %vm3092, %v5214
        %5283 = vst.msk [vmem:[%s282 + $0xe0] sm:$0xff] %vm3092, %v5216
        %5284 = vst.msk [vmem:[%s282 + $0xe8] sm:$0xff] %vm3092, %v5218
        %5285 = vst.msk [vmem:[%s282 + $0xf0] sm:$0xff] %vm3092, %v5220
        %5286 = vst.msk [vmem:[%s282 + $0xf8] sm:$0xff] %vm3092, %v5222
        %s5287 = sand.u32 %s143, 1
        %s5288 = scalar_lea.sflag [#allocation4], %s5287
        %s5289 = sand.u32 %s143, 1
        %s5290 = smul.addr %s5289, 256
        %s5291 = scalar_lea.vmem [#allocation3], %s5290
        %s5292 = sand.u32 %s171, 1
        %s5293 = scalar_lea.sflag [#allocation6], %s5292
        %s5294 = sand.u32 %s171, 1
        %s5295 = smul.addr %s5294, 256
        %s5296 = scalar_lea.vmem [#allocation5], %s5295
        // Predicated region
        $region37: #{tpu_custom_call.1} parent=35 // pred_check
          %p5297 = pneg %p153
        $region38: #{tpu_custom_call.1} parent=35 // pred_check_branch
          %5299 = sbr.rel (%p5297) target = $region40
        $region39: #{tpu_custom_call.1} parent=35 // pred_region
          %s5300 = smul.u32 16, %s28
          %s5302 = ssub.s32 4096, 4096
          %5303 = vsyncadd %s5288, %s5302
          %s5304 = smul.addr %s5300, 2
          %s5305 = smul.addr %s27, 32
          %s5306 = sadd.s32 %s5304, %s5305
          %s5307 = smul.addr %s5306, 128
          %s5308 = scalar_lea.hbm %s4, %s5307
          %s5309 = sshll.u32 %s5291, 4
          %s5310 = int_to_ptr.vmem [resolvable:$true] %s5309
          %5315 = dma.vmem_to_hbm [thread:$0]  %s5310, 4096, %s5308, %s5288, 128, 128, 8
        $region40: #{tpu_custom_call.1} parent=35 // pred_fallthru
          _
        // Predicated region
        $region41: #{tpu_custom_call.1} parent=35 // pred_check
          %p5316 = pneg %p181
        $region42: #{tpu_custom_call.1} parent=35 // pred_check_branch
          %5318 = sbr.rel (%p5316) target = $region44
        $region43: #{tpu_custom_call.1} parent=35 // pred_region
          %s5319 = smul.u32 16, %s28
          %s5321 = ssub.s32 4096, 4096
          %5322 = vsyncadd %s5293, %s5321
          %s5323 = smul.addr %s5319, 2
          %s5324 = smul.addr %s27, 32
          %s5325 = sadd.s32 %s5323, %s5324
          %s5326 = smul.addr %s5325, 128
          %s5327 = scalar_lea.hbm %s5, %s5326
          %s5328 = sshll.u32 %s5296, 4
          %s5329 = int_to_ptr.vmem [resolvable:$true] %s5328
          %5334 = dma.vmem_to_hbm [thread:$0]  %s5329, 4096, %s5327, %s5293, 128, 128, 8
        $region44: #{tpu_custom_call.1} parent=35 // pred_fallthru
          _
      $region36: #{tpu_custom_call.1} parent=5 // pred_fallthru
        _
      %p5335 = scmp.le.s32.totalorder 2, %s18
      // Predicated region
      $region45: #{tpu_custom_call.1} parent=5 // pred_check
        %p5336 = pneg %p5335
      $region46: #{tpu_custom_call.1} parent=5 // pred_check_branch
        %5338 = sbr.rel (%p5336) target = $region48
      $region47: #{tpu_custom_call.1} parent=5 // pred_region
        %s5339 = ssub.s32 %s18, 2
        // Predicated region
        $region49: #{tpu_custom_call.1} parent=47 // pred_check
          %p5340 = pneg %p159
        $region50: #{tpu_custom_call.1} parent=47 // pred_check_branch
          %5342 = sbr.rel (%p5340) target = $region52
        $region51: #{tpu_custom_call.1} parent=47 // pred_region
          %s5343 = sand.u32 %s144, 1
          %s5344 = scalar_lea.sflag [#allocation4], %s5343
          %s5345 = sand.u32 %s144, 1
          %s5346 = smul.addr %s5345, 256
          %s5347 = scalar_lea.vmem [#allocation3], %s5346
          %5348 = dma.done %s5344, 4096
        $region52: #{tpu_custom_call.1} parent=47 // pred_fallthru
          _
        // Predicated region
        $region53: #{tpu_custom_call.1} parent=47 // pred_check
          %p5349 = pneg %p187
        $region54: #{tpu_custom_call.1} parent=47 // pred_check_branch
          %5351 = sbr.rel (%p5349) target = $region56
        $region55: #{tpu_custom_call.1} parent=47 // pred_region
          %s5352 = sand.u32 %s172, 1
          %s5353 = scalar_lea.sflag [#allocation6], %s5352
          %s5354 = sand.u32 %s172, 1
          %s5355 = smul.addr %s5354, 256
          %s5356 = scalar_lea.vmem [#allocation5], %s5355
          %5357 = dma.done %s5353, 4096
        $region56: #{tpu_custom_call.1} parent=47 // pred_fallthru
          _
      $region48: #{tpu_custom_call.1} parent=5 // pred_fallthru
        _
    $region6: #{tpu_custom_call.1} parent=1 // loop_footer
      %s22 = sadd.s32 1, %s18
    $region7: #{tpu_custom_call.1} parent=1 // loop_footer_branch
      %17 = sbr.rel target = $region3
    $region8: #{tpu_custom_call.1} parent=1 // loop_exit
      _
    %5358 = vsyncpa [#allocation4], 1
    %s5359 = scalar_lea.sflag [#allocation4], 1
    %5360 = vsyncpa %s5359, 1
    %5361 = vsyncpa [#allocation6], 1
    %s5362 = scalar_lea.sflag [#allocation6], 1
    %5363 = vsyncpa %s5362, 1

</llo_original>
